<compile_context>
chip_gen: v5e
topology: v5e:2x2
jax: 0.10.0
libtpu: 0.0.40
codegen_flags: <defaults>
</compile_context>

<pallas_src>
import jax
import jax.numpy as jnp
from jax.experimental import pallas as pl
from jax.experimental.pallas import tpu as pltpu


# ------------------------------------------------------------------
# Parameter construction (deterministic, matches __initialize_weight__
# for init='haar', method='cayley', stride=(2, 2)).
# ------------------------------------------------------------------
def cayley_haar_kernel_matrix(in_channels: int, dtype=jnp.float32):
    p = 0.5
    w = jnp.array(
        [[0.0, 0.0, p, p],
         [0.0, 0.0, -p, -p],
         [0.0, 0.0, 0.0, 0.0],
         [0.0, 0.0, 0.0, 0.0]],
        dtype=dtype,
    )
    w = jnp.tile(w[None], (in_channels, 1, 1))            # (C, 4, 4) weight
    a = w - jnp.swapaxes(w, -1, -2)                        # skew-symmetric
    eye = jnp.eye(4, dtype=dtype)[None]
    # Cayley transform as in iunets: solve (I + A) Q = (I - A)
    return jnp.linalg.solve(eye + a, eye - a)              # (C, 4, 4), orthogonal


# ------------------------------------------------------------------
# Block-size selection helpers.
# ------------------------------------------------------------------
def _largest_divisor_leq(n: int, cap: int) -> int:
    for d in range(min(n, cap), 0, -1):
        if n % d == 0:
            return d
    return 1


def _spatial_block(dim: int, quantum: int, cap: int) -> int:
    """Largest legal block size for a (halved) spatial dim.

    Legal = divides `dim` and is either a multiple of `quantum` (so both the
    input block (2*b) and the output block (b) stay tile-aligned) or the full
    dim itself.
    """
    if dim <= cap:
        return dim
    best = 0
    d = quantum
    while d <= cap:
        if dim % d == 0:
            best = d
        d += quantum
    return best if best > 0 else dim


# ------------------------------------------------------------------
# Pallas kernel: fused space-to-depth + per-channel orthogonal 4x4 mix.
# ------------------------------------------------------------------
def _make_kernel(Cb: int, Hhb: int, Whb: int):
    def kernel(m_ref, rsel_ref, csel_ref, x_ref, o_ref):
        # m_ref    : (Cb, 4, 4)            per-channel mixing matrices (block index
        #                                   depends only on the channel-block axis)
        # rsel_ref : (2, Hhb, 2*Whb?)      -> actually (2, Hhb, 2*Hhb): constant 0/1
        #                                   even/odd ROW selectors (left-multiply)
        # csel_ref : (2, 2*Whb, Whb)       constant 0/1 even/odd COLUMN selectors
        # x_ref    : (1, Cb, 2*Hhb, 2*Whb) raw NCHW input tile
        # o_ref    : (1, 4*Cb, Hhb, Whb)   output tile, row 4*ci + j
        re = rsel_ref[0]                  # picks rows 2h     (Hhb, 2*Hhb)
        ro = rsel_ref[1]                  # picks rows 2h + 1
        se = csel_ref[0]                  # picks columns 2w  (2*Whb, Whb)
        so = csel_ref[1]                  # picks columns 2w + 1
        mb = m_ref[...]                   # (Cb, 4, 4)

        hi = jax.lax.Precision.HIGHEST
        for ci in range(Cb):
            xch = x_ref[0, ci]            # (2*Hhb, 2*Whb) raw spatial tile

            # ---- fused space-to-depth via constant selection matmuls ------
            xe = jnp.dot(re, xch, preferred_element_type=jnp.float32,
                         precision=hi)                       # rows 2h   -> (Hhb, 2*Whb)
            xo = jnp.dot(ro, xch, preferred_element_type=jnp.float32,
                         precision=hi)                       # rows 2h+1 -> (Hhb, 2*Whb)
            p0 = jnp.dot(xe, se, preferred_element_type=jnp.float32,
                         precision=hi)                       # x[2h,   2w  ]
            p1 = jnp.dot(xe, so, preferred_element_type=jnp.float32,
                         precision=hi)                       # x[2h,   2w+1]
            p2 = jnp.dot(xo, se, preferred_element_type=jnp.float32,
                         precision=hi)                       # x[2h+1, 2w  ]
            p3 = jnp.dot(xo, so, preferred_element_type=jnp.float32,
                         precision=hi)                       # x[2h+1, 2w+1]

            # ---- per-channel 4x4 orthogonal mix on the VPU ----------------
            # out[4*ci + j] = sum_k M[ci, j, k] * p_k  (scalar broadcast FMAs)
            for j in range(4):
                acc = (mb[ci, j, 0] * p0 + mb[ci, j, 1] * p1
                       + mb[ci, j, 2] * p2 + mb[ci, j, 3] * p3)
                o_ref[0, 4 * ci + j] = acc.astype(o_ref.dtype)

    return kernel


def invertible_downsampling_2d(x, kernel_matrix):
    """Forward of InvertibleDownsampling2D.

    x: (N, C, H, W) float32, H and W even.
    kernel_matrix: (C, 4, 4) orthogonal per-channel matrices.
    Returns (N, 4*C, H//2, W//2); output channel index = 4*c + j.
    """
    N, C, H, W = x.shape
    assert H % 2 == 0 and W % 2 == 0, "stride-2 downsampling needs even H and W"
    assert kernel_matrix.shape == (C, 4, 4)
    Hh, Wh = H // 2, W // 2

    # Coarsened blocks: a handful of channels x a slab of rows/cols per step.
    Cb = _largest_divisor_leq(C, 8)      # channels per block (bounds unrolling)
    Hhb = _spatial_block(Hh, 8, 64)      # output rows per block (sublane-aligned)
    Whb = _spatial_block(Wh, 128, 128)   # output cols per block (lane-dense when possible)

    # Constant 0/1 row selectors (left-multiply):
    #   (rsel[0] @ a)[h, :] = a[2h, :],   (rsel[1] @ a)[h, :] = a[2h + 1, :]
    hp = jnp.arange(2 * Hhb, dtype=jnp.int32)[None, :]
    ho = jnp.arange(Hhb, dtype=jnp.int32)[:, None]
    rsel = jnp.stack(
        [(hp == 2 * ho).astype(x.dtype), (hp == 2 * ho + 1).astype(x.dtype)],
        axis=0,
    )                                    # (2, Hhb, 2*Hhb)

    # Constant 0/1 column selectors (right-multiply):
    #   (a @ csel[0])[:, w] = a[:, 2w],   (a @ csel[1])[:, w] = a[:, 2w + 1]
    wp = jnp.arange(2 * Whb, dtype=jnp.int32)[:, None]
    wo = jnp.arange(Whb, dtype=jnp.int32)[None, :]
    csel = jnp.stack(
        [(wp == 2 * wo).astype(x.dtype), (wp == 2 * wo + 1).astype(x.dtype)],
        axis=0,
    )                                    # (2, 2*Whb, Whb)

    grid = (N, C // Cb, Hh // Hhb, Wh // Whb)

    return pl.pallas_call(
        _make_kernel(Cb, Hhb, Whb),
        out_shape=jax.ShapeDtypeStruct((N, 4 * C, Hh, Wh), x.dtype),
        grid=grid,
        in_specs=[
            # Per-channel 4x4 matrices: re-DMAed only when the channel block
            # changes (index map ignores n, h, w).
            pl.BlockSpec((Cb, 4, 4), lambda n, c, h, w: (c, 0, 0)),
            # Constant selectors: block index never changes -> fetched once.
            pl.BlockSpec((2, Hhb, 2 * Hhb), lambda n, c, h, w: (0, 0, 0)),
            pl.BlockSpec((2, 2 * Whb, Whb), lambda n, c, h, w: (0, 0, 0)),
            # Raw NCHW input slab; space-to-depth happens inside the kernel.
            pl.BlockSpec((1, Cb, 2 * Hhb, 2 * Whb), lambda n, c, h, w: (n, c, h, w)),
        ],
        out_specs=pl.BlockSpec((1, 4 * Cb, Hhb, Whb), lambda n, c, h, w: (n, c, h, w)),
        compiler_params=pltpu.CompilerParams(
            dimension_semantics=("parallel", "parallel", "parallel", "parallel"),
            vmem_limit_bytes=32 * 1024 * 1024,
        ),
    )(kernel_matrix.astype(x.dtype), rsel, csel, x)


# ------------------------------------------------------------------
# Plain-JAX reference (the literal grouped conv) for verification.
# ------------------------------------------------------------------
def _ref_forward(x, kernel_matrix):
    C = x.shape[1]
    kern = kernel_matrix.reshape(4 * C, 1, 2, 2)   # (high_channels, 1, 2, 2)
    return jax.lax.conv_general_dilated(
        x,
        kern,
        window_strides=(2, 2),
        padding="VALID",
        dimension_numbers=("NCHW", "OIHW", "NCHW"),
        feature_group_count=C,
        precision=jax.lax.Precision.HIGHEST,
    )


if __name__ == "__main__":
    key = jax.random.PRNGKey(0)
    N, C, H, W = 2, 4, 16, 16
    x = jax.random.normal(key, (N, C, H, W), dtype=jnp.float32)

    km = cayley_haar_kernel_matrix(C)              # deterministic parameter init
    y = invertible_downsampling_2d(x, km)
    y = jax.block_until_ready(y)

    assert y.shape == (N, 4 * C, H // 2, W // 2), y.shape
    y_ref = _ref_forward(x, km)
    assert jnp.allclose(y, y_ref, atol=1e-5, rtol=1e-5), float(
        jnp.max(jnp.abs(y - y_ref))
    )

    print("KERNEL_OK")
</pallas_src>

<mosaic_0001>
module attributes {stable_mosaic.version = 11 : i64} {
  func.func @kernel(%arg0: i32, %arg1: i32, %arg2: i32, %arg3: i32, %arg4: memref<4x4x4xf32, #tpu.memory_space<vmem>>, %arg5: memref<2x8x16xf32, #tpu.memory_space<vmem>>, %arg6: memref<2x16x8xf32, #tpu.memory_space<vmem>>, %arg7: memref<1x4x16x16xf32, #tpu.memory_space<vmem>>, %arg8: memref<1x16x8x8xf32, #tpu.memory_space<vmem>>) attributes {dimension_semantics = [#tpu.dimension_semantics<parallel>, #tpu.dimension_semantics<parallel>, #tpu.dimension_semantics<parallel>, #tpu.dimension_semantics<parallel>], iteration_bounds = array<i64: 2, 1, 1, 1>, scalar_prefetch = 0 : i64, scratch_operands = 0 : i64, tpu.core_type = #tpu.core_type<tc>, window_params = [{transform_indices = @transform_0, window_bounds = array<i64: 4, 4, 4>}, {pipeline_mode = #tpu.pipeline_mode<synchronous>, transform_indices = @transform_1, window_bounds = array<i64: 2, 8, 16>}, {pipeline_mode = #tpu.pipeline_mode<synchronous>, transform_indices = @transform_2, window_bounds = array<i64: 2, 16, 8>}, {transform_indices = @transform_3, window_bounds = array<i64: 1, 4, 16, 16>}, {transform_indices = @transform_4, window_bounds = array<i64: 1, 16, 8, 8>}]} {
    %c0 = arith.constant 0 : index
    %c0_0 = arith.constant 0 : index
    %c0_1 = arith.constant 0 : index
    %0 = vector.load %arg5[%c0, %c0_0, %c0_1] : memref<2x8x16xf32, #tpu.memory_space<vmem>>, vector<1x8x16xf32>
    %1 = vector.shape_cast %0 : vector<1x8x16xf32> to vector<8x16xf32>
    %c1 = arith.constant 1 : index
    %c0_2 = arith.constant 0 : index
    %c0_3 = arith.constant 0 : index
    %2 = vector.load %arg5[%c1, %c0_2, %c0_3] : memref<2x8x16xf32, #tpu.memory_space<vmem>>, vector<1x8x16xf32>
    %3 = vector.shape_cast %2 : vector<1x8x16xf32> to vector<8x16xf32>
    %c0_4 = arith.constant 0 : index
    %c0_5 = arith.constant 0 : index
    %c0_6 = arith.constant 0 : index
    %4 = vector.load %arg6[%c0_4, %c0_5, %c0_6] : memref<2x16x8xf32, #tpu.memory_space<vmem>>, vector<1x16x8xf32>
    %5 = vector.shape_cast %4 : vector<1x16x8xf32> to vector<16x8xf32>
    %c1_7 = arith.constant 1 : index
    %c0_8 = arith.constant 0 : index
    %c0_9 = arith.constant 0 : index
    %6 = vector.load %arg6[%c1_7, %c0_8, %c0_9] : memref<2x16x8xf32, #tpu.memory_space<vmem>>, vector<1x16x8xf32>
    %7 = vector.shape_cast %6 : vector<1x16x8xf32> to vector<16x8xf32>
    %c0_10 = arith.constant 0 : index
    %c0_11 = arith.constant 0 : index
    %c0_12 = arith.constant 0 : index
    %8 = vector.load %arg4[%c0_10, %c0_11, %c0_12] : memref<4x4x4xf32, #tpu.memory_space<vmem>>, vector<4x4x4xf32>
    %c0_13 = arith.constant 0 : index
    %c0_14 = arith.constant 0 : index
    %c0_15 = arith.constant 0 : index
    %c0_16 = arith.constant 0 : index
    %9 = vector.load %arg7[%c0_13, %c0_14, %c0_15, %c0_16] : memref<1x4x16x16xf32, #tpu.memory_space<vmem>>, vector<1x1x16x16xf32>
    %10 = vector.shape_cast %9 : vector<1x1x16x16xf32> to vector<16x16xf32>
    %cst = arith.constant dense<0.000000e+00> : vector<8x16xf32>
    %11 = tpu.matmul %1, %10, %cst {dimension_numbers = #tpu.dot_dimension_numbers<[1], [0], [0], [1], [0, 0, 1, 1], [], []>, precision = #tpu.contract_precision<fp32>} : vector<8x16xf32>, vector<16x16xf32>, vector<8x16xf32> -> vector<8x16xf32>
    %cst_17 = arith.constant dense<0.000000e+00> : vector<8x16xf32>
    %12 = tpu.matmul %3, %10, %cst_17 {dimension_numbers = #tpu.dot_dimension_numbers<[1], [0], [0], [1], [0, 0, 1, 1], [], []>, precision = #tpu.contract_precision<fp32>} : vector<8x16xf32>, vector<16x16xf32>, vector<8x16xf32> -> vector<8x16xf32>
    %cst_18 = arith.constant dense<0.000000e+00> : vector<8x8xf32>
    %13 = tpu.matmul %11, %5, %cst_18 {dimension_numbers = #tpu.dot_dimension_numbers<[1], [0], [0], [1], [0, 0, 1, 1], [], []>, precision = #tpu.contract_precision<fp32>} : vector<8x16xf32>, vector<16x8xf32>, vector<8x8xf32> -> vector<8x8xf32>
    %cst_19 = arith.constant dense<0.000000e+00> : vector<8x8xf32>
    %14 = tpu.matmul %11, %7, %cst_19 {dimension_numbers = #tpu.dot_dimension_numbers<[1], [0], [0], [1], [0, 0, 1, 1], [], []>, precision = #tpu.contract_precision<fp32>} : vector<8x16xf32>, vector<16x8xf32>, vector<8x8xf32> -> vector<8x8xf32>
    %cst_20 = arith.constant dense<0.000000e+00> : vector<8x8xf32>
    %15 = tpu.matmul %12, %5, %cst_20 {dimension_numbers = #tpu.dot_dimension_numbers<[1], [0], [0], [1], [0, 0, 1, 1], [], []>, precision = #tpu.contract_precision<fp32>} : vector<8x16xf32>, vector<16x8xf32>, vector<8x8xf32> -> vector<8x8xf32>
    %cst_21 = arith.constant dense<0.000000e+00> : vector<8x8xf32>
    %16 = tpu.matmul %12, %7, %cst_21 {dimension_numbers = #tpu.dot_dimension_numbers<[1], [0], [0], [1], [0, 0, 1, 1], [], []>, precision = #tpu.contract_precision<fp32>} : vector<8x16xf32>, vector<16x8xf32>, vector<8x8xf32> -> vector<8x8xf32>
    %17 = vector.extract_strided_slice %8 {offsets = [0, 0, 0], sizes = [1, 1, 1], strides = [1, 1, 1]} : vector<4x4x4xf32> to vector<1x1x1xf32>
    %18 = vector.extract %17[0, 0, 0] : f32 from vector<1x1x1xf32>
    %19 = vector.broadcast %18 : f32 to vector<8x8xf32>
    %20 = arith.mulf %19, %13 : vector<8x8xf32>
    %21 = vector.extract_strided_slice %8 {offsets = [0, 0, 1], sizes = [1, 1, 1], strides = [1, 1, 1]} : vector<4x4x4xf32> to vector<1x1x1xf32>
    %22 = vector.extract %21[0, 0, 0] : f32 from vector<1x1x1xf32>
    %23 = vector.broadcast %22 : f32 to vector<8x8xf32>
    %24 = arith.mulf %23, %14 : vector<8x8xf32>
    %25 = arith.addf %20, %24 : vector<8x8xf32>
    %26 = vector.extract_strided_slice %8 {offsets = [0, 0, 2], sizes = [1, 1, 1], strides = [1, 1, 1]} : vector<4x4x4xf32> to vector<1x1x1xf32>
    %27 = vector.extract %26[0, 0, 0] : f32 from vector<1x1x1xf32>
    %28 = vector.broadcast %27 : f32 to vector<8x8xf32>
    %29 = arith.mulf %28, %15 : vector<8x8xf32>
    %30 = arith.addf %25, %29 : vector<8x8xf32>
    %31 = vector.extract_strided_slice %8 {offsets = [0, 0, 3], sizes = [1, 1, 1], strides = [1, 1, 1]} : vector<4x4x4xf32> to vector<1x1x1xf32>
    %32 = vector.extract %31[0, 0, 0] : f32 from vector<1x1x1xf32>
    %33 = vector.broadcast %32 : f32 to vector<8x8xf32>
    %34 = arith.mulf %33, %16 : vector<8x8xf32>
    %35 = arith.addf %30, %34 : vector<8x8xf32>
    %c0_22 = arith.constant 0 : index
    %c0_23 = arith.constant 0 : index
    %c0_24 = arith.constant 0 : index
    %c0_25 = arith.constant 0 : index
    %36 = vector.load %arg8[%c0_22, %c0_23, %c0_24, %c0_25] : memref<1x16x8x8xf32, #tpu.memory_space<vmem>>, vector<1x1x8x8xf32>
    %37 = vector.shape_cast %36 : vector<1x1x8x8xf32> to vector<8x8xf32>
    %38 = vector.shape_cast %35 : vector<8x8xf32> to vector<1x1x8x8xf32>
    tpu.vector_store %arg8[%c0_22, %c0_23, %c0_24, %c0_25], %38 {strides = array<i32>} : memref<1x16x8x8xf32, #tpu.memory_space<vmem>>, vector<1x1x8x8xf32>,
    %39 = vector.extract_strided_slice %8 {offsets = [0, 1, 0], sizes = [1, 1, 1], strides = [1, 1, 1]} : vector<4x4x4xf32> to vector<1x1x1xf32>
    %40 = vector.extract %39[0, 0, 0] : f32 from vector<1x1x1xf32>
    %41 = vector.broadcast %40 : f32 to vector<8x8xf32>
    %42 = arith.mulf %41, %13 : vector<8x8xf32>
    %43 = vector.extract_strided_slice %8 {offsets = [0, 1, 1], sizes = [1, 1, 1], strides = [1, 1, 1]} : vector<4x4x4xf32> to vector<1x1x1xf32>
    %44 = vector.extract %43[0, 0, 0] : f32 from vector<1x1x1xf32>
    %45 = vector.broadcast %44 : f32 to vector<8x8xf32>
    %46 = arith.mulf %45, %14 : vector<8x8xf32>
    %47 = arith.addf %42, %46 : vector<8x8xf32>
    %48 = vector.extract_strided_slice %8 {offsets = [0, 1, 2], sizes = [1, 1, 1], strides = [1, 1, 1]} : vector<4x4x4xf32> to vector<1x1x1xf32>
    %49 = vector.extract %48[0, 0, 0] : f32 from vector<1x1x1xf32>
    %50 = vector.broadcast %49 : f32 to vector<8x8xf32>
    %51 = arith.mulf %50, %15 : vector<8x8xf32>
    %52 = arith.addf %47, %51 : vector<8x8xf32>
    %53 = vector.extract_strided_slice %8 {offsets = [0, 1, 3], sizes = [1, 1, 1], strides = [1, 1, 1]} : vector<4x4x4xf32> to vector<1x1x1xf32>
    %54 = vector.extract %53[0, 0, 0] : f32 from vector<1x1x1xf32>
    %55 = vector.broadcast %54 : f32 to vector<8x8xf32>
    %56 = arith.mulf %55, %16 : vector<8x8xf32>
    %57 = arith.addf %52, %56 : vector<8x8xf32>
    %c0_26 = arith.constant 0 : index
    %c1_27 = arith.constant 1 : index
    %c0_28 = arith.constant 0 : index
    %c0_29 = arith.constant 0 : index
    %58 = vector.load %arg8[%c0_26, %c1_27, %c0_28, %c0_29] : memref<1x16x8x8xf32, #tpu.memory_space<vmem>>, vector<1x1x8x8xf32>
    %59 = vector.shape_cast %58 : vector<1x1x8x8xf32> to vector<8x8xf32>
    %60 = vector.shape_cast %57 : vector<8x8xf32> to vector<1x1x8x8xf32>
    tpu.vector_store %arg8[%c0_26, %c1_27, %c0_28, %c0_29], %60 {strides = array<i32>} : memref<1x16x8x8xf32, #tpu.memory_space<vmem>>, vector<1x1x8x8xf32>,
    %61 = vector.extract_strided_slice %8 {offsets = [0, 2, 0], sizes = [1, 1, 1], strides = [1, 1, 1]} : vector<4x4x4xf32> to vector<1x1x1xf32>
    %62 = vector.extract %61[0, 0, 0] : f32 from vector<1x1x1xf32>
    %63 = vector.broadcast %62 : f32 to vector<8x8xf32>
    %64 = arith.mulf %63, %13 : vector<8x8xf32>
    %65 = vector.extract_strided_slice %8 {offsets = [0, 2, 1], sizes = [1, 1, 1], strides = [1, 1, 1]} : vector<4x4x4xf32> to vector<1x1x1xf32>
    %66 = vector.extract %65[0, 0, 0] : f32 from vector<1x1x1xf32>
    %67 = vector.broadcast %66 : f32 to vector<8x8xf32>
    %68 = arith.mulf %67, %14 : vector<8x8xf32>
    %69 = arith.addf %64, %68 : vector<8x8xf32>
    %70 = vector.extract_strided_slice %8 {offsets = [0, 2, 2], sizes = [1, 1, 1], strides = [1, 1, 1]} : vector<4x4x4xf32> to vector<1x1x1xf32>
    %71 = vector.extract %70[0, 0, 0] : f32 from vector<1x1x1xf32>
    %72 = vector.broadcast %71 : f32 to vector<8x8xf32>
    %73 = arith.mulf %72, %15 : vector<8x8xf32>
    %74 = arith.addf %69, %73 : vector<8x8xf32>
    %75 = vector.extract_strided_slice %8 {offsets = [0, 2, 3], sizes = [1, 1, 1], strides = [1, 1, 1]} : vector<4x4x4xf32> to vector<1x1x1xf32>
    %76 = vector.extract %75[0, 0, 0] : f32 from vector<1x1x1xf32>
    %77 = vector.broadcast %76 : f32 to vector<8x8xf32>
    %78 = arith.mulf %77, %16 : vector<8x8xf32>
    %79 = arith.addf %74, %78 : vector<8x8xf32>
    %c0_30 = arith.constant 0 : index
    %c2 = arith.constant 2 : index
    %c0_31 = arith.constant 0 : index
    %c0_32 = arith.constant 0 : index
    %80 = vector.load %arg8[%c0_30, %c2, %c0_31, %c0_32] : memref<1x16x8x8xf32, #tpu.memory_space<vmem>>, vector<1x1x8x8xf32>
    %81 = vector.shape_cast %80 : vector<1x1x8x8xf32> to vector<8x8xf32>
    %82 = vector.shape_cast %79 : vector<8x8xf32> to vector<1x1x8x8xf32>
    tpu.vector_store %arg8[%c0_30, %c2, %c0_31, %c0_32], %82 {strides = array<i32>} : memref<1x16x8x8xf32, #tpu.memory_space<vmem>>, vector<1x1x8x8xf32>,
    %83 = vector.extract_strided_slice %8 {offsets = [0, 3, 0], sizes = [1, 1, 1], strides = [1, 1, 1]} : vector<4x4x4xf32> to vector<1x1x1xf32>
    %84 = vector.extract %83[0, 0, 0] : f32 from vector<1x1x1xf32>
    %85 = vector.broadcast %84 : f32 to vector<8x8xf32>
    %86 = arith.mulf %85, %13 : vector<8x8xf32>
    %87 = vector.extract_strided_slice %8 {offsets = [0, 3, 1], sizes = [1, 1, 1], strides = [1, 1, 1]} : vector<4x4x4xf32> to vector<1x1x1xf32>
    %88 = vector.extract %87[0, 0, 0] : f32 from vector<1x1x1xf32>
    %89 = vector.broadcast %88 : f32 to vector<8x8xf32>
    %90 = arith.mulf %89, %14 : vector<8x8xf32>
    %91 = arith.addf %86, %90 : vector<8x8xf32>
    %92 = vector.extract_strided_slice %8 {offsets = [0, 3, 2], sizes = [1, 1, 1], strides = [1, 1, 1]} : vector<4x4x4xf32> to vector<1x1x1xf32>
    %93 = vector.extract %92[0, 0, 0] : f32 from vector<1x1x1xf32>
    %94 = vector.broadcast %93 : f32 to vector<8x8xf32>
    %95 = arith.mulf %94, %15 : vector<8x8xf32>
    %96 = arith.addf %91, %95 : vector<8x8xf32>
    %97 = vector.extract_strided_slice %8 {offsets = [0, 3, 3], sizes = [1, 1, 1], strides = [1, 1, 1]} : vector<4x4x4xf32> to vector<1x1x1xf32>
    %98 = vector.extract %97[0, 0, 0] : f32 from vector<1x1x1xf32>
    %99 = vector.broadcast %98 : f32 to vector<8x8xf32>
    %100 = arith.mulf %99, %16 : vector<8x8xf32>
    %101 = arith.addf %96, %100 : vector<8x8xf32>
    %c0_33 = arith.constant 0 : index
    %c3 = arith.constant 3 : index
    %c0_34 = arith.constant 0 : index
    %c0_35 = arith.constant 0 : index
    %102 = vector.load %arg8[%c0_33, %c3, %c0_34, %c0_35] : memref<1x16x8x8xf32, #tpu.memory_space<vmem>>, vector<1x1x8x8xf32>
    %103 = vector.shape_cast %102 : vector<1x1x8x8xf32> to vector<8x8xf32>
    %104 = vector.shape_cast %101 : vector<8x8xf32> to vector<1x1x8x8xf32>
    tpu.vector_store %arg8[%c0_33, %c3, %c0_34, %c0_35], %104 {strides = array<i32>} : memref<1x16x8x8xf32, #tpu.memory_space<vmem>>, vector<1x1x8x8xf32>,
    %c0_36 = arith.constant 0 : index
    %c1_37 = arith.constant 1 : index
    %c0_38 = arith.constant 0 : index
    %c0_39 = arith.constant 0 : index
    %105 = vector.load %arg7[%c0_36, %c1_37, %c0_38, %c0_39] : memref<1x4x16x16xf32, #tpu.memory_space<vmem>>, vector<1x1x16x16xf32>
    %106 = vector.shape_cast %105 : vector<1x1x16x16xf32> to vector<16x16xf32>
    %cst_40 = arith.constant dense<0.000000e+00> : vector<8x16xf32>
    %107 = tpu.matmul %1, %106, %cst_40 {dimension_numbers = #tpu.dot_dimension_numbers<[1], [0], [0], [1], [0, 0, 1, 1], [], []>, precision = #tpu.contract_precision<fp32>} : vector<8x16xf32>, vector<16x16xf32>, vector<8x16xf32> -> vector<8x16xf32>
    %cst_41 = arith.constant dense<0.000000e+00> : vector<8x16xf32>
    %108 = tpu.matmul %3, %106, %cst_41 {dimension_numbers = #tpu.dot_dimension_numbers<[1], [0], [0], [1], [0, 0, 1, 1], [], []>, precision = #tpu.contract_precision<fp32>} : vector<8x16xf32>, vector<16x16xf32>, vector<8x16xf32> -> vector<8x16xf32>
    %cst_42 = arith.constant dense<0.000000e+00> : vector<8x8xf32>
    %109 = tpu.matmul %107, %5, %cst_42 {dimension_numbers = #tpu.dot_dimension_numbers<[1], [0], [0], [1], [0, 0, 1, 1], [], []>, precision = #tpu.contract_precision<fp32>} : vector<8x16xf32>, vector<16x8xf32>, vector<8x8xf32> -> vector<8x8xf32>
    %cst_43 = arith.constant dense<0.000000e+00> : vector<8x8xf32>
    %110 = tpu.matmul %107, %7, %cst_43 {dimension_numbers = #tpu.dot_dimension_numbers<[1], [0], [0], [1], [0, 0, 1, 1], [], []>, precision = #tpu.contract_precision<fp32>} : vector<8x16xf32>, vector<16x8xf32>, vector<8x8xf32> -> vector<8x8xf32>
    %cst_44 = arith.constant dense<0.000000e+00> : vector<8x8xf32>
    %111 = tpu.matmul %108, %5, %cst_44 {dimension_numbers = #tpu.dot_dimension_numbers<[1], [0], [0], [1], [0, 0, 1, 1], [], []>, precision = #tpu.contract_precision<fp32>} : vector<8x16xf32>, vector<16x8xf32>, vector<8x8xf32> -> vector<8x8xf32>
    %cst_45 = arith.constant dense<0.000000e+00> : vector<8x8xf32>
    %112 = tpu.matmul %108, %7, %cst_45 {dimension_numbers = #tpu.dot_dimension_numbers<[1], [0], [0], [1], [0, 0, 1, 1], [], []>, precision = #tpu.contract_precision<fp32>} : vector<8x16xf32>, vector<16x8xf32>, vector<8x8xf32> -> vector<8x8xf32>
    %113 = vector.extract_strided_slice %8 {offsets = [1, 0, 0], sizes = [1, 1, 1], strides = [1, 1, 1]} : vector<4x4x4xf32> to vector<1x1x1xf32>
    %114 = vector.extract %113[0, 0, 0] : f32 from vector<1x1x1xf32>
    %115 = vector.broadcast %114 : f32 to vector<8x8xf32>
    %116 = arith.mulf %115, %109 : vector<8x8xf32>
    %117 = vector.extract_strided_slice %8 {offsets = [1, 0, 1], sizes = [1, 1, 1], strides = [1, 1, 1]} : vector<4x4x4xf32> to vector<1x1x1xf32>
    %118 = vector.extract %117[0, 0, 0] : f32 from vector<1x1x1xf32>
    %119 = vector.broadcast %118 : f32 to vector<8x8xf32>
    %120 = arith.mulf %119, %110 : vector<8x8xf32>
    %121 = arith.addf %116, %120 : vector<8x8xf32>
    %122 = vector.extract_strided_slice %8 {offsets = [1, 0, 2], sizes = [1, 1, 1], strides = [1, 1, 1]} : vector<4x4x4xf32> to vector<1x1x1xf32>
    %123 = vector.extract %122[0, 0, 0] : f32 from vector<1x1x1xf32>
    %124 = vector.broadcast %123 : f32 to vector<8x8xf32>
    %125 = arith.mulf %124, %111 : vector<8x8xf32>
    %126 = arith.addf %121, %125 : vector<8x8xf32>
    %127 = vector.extract_strided_slice %8 {offsets = [1, 0, 3], sizes = [1, 1, 1], strides = [1, 1, 1]} : vector<4x4x4xf32> to vector<1x1x1xf32>
    %128 = vector.extract %127[0, 0, 0] : f32 from vector<1x1x1xf32>
    %129 = vector.broadcast %128 : f32 to vector<8x8xf32>
    %130 = arith.mulf %129, %112 : vector<8x8xf32>
    %131 = arith.addf %126, %130 : vector<8x8xf32>
    %c0_46 = arith.constant 0 : index
    %c4 = arith.constant 4 : index
    %c0_47 = arith.constant 0 : index
    %c0_48 = arith.constant 0 : index
    %132 = vector.load %arg8[%c0_46, %c4, %c0_47, %c0_48] : memref<1x16x8x8xf32, #tpu.memory_space<vmem>>, vector<1x1x8x8xf32>
    %133 = vector.shape_cast %132 : vector<1x1x8x8xf32> to vector<8x8xf32>
    %134 = vector.shape_cast %131 : vector<8x8xf32> to vector<1x1x8x8xf32>
    tpu.vector_store %arg8[%c0_46, %c4, %c0_47, %c0_48], %134 {strides = array<i32>} : memref<1x16x8x8xf32, #tpu.memory_space<vmem>>, vector<1x1x8x8xf32>,
    %135 = vector.extract_strided_slice %8 {offsets = [1, 1, 0], sizes = [1, 1, 1], strides = [1, 1, 1]} : vector<4x4x4xf32> to vector<1x1x1xf32>
    %136 = vector.extract %135[0, 0, 0] : f32 from vector<1x1x1xf32>
    %137 = vector.broadcast %136 : f32 to vector<8x8xf32>
    %138 = arith.mulf %137, %109 : vector<8x8xf32>
    %139 = vector.extract_strided_slice %8 {offsets = [1, 1, 1], sizes = [1, 1, 1], strides = [1, 1, 1]} : vector<4x4x4xf32> to vector<1x1x1xf32>
    %140 = vector.extract %139[0, 0, 0] : f32 from vector<1x1x1xf32>
    %141 = vector.broadcast %140 : f32 to vector<8x8xf32>
    %142 = arith.mulf %141, %110 : vector<8x8xf32>
    %143 = arith.addf %138, %142 : vector<8x8xf32>
    %144 = vector.extract_strided_slice %8 {offsets = [1, 1, 2], sizes = [1, 1, 1], strides = [1, 1, 1]} : vector<4x4x4xf32> to vector<1x1x1xf32>
    %145 = vector.extract %144[0, 0, 0] : f32 from vector<1x1x1xf32>
    %146 = vector.broadcast %145 : f32 to vector<8x8xf32>
    %147 = arith.mulf %146, %111 : vector<8x8xf32>
    %148 = arith.addf %143, %147 : vector<8x8xf32>
    %149 = vector.extract_strided_slice %8 {offsets = [1, 1, 3], sizes = [1, 1, 1], strides = [1, 1, 1]} : vector<4x4x4xf32> to vector<1x1x1xf32>
    %150 = vector.extract %149[0, 0, 0] : f32 from vector<1x1x1xf32>
    %151 = vector.broadcast %150 : f32 to vector<8x8xf32>
    %152 = arith.mulf %151, %112 : vector<8x8xf32>
    %153 = arith.addf %148, %152 : vector<8x8xf32>
    %c0_49 = arith.constant 0 : index
    %c5 = arith.constant 5 : index
    %c0_50 = arith.constant 0 : index
    %c0_51 = arith.constant 0 : index
    %154 = vector.load %arg8[%c0_49, %c5, %c0_50, %c0_51] : memref<1x16x8x8xf32, #tpu.memory_space<vmem>>, vector<1x1x8x8xf32>
    %155 = vector.shape_cast %154 : vector<1x1x8x8xf32> to vector<8x8xf32>
    %156 = vector.shape_cast %153 : vector<8x8xf32> to vector<1x1x8x8xf32>
    tpu.vector_store %arg8[%c0_49, %c5, %c0_50, %c0_51], %156 {strides = array<i32>} : memref<1x16x8x8xf32, #tpu.memory_space<vmem>>, vector<1x1x8x8xf32>,
    %157 = vector.extract_strided_slice %8 {offsets = [1, 2, 0], sizes = [1, 1, 1], strides = [1, 1, 1]} : vector<4x4x4xf32> to vector<1x1x1xf32>
    %158 = vector.extract %157[0, 0, 0] : f32 from vector<1x1x1xf32>
    %159 = vector.broadcast %158 : f32 to vector<8x8xf32>
    %160 = arith.mulf %159, %109 : vector<8x8xf32>
    %161 = vector.extract_strided_slice %8 {offsets = [1, 2, 1], sizes = [1, 1, 1], strides = [1, 1, 1]} : vector<4x4x4xf32> to vector<1x1x1xf32>
    %162 = vector.extract %161[0, 0, 0] : f32 from vector<1x1x1xf32>
    %163 = vector.broadcast %162 : f32 to vector<8x8xf32>
    %164 = arith.mulf %163, %110 : vector<8x8xf32>
    %165 = arith.addf %160, %164 : vector<8x8xf32>
    %166 = vector.extract_strided_slice %8 {offsets = [1, 2, 2], sizes = [1, 1, 1], strides = [1, 1, 1]} : vector<4x4x4xf32> to vector<1x1x1xf32>
    %167 = vector.extract %166[0, 0, 0] : f32 from vector<1x1x1xf32>
    %168 = vector.broadcast %167 : f32 to vector<8x8xf32>
    %169 = arith.mulf %168, %111 : vector<8x8xf32>
    %170 = arith.addf %165, %169 : vector<8x8xf32>
    %171 = vector.extract_strided_slice %8 {offsets = [1, 2, 3], sizes = [1, 1, 1], strides = [1, 1, 1]} : vector<4x4x4xf32> to vector<1x1x1xf32>
    %172 = vector.extract %171[0, 0, 0] : f32 from vector<1x1x1xf32>
    %173 = vector.broadcast %172 : f32 to vector<8x8xf32>
    %174 = arith.mulf %173, %112 : vector<8x8xf32>
    %175 = arith.addf %170, %174 : vector<8x8xf32>
    %c0_52 = arith.constant 0 : index
    %c6 = arith.constant 6 : index
    %c0_53 = arith.constant 0 : index
    %c0_54 = arith.constant 0 : index
    %176 = vector.load %arg8[%c0_52, %c6, %c0_53, %c0_54] : memref<1x16x8x8xf32, #tpu.memory_space<vmem>>, vector<1x1x8x8xf32>
    %177 = vector.shape_cast %176 : vector<1x1x8x8xf32> to vector<8x8xf32>
    %178 = vector.shape_cast %175 : vector<8x8xf32> to vector<1x1x8x8xf32>
    tpu.vector_store %arg8[%c0_52, %c6, %c0_53, %c0_54], %178 {strides = array<i32>} : memref<1x16x8x8xf32, #tpu.memory_space<vmem>>, vector<1x1x8x8xf32>,
    %179 = vector.extract_strided_slice %8 {offsets = [1, 3, 0], sizes = [1, 1, 1], strides = [1, 1, 1]} : vector<4x4x4xf32> to vector<1x1x1xf32>
    %180 = vector.extract %179[0, 0, 0] : f32 from vector<1x1x1xf32>
    %181 = vector.broadcast %180 : f32 to vector<8x8xf32>
    %182 = arith.mulf %181, %109 : vector<8x8xf32>
    %183 = vector.extract_strided_slice %8 {offsets = [1, 3, 1], sizes = [1, 1, 1], strides = [1, 1, 1]} : vector<4x4x4xf32> to vector<1x1x1xf32>
    %184 = vector.extract %183[0, 0, 0] : f32 from vector<1x1x1xf32>
    %185 = vector.broadcast %184 : f32 to vector<8x8xf32>
    %186 = arith.mulf %185, %110 : vector<8x8xf32>
    %187 = arith.addf %182, %186 : vector<8x8xf32>
    %188 = vector.extract_strided_slice %8 {offsets = [1, 3, 2], sizes = [1, 1, 1], strides = [1, 1, 1]} : vector<4x4x4xf32> to vector<1x1x1xf32>
    %189 = vector.extract %188[0, 0, 0] : f32 from vector<1x1x1xf32>
    %190 = vector.broadcast %189 : f32 to vector<8x8xf32>
    %191 = arith.mulf %190, %111 : vector<8x8xf32>
    %192 = arith.addf %187, %191 : vector<8x8xf32>
    %193 = vector.extract_strided_slice %8 {offsets = [1, 3, 3], sizes = [1, 1, 1], strides = [1, 1, 1]} : vector<4x4x4xf32> to vector<1x1x1xf32>
    %194 = vector.extract %193[0, 0, 0] : f32 from vector<1x1x1xf32>
    %195 = vector.broadcast %194 : f32 to vector<8x8xf32>
    %196 = arith.mulf %195, %112 : vector<8x8xf32>
    %197 = arith.addf %192, %196 : vector<8x8xf32>
    %c0_55 = arith.constant 0 : index
    %c7 = arith.constant 7 : index
    %c0_56 = arith.constant 0 : index
    %c0_57 = arith.constant 0 : index
    %198 = vector.load %arg8[%c0_55, %c7, %c0_56, %c0_57] : memref<1x16x8x8xf32, #tpu.memory_space<vmem>>, vector<1x1x8x8xf32>
    %199 = vector.shape_cast %198 : vector<1x1x8x8xf32> to vector<8x8xf32>
    %200 = vector.shape_cast %197 : vector<8x8xf32> to vector<1x1x8x8xf32>
    tpu.vector_store %arg8[%c0_55, %c7, %c0_56, %c0_57], %200 {strides = array<i32>} : memref<1x16x8x8xf32, #tpu.memory_space<vmem>>, vector<1x1x8x8xf32>,
    %c0_58 = arith.constant 0 : index
    %c2_59 = arith.constant 2 : index
    %c0_60 = arith.constant 0 : index
    %c0_61 = arith.constant 0 : index
    %201 = vector.load %arg7[%c0_58, %c2_59, %c0_60, %c0_61] : memref<1x4x16x16xf32, #tpu.memory_space<vmem>>, vector<1x1x16x16xf32>
    %202 = vector.shape_cast %201 : vector<1x1x16x16xf32> to vector<16x16xf32>
    %cst_62 = arith.constant dense<0.000000e+00> : vector<8x16xf32>
    %203 = tpu.matmul %1, %202, %cst_62 {dimension_numbers = #tpu.dot_dimension_numbers<[1], [0], [0], [1], [0, 0, 1, 1], [], []>, precision = #tpu.contract_precision<fp32>} : vector<8x16xf32>, vector<16x16xf32>, vector<8x16xf32> -> vector<8x16xf32>
    %cst_63 = arith.constant dense<0.000000e+00> : vector<8x16xf32>
    %204 = tpu.matmul %3, %202, %cst_63 {dimension_numbers = #tpu.dot_dimension_numbers<[1], [0], [0], [1], [0, 0, 1, 1], [], []>, precision = #tpu.contract_precision<fp32>} : vector<8x16xf32>, vector<16x16xf32>, vector<8x16xf32> -> vector<8x16xf32>
    %cst_64 = arith.constant dense<0.000000e+00> : vector<8x8xf32>
    %205 = tpu.matmul %203, %5, %cst_64 {dimension_numbers = #tpu.dot_dimension_numbers<[1], [0], [0], [1], [0, 0, 1, 1], [], []>, precision = #tpu.contract_precision<fp32>} : vector<8x16xf32>, vector<16x8xf32>, vector<8x8xf32> -> vector<8x8xf32>
    %cst_65 = arith.constant dense<0.000000e+00> : vector<8x8xf32>
    %206 = tpu.matmul %203, %7, %cst_65 {dimension_numbers = #tpu.dot_dimension_numbers<[1], [0], [0], [1], [0, 0, 1, 1], [], []>, precision = #tpu.contract_precision<fp32>} : vector<8x16xf32>, vector<16x8xf32>, vector<8x8xf32> -> vector<8x8xf32>
    %cst_66 = arith.constant dense<0.000000e+00> : vector<8x8xf32>
    %207 = tpu.matmul %204, %5, %cst_66 {dimension_numbers = #tpu.dot_dimension_numbers<[1], [0], [0], [1], [0, 0, 1, 1], [], []>, precision = #tpu.contract_precision<fp32>} : vector<8x16xf32>, vector<16x8xf32>, vector<8x8xf32> -> vector<8x8xf32>
    %cst_67 = arith.constant dense<0.000000e+00> : vector<8x8xf32>
    %208 = tpu.matmul %204, %7, %cst_67 {dimension_numbers = #tpu.dot_dimension_numbers<[1], [0], [0], [1], [0, 0, 1, 1], [], []>, precision = #tpu.contract_precision<fp32>} : vector<8x16xf32>, vector<16x8xf32>, vector<8x8xf32> -> vector<8x8xf32>
    %209 = vector.extract_strided_slice %8 {offsets = [2, 0, 0], sizes = [1, 1, 1], strides = [1, 1, 1]} : vector<4x4x4xf32> to vector<1x1x1xf32>
    %210 = vector.extract %209[0, 0, 0] : f32 from vector<1x1x1xf32>
    %211 = vector.broadcast %210 : f32 to vector<8x8xf32>
    %212 = arith.mulf %211, %205 : vector<8x8xf32>
    %213 = vector.extract_strided_slice %8 {offsets = [2, 0, 1], sizes = [1, 1, 1], strides = [1, 1, 1]} : vector<4x4x4xf32> to vector<1x1x1xf32>
    %214 = vector.extract %213[0, 0, 0] : f32 from vector<1x1x1xf32>
    %215 = vector.broadcast %214 : f32 to vector<8x8xf32>
    %216 = arith.mulf %215, %206 : vector<8x8xf32>
    %217 = arith.addf %212, %216 : vector<8x8xf32>
    %218 = vector.extract_strided_slice %8 {offsets = [2, 0, 2], sizes = [1, 1, 1], strides = [1, 1, 1]} : vector<4x4x4xf32> to vector<1x1x1xf32>
    %219 = vector.extract %218[0, 0, 0] : f32 from vector<1x1x1xf32>
    %220 = vector.broadcast %219 : f32 to vector<8x8xf32>
    %221 = arith.mulf %220, %207 : vector<8x8xf32>
    %222 = arith.addf %217, %221 : vector<8x8xf32>
    %223 = vector.extract_strided_slice %8 {offsets = [2, 0, 3], sizes = [1, 1, 1], strides = [1, 1, 1]} : vector<4x4x4xf32> to vector<1x1x1xf32>
    %224 = vector.extract %223[0, 0, 0] : f32 from vector<1x1x1xf32>
    %225 = vector.broadcast %224 : f32 to vector<8x8xf32>
    %226 = arith.mulf %225, %208 : vector<8x8xf32>
    %227 = arith.addf %222, %226 : vector<8x8xf32>
    %c0_68 = arith.constant 0 : index
    %c8 = arith.constant 8 : index
    %c0_69 = arith.constant 0 : index
    %c0_70 = arith.constant 0 : index
    %228 = vector.load %arg8[%c0_68, %c8, %c0_69, %c0_70] : memref<1x16x8x8xf32, #tpu.memory_space<vmem>>, vector<1x1x8x8xf32>
    %229 = vector.shape_cast %228 : vector<1x1x8x8xf32> to vector<8x8xf32>
    %230 = vector.shape_cast %227 : vector<8x8xf32> to vector<1x1x8x8xf32>
    tpu.vector_store %arg8[%c0_68, %c8, %c0_69, %c0_70], %230 {strides = array<i32>} : memref<1x16x8x8xf32, #tpu.memory_space<vmem>>, vector<1x1x8x8xf32>,
    %231 = vector.extract_strided_slice %8 {offsets = [2, 1, 0], sizes = [1, 1, 1], strides = [1, 1, 1]} : vector<4x4x4xf32> to vector<1x1x1xf32>
    %232 = vector.extract %231[0, 0, 0] : f32 from vector<1x1x1xf32>
    %233 = vector.broadcast %232 : f32 to vector<8x8xf32>
    %234 = arith.mulf %233, %205 : vector<8x8xf32>
    %235 = vector.extract_strided_slice %8 {offsets = [2, 1, 1], sizes = [1, 1, 1], strides = [1, 1, 1]} : vector<4x4x4xf32> to vector<1x1x1xf32>
    %236 = vector.extract %235[0, 0, 0] : f32 from vector<1x1x1xf32>
    %237 = vector.broadcast %236 : f32 to vector<8x8xf32>
    %238 = arith.mulf %237, %206 : vector<8x8xf32>
    %239 = arith.addf %234, %238 : vector<8x8xf32>
    %240 = vector.extract_strided_slice %8 {offsets = [2, 1, 2], sizes = [1, 1, 1], strides = [1, 1, 1]} : vector<4x4x4xf32> to vector<1x1x1xf32>
    %241 = vector.extract %240[0, 0, 0] : f32 from vector<1x1x1xf32>
    %242 = vector.broadcast %241 : f32 to vector<8x8xf32>
    %243 = arith.mulf %242, %207 : vector<8x8xf32>
    %244 = arith.addf %239, %243 : vector<8x8xf32>
    %245 = vector.extract_strided_slice %8 {offsets = [2, 1, 3], sizes = [1, 1, 1], strides = [1, 1, 1]} : vector<4x4x4xf32> to vector<1x1x1xf32>
    %246 = vector.extract %245[0, 0, 0] : f32 from vector<1x1x1xf32>
    %247 = vector.broadcast %246 : f32 to vector<8x8xf32>
    %248 = arith.mulf %247, %208 : vector<8x8xf32>
    %249 = arith.addf %244, %248 : vector<8x8xf32>
    %c0_71 = arith.constant 0 : index
    %c9 = arith.constant 9 : index
    %c0_72 = arith.constant 0 : index
    %c0_73 = arith.constant 0 : index
    %250 = vector.load %arg8[%c0_71, %c9, %c0_72, %c0_73] : memref<1x16x8x8xf32, #tpu.memory_space<vmem>>, vector<1x1x8x8xf32>
    %251 = vector.shape_cast %250 : vector<1x1x8x8xf32> to vector<8x8xf32>
    %252 = vector.shape_cast %249 : vector<8x8xf32> to vector<1x1x8x8xf32>
    tpu.vector_store %arg8[%c0_71, %c9, %c0_72, %c0_73], %252 {strides = array<i32>} : memref<1x16x8x8xf32, #tpu.memory_space<vmem>>, vector<1x1x8x8xf32>,
    %253 = vector.extract_strided_slice %8 {offsets = [2, 2, 0], sizes = [1, 1, 1], strides = [1, 1, 1]} : vector<4x4x4xf32> to vector<1x1x1xf32>
    %254 = vector.extract %253[0, 0, 0] : f32 from vector<1x1x1xf32>
    %255 = vector.broadcast %254 : f32 to vector<8x8xf32>
    %256 = arith.mulf %255, %205 : vector<8x8xf32>
    %257 = vector.extract_strided_slice %8 {offsets = [2, 2, 1], sizes = [1, 1, 1], strides = [1, 1, 1]} : vector<4x4x4xf32> to vector<1x1x1xf32>
    %258 = vector.extract %257[0, 0, 0] : f32 from vector<1x1x1xf32>
    %259 = vector.broadcast %258 : f32 to vector<8x8xf32>
    %260 = arith.mulf %259, %206 : vector<8x8xf32>
    %261 = arith.addf %256, %260 : vector<8x8xf32>
    %262 = vector.extract_strided_slice %8 {offsets = [2, 2, 2], sizes = [1, 1, 1], strides = [1, 1, 1]} : vector<4x4x4xf32> to vector<1x1x1xf32>
    %263 = vector.extract %262[0, 0, 0] : f32 from vector<1x1x1xf32>
    %264 = vector.broadcast %263 : f32 to vector<8x8xf32>
    %265 = arith.mulf %264, %207 : vector<8x8xf32>
    %266 = arith.addf %261, %265 : vector<8x8xf32>
    %267 = vector.extract_strided_slice %8 {offsets = [2, 2, 3], sizes = [1, 1, 1], strides = [1, 1, 1]} : vector<4x4x4xf32> to vector<1x1x1xf32>
    %268 = vector.extract %267[0, 0, 0] : f32 from vector<1x1x1xf32>
    %269 = vector.broadcast %268 : f32 to vector<8x8xf32>
    %270 = arith.mulf %269, %208 : vector<8x8xf32>
    %271 = arith.addf %266, %270 : vector<8x8xf32>
    %c0_74 = arith.constant 0 : index
    %c10 = arith.constant 10 : index
    %c0_75 = arith.constant 0 : index
    %c0_76 = arith.constant 0 : index
    %272 = vector.load %arg8[%c0_74, %c10, %c0_75, %c0_76] : memref<1x16x8x8xf32, #tpu.memory_space<vmem>>, vector<1x1x8x8xf32>
    %273 = vector.shape_cast %272 : vector<1x1x8x8xf32> to vector<8x8xf32>
    %274 = vector.shape_cast %271 : vector<8x8xf32> to vector<1x1x8x8xf32>
    tpu.vector_store %arg8[%c0_74, %c10, %c0_75, %c0_76], %274 {strides = array<i32>} : memref<1x16x8x8xf32, #tpu.memory_space<vmem>>, vector<1x1x8x8xf32>,
    %275 = vector.extract_strided_slice %8 {offsets = [2, 3, 0], sizes = [1, 1, 1], strides = [1, 1, 1]} : vector<4x4x4xf32> to vector<1x1x1xf32>
    %276 = vector.extract %275[0, 0, 0] : f32 from vector<1x1x1xf32>
    %277 = vector.broadcast %276 : f32 to vector<8x8xf32>
    %278 = arith.mulf %277, %205 : vector<8x8xf32>
    %279 = vector.extract_strided_slice %8 {offsets = [2, 3, 1], sizes = [1, 1, 1], strides = [1, 1, 1]} : vector<4x4x4xf32> to vector<1x1x1xf32>
    %280 = vector.extract %279[0, 0, 0] : f32 from vector<1x1x1xf32>
    %281 = vector.broadcast %280 : f32 to vector<8x8xf32>
    %282 = arith.mulf %281, %206 : vector<8x8xf32>
    %283 = arith.addf %278, %282 : vector<8x8xf32>
    %284 = vector.extract_strided_slice %8 {offsets = [2, 3, 2], sizes = [1, 1, 1], strides = [1, 1, 1]} : vector<4x4x4xf32> to vector<1x1x1xf32>
    %285 = vector.extract %284[0, 0, 0] : f32 from vector<1x1x1xf32>
    %286 = vector.broadcast %285 : f32 to vector<8x8xf32>
    %287 = arith.mulf %286, %207 : vector<8x8xf32>
    %288 = arith.addf %283, %287 : vector<8x8xf32>
    %289 = vector.extract_strided_slice %8 {offsets = [2, 3, 3], sizes = [1, 1, 1], strides = [1, 1, 1]} : vector<4x4x4xf32> to vector<1x1x1xf32>
    %290 = vector.extract %289[0, 0, 0] : f32 from vector<1x1x1xf32>
    %291 = vector.broadcast %290 : f32 to vector<8x8xf32>
    %292 = arith.mulf %291, %208 : vector<8x8xf32>
    %293 = arith.addf %288, %292 : vector<8x8xf32>
    %c0_77 = arith.constant 0 : index
    %c11 = arith.constant 11 : index
    %c0_78 = arith.constant 0 : index
    %c0_79 = arith.constant 0 : index
    %294 = vector.load %arg8[%c0_77, %c11, %c0_78, %c0_79] : memref<1x16x8x8xf32, #tpu.memory_space<vmem>>, vector<1x1x8x8xf32>
    %295 = vector.shape_cast %294 : vector<1x1x8x8xf32> to vector<8x8xf32>
    %296 = vector.shape_cast %293 : vector<8x8xf32> to vector<1x1x8x8xf32>
    tpu.vector_store %arg8[%c0_77, %c11, %c0_78, %c0_79], %296 {strides = array<i32>} : memref<1x16x8x8xf32, #tpu.memory_space<vmem>>, vector<1x1x8x8xf32>,
    %c0_80 = arith.constant 0 : index
    %c3_81 = arith.constant 3 : index
    %c0_82 = arith.constant 0 : index
    %c0_83 = arith.constant 0 : index
    %297 = vector.load %arg7[%c0_80, %c3_81, %c0_82, %c0_83] : memref<1x4x16x16xf32, #tpu.memory_space<vmem>>, vector<1x1x16x16xf32>
    %298 = vector.shape_cast %297 : vector<1x1x16x16xf32> to vector<16x16xf32>
    %cst_84 = arith.constant dense<0.000000e+00> : vector<8x16xf32>
    %299 = tpu.matmul %1, %298, %cst_84 {dimension_numbers = #tpu.dot_dimension_numbers<[1], [0], [0], [1], [0, 0, 1, 1], [], []>, precision = #tpu.contract_precision<fp32>} : vector<8x16xf32>, vector<16x16xf32>, vector<8x16xf32> -> vector<8x16xf32>
    %cst_85 = arith.constant dense<0.000000e+00> : vector<8x16xf32>
    %300 = tpu.matmul %3, %298, %cst_85 {dimension_numbers = #tpu.dot_dimension_numbers<[1], [0], [0], [1], [0, 0, 1, 1], [], []>, precision = #tpu.contract_precision<fp32>} : vector<8x16xf32>, vector<16x16xf32>, vector<8x16xf32> -> vector<8x16xf32>
    %cst_86 = arith.constant dense<0.000000e+00> : vector<8x8xf32>
    %301 = tpu.matmul %299, %5, %cst_86 {dimension_numbers = #tpu.dot_dimension_numbers<[1], [0], [0], [1], [0, 0, 1, 1], [], []>, precision = #tpu.contract_precision<fp32>} : vector<8x16xf32>, vector<16x8xf32>, vector<8x8xf32> -> vector<8x8xf32>
    %cst_87 = arith.constant dense<0.000000e+00> : vector<8x8xf32>
    %302 = tpu.matmul %299, %7, %cst_87 {dimension_numbers = #tpu.dot_dimension_numbers<[1], [0], [0], [1], [0, 0, 1, 1], [], []>, precision = #tpu.contract_precision<fp32>} : vector<8x16xf32>, vector<16x8xf32>, vector<8x8xf32> -> vector<8x8xf32>
    %cst_88 = arith.constant dense<0.000000e+00> : vector<8x8xf32>
    %303 = tpu.matmul %300, %5, %cst_88 {dimension_numbers = #tpu.dot_dimension_numbers<[1], [0], [0], [1], [0, 0, 1, 1], [], []>, precision = #tpu.contract_precision<fp32>} : vector<8x16xf32>, vector<16x8xf32>, vector<8x8xf32> -> vector<8x8xf32>
    %cst_89 = arith.constant dense<0.000000e+00> : vector<8x8xf32>
    %304 = tpu.matmul %300, %7, %cst_89 {dimension_numbers = #tpu.dot_dimension_numbers<[1], [0], [0], [1], [0, 0, 1, 1], [], []>, precision = #tpu.contract_precision<fp32>} : vector<8x16xf32>, vector<16x8xf32>, vector<8x8xf32> -> vector<8x8xf32>
    %305 = vector.extract_strided_slice %8 {offsets = [3, 0, 0], sizes = [1, 1, 1], strides = [1, 1, 1]} : vector<4x4x4xf32> to vector<1x1x1xf32>
    %306 = vector.extract %305[0, 0, 0] : f32 from vector<1x1x1xf32>
    %307 = vector.broadcast %306 : f32 to vector<8x8xf32>
    %308 = arith.mulf %307, %301 : vector<8x8xf32>
    %309 = vector.extract_strided_slice %8 {offsets = [3, 0, 1], sizes = [1, 1, 1], strides = [1, 1, 1]} : vector<4x4x4xf32> to vector<1x1x1xf32>
    %310 = vector.extract %309[0, 0, 0] : f32 from vector<1x1x1xf32>
    %311 = vector.broadcast %310 : f32 to vector<8x8xf32>
    %312 = arith.mulf %311, %302 : vector<8x8xf32>
    %313 = arith.addf %308, %312 : vector<8x8xf32>
    %314 = vector.extract_strided_slice %8 {offsets = [3, 0, 2], sizes = [1, 1, 1], strides = [1, 1, 1]} : vector<4x4x4xf32> to vector<1x1x1xf32>
    %315 = vector.extract %314[0, 0, 0] : f32 from vector<1x1x1xf32>
    %316 = vector.broadcast %315 : f32 to vector<8x8xf32>
    %317 = arith.mulf %316, %303 : vector<8x8xf32>
    %318 = arith.addf %313, %317 : vector<8x8xf32>
    %319 = vector.extract_strided_slice %8 {offsets = [3, 0, 3], sizes = [1, 1, 1], strides = [1, 1, 1]} : vector<4x4x4xf32> to vector<1x1x1xf32>
    %320 = vector.extract %319[0, 0, 0] : f32 from vector<1x1x1xf32>
    %321 = vector.broadcast %320 : f32 to vector<8x8xf32>
    %322 = arith.mulf %321, %304 : vector<8x8xf32>
    %323 = arith.addf %318, %322 : vector<8x8xf32>
    %c0_90 = arith.constant 0 : index
    %c12 = arith.constant 12 : index
    %c0_91 = arith.constant 0 : index
    %c0_92 = arith.constant 0 : index
    %324 = vector.load %arg8[%c0_90, %c12, %c0_91, %c0_92] : memref<1x16x8x8xf32, #tpu.memory_space<vmem>>, vector<1x1x8x8xf32>
    %325 = vector.shape_cast %324 : vector<1x1x8x8xf32> to vector<8x8xf32>
    %326 = vector.shape_cast %323 : vector<8x8xf32> to vector<1x1x8x8xf32>
    tpu.vector_store %arg8[%c0_90, %c12, %c0_91, %c0_92], %326 {strides = array<i32>} : memref<1x16x8x8xf32, #tpu.memory_space<vmem>>, vector<1x1x8x8xf32>,
    %327 = vector.extract_strided_slice %8 {offsets = [3, 1, 0], sizes = [1, 1, 1], strides = [1, 1, 1]} : vector<4x4x4xf32> to vector<1x1x1xf32>
    %328 = vector.extract %327[0, 0, 0] : f32 from vector<1x1x1xf32>
    %329 = vector.broadcast %328 : f32 to vector<8x8xf32>
    %330 = arith.mulf %329, %301 : vector<8x8xf32>
    %331 = vector.extract_strided_slice %8 {offsets = [3, 1, 1], sizes = [1, 1, 1], strides = [1, 1, 1]} : vector<4x4x4xf32> to vector<1x1x1xf32>
    %332 = vector.extract %331[0, 0, 0] : f32 from vector<1x1x1xf32>
    %333 = vector.broadcast %332 : f32 to vector<8x8xf32>
    %334 = arith.mulf %333, %302 : vector<8x8xf32>
    %335 = arith.addf %330, %334 : vector<8x8xf32>
    %336 = vector.extract_strided_slice %8 {offsets = [3, 1, 2], sizes = [1, 1, 1], strides = [1, 1, 1]} : vector<4x4x4xf32> to vector<1x1x1xf32>
    %337 = vector.extract %336[0, 0, 0] : f32 from vector<1x1x1xf32>
    %338 = vector.broadcast %337 : f32 to vector<8x8xf32>
    %339 = arith.mulf %338, %303 : vector<8x8xf32>
    %340 = arith.addf %335, %339 : vector<8x8xf32>
    %341 = vector.extract_strided_slice %8 {offsets = [3, 1, 3], sizes = [1, 1, 1], strides = [1, 1, 1]} : vector<4x4x4xf32> to vector<1x1x1xf32>
    %342 = vector.extract %341[0, 0, 0] : f32 from vector<1x1x1xf32>
    %343 = vector.broadcast %342 : f32 to vector<8x8xf32>
    %344 = arith.mulf %343, %304 : vector<8x8xf32>
    %345 = arith.addf %340, %344 : vector<8x8xf32>
    %c0_93 = arith.constant 0 : index
    %c13 = arith.constant 13 : index
    %c0_94 = arith.constant 0 : index
    %c0_95 = arith.constant 0 : index
    %346 = vector.load %arg8[%c0_93, %c13, %c0_94, %c0_95] : memref<1x16x8x8xf32, #tpu.memory_space<vmem>>, vector<1x1x8x8xf32>
    %347 = vector.shape_cast %346 : vector<1x1x8x8xf32> to vector<8x8xf32>
    %348 = vector.shape_cast %345 : vector<8x8xf32> to vector<1x1x8x8xf32>
    tpu.vector_store %arg8[%c0_93, %c13, %c0_94, %c0_95], %348 {strides = array<i32>} : memref<1x16x8x8xf32, #tpu.memory_space<vmem>>, vector<1x1x8x8xf32>,
    %349 = vector.extract_strided_slice %8 {offsets = [3, 2, 0], sizes = [1, 1, 1], strides = [1, 1, 1]} : vector<4x4x4xf32> to vector<1x1x1xf32>
    %350 = vector.extract %349[0, 0, 0] : f32 from vector<1x1x1xf32>
    %351 = vector.broadcast %350 : f32 to vector<8x8xf32>
    %352 = arith.mulf %351, %301 : vector<8x8xf32>
    %353 = vector.extract_strided_slice %8 {offsets = [3, 2, 1], sizes = [1, 1, 1], strides = [1, 1, 1]} : vector<4x4x4xf32> to vector<1x1x1xf32>
    %354 = vector.extract %353[0, 0, 0] : f32 from vector<1x1x1xf32>
    %355 = vector.broadcast %354 : f32 to vector<8x8xf32>
    %356 = arith.mulf %355, %302 : vector<8x8xf32>
    %357 = arith.addf %352, %356 : vector<8x8xf32>
    %358 = vector.extract_strided_slice %8 {offsets = [3, 2, 2], sizes = [1, 1, 1], strides = [1, 1, 1]} : vector<4x4x4xf32> to vector<1x1x1xf32>
    %359 = vector.extract %358[0, 0, 0] : f32 from vector<1x1x1xf32>
    %360 = vector.broadcast %359 : f32 to vector<8x8xf32>
    %361 = arith.mulf %360, %303 : vector<8x8xf32>
    %362 = arith.addf %357, %361 : vector<8x8xf32>
    %363 = vector.extract_strided_slice %8 {offsets = [3, 2, 3], sizes = [1, 1, 1], strides = [1, 1, 1]} : vector<4x4x4xf32> to vector<1x1x1xf32>
    %364 = vector.extract %363[0, 0, 0] : f32 from vector<1x1x1xf32>
    %365 = vector.broadcast %364 : f32 to vector<8x8xf32>
    %366 = arith.mulf %365, %304 : vector<8x8xf32>
    %367 = arith.addf %362, %366 : vector<8x8xf32>
    %c0_96 = arith.constant 0 : index
    %c14 = arith.constant 14 : index
    %c0_97 = arith.constant 0 : index
    %c0_98 = arith.constant 0 : index
    %368 = vector.load %arg8[%c0_96, %c14, %c0_97, %c0_98] : memref<1x16x8x8xf32, #tpu.memory_space<vmem>>, vector<1x1x8x8xf32>
    %369 = vector.shape_cast %368 : vector<1x1x8x8xf32> to vector<8x8xf32>
    %370 = vector.shape_cast %367 : vector<8x8xf32> to vector<1x1x8x8xf32>
    tpu.vector_store %arg8[%c0_96, %c14, %c0_97, %c0_98], %370 {strides = array<i32>} : memref<1x16x8x8xf32, #tpu.memory_space<vmem>>, vector<1x1x8x8xf32>,
    %371 = vector.extract_strided_slice %8 {offsets = [3, 3, 0], sizes = [1, 1, 1], strides = [1, 1, 1]} : vector<4x4x4xf32> to vector<1x1x1xf32>
    %372 = vector.extract %371[0, 0, 0] : f32 from vector<1x1x1xf32>
    %373 = vector.broadcast %372 : f32 to vector<8x8xf32>
    %374 = arith.mulf %373, %301 : vector<8x8xf32>
    %375 = vector.extract_strided_slice %8 {offsets = [3, 3, 1], sizes = [1, 1, 1], strides = [1, 1, 1]} : vector<4x4x4xf32> to vector<1x1x1xf32>
    %376 = vector.extract %375[0, 0, 0] : f32 from vector<1x1x1xf32>
    %377 = vector.broadcast %376 : f32 to vector<8x8xf32>
    %378 = arith.mulf %377, %302 : vector<8x8xf32>
    %379 = arith.addf %374, %378 : vector<8x8xf32>
    %380 = vector.extract_strided_slice %8 {offsets = [3, 3, 2], sizes = [1, 1, 1], strides = [1, 1, 1]} : vector<4x4x4xf32> to vector<1x1x1xf32>
    %381 = vector.extract %380[0, 0, 0] : f32 from vector<1x1x1xf32>
    %382 = vector.broadcast %381 : f32 to vector<8x8xf32>
    %383 = arith.mulf %382, %303 : vector<8x8xf32>
    %384 = arith.addf %379, %383 : vector<8x8xf32>
    %385 = vector.extract_strided_slice %8 {offsets = [3, 3, 3], sizes = [1, 1, 1], strides = [1, 1, 1]} : vector<4x4x4xf32> to vector<1x1x1xf32>
    %386 = vector.extract %385[0, 0, 0] : f32 from vector<1x1x1xf32>
    %387 = vector.broadcast %386 : f32 to vector<8x8xf32>
    %388 = arith.mulf %387, %304 : vector<8x8xf32>
    %389 = arith.addf %384, %388 : vector<8x8xf32>
    %c0_99 = arith.constant 0 : index
    %c15 = arith.constant 15 : index
    %c0_100 = arith.constant 0 : index
    %c0_101 = arith.constant 0 : index
    %390 = vector.load %arg8[%c0_99, %c15, %c0_100, %c0_101] : memref<1x16x8x8xf32, #tpu.memory_space<vmem>>, vector<1x1x8x8xf32>
    %391 = vector.shape_cast %390 : vector<1x1x8x8xf32> to vector<8x8xf32>
    %392 = vector.shape_cast %389 : vector<8x8xf32> to vector<1x1x8x8xf32>
    tpu.vector_store %arg8[%c0_99, %c15, %c0_100, %c0_101], %392 {strides = array<i32>} : memref<1x16x8x8xf32, #tpu.memory_space<vmem>>, vector<1x1x8x8xf32>,
    return
  }
  func.func @transform_0(%arg0: i32, %arg1: i32, %arg2: i32, %arg3: i32) -> (i32, i32, i32) {
    %c0_i32 = arith.constant 0 : i32
    %c0_i32_0 = arith.constant 0 : i32
    %c0_i32_1 = arith.constant 0 : i32
    return %arg1, %c0_i32, %c0_i32_0 : i32, i32, i32
  }
  func.func @transform_1(%arg0: i32, %arg1: i32, %arg2: i32, %arg3: i32) -> (i32, i32, i32) {
    %c0_i32 = arith.constant 0 : i32
    %c0_i32_0 = arith.constant 0 : i32
    %c0_i32_1 = arith.constant 0 : i32
    %c0_i32_2 = arith.constant 0 : i32
    return %c0_i32, %c0_i32_0, %c0_i32_1 : i32, i32, i32
  }
  func.func @transform_2(%arg0: i32, %arg1: i32, %arg2: i32, %arg3: i32) -> (i32, i32, i32) {
    %c0_i32 = arith.constant 0 : i32
    %c0_i32_0 = arith.constant 0 : i32
    %c0_i32_1 = arith.constant 0 : i32
    %c0_i32_2 = arith.constant 0 : i32
    return %c0_i32, %c0_i32_0, %c0_i32_1 : i32, i32, i32
  }
  func.func @transform_3(%arg0: i32, %arg1: i32, %arg2: i32, %arg3: i32) -> (i32, i32, i32, i32) {
    %c0_i32 = arith.constant 0 : i32
    return %arg0, %arg1, %arg2, %arg3 : i32, i32, i32, i32
  }
  func.func @transform_4(%arg0: i32, %arg1: i32, %arg2: i32, %arg3: i32) -> (i32, i32, i32, i32) {
    %c0_i32 = arith.constant 0 : i32
    return %arg0, %arg1, %arg2, %arg3 : i32, i32, i32, i32
  }
}

</mosaic_0001>

<llo_original>
// kernel: tpu_custom_call.1
$region0: #{tpu_custom_call.1}
  #allocation0 [shape = 'u32[]', space=smem, size = 0x4, offset = 0x4, fixed_abs, tag = 'smem constant byte address 0x4 - core index']
  #allocation1 [shape = 'u32[72,128]{1,0:T(1,128)}', space=vmem, size = 0x9000, scoped, tag = 'internal scratch']
  %s0 = inlined_call_operand.vmem [shape: f32[4,4,4], index: 0, kind: input, shape index: {}]
  %s1 = inlined_call_operand.vmem [shape: f32[2,8,16], index: 1, kind: input, shape index: {}]
  %s2 = inlined_call_operand.vmem [shape: f32[2,16,8], index: 2, kind: input, shape index: {}]
  %s3 = inlined_call_operand.hbm [shape: f32[2,4,16,16], index: 3, kind: input, shape index: {}]
  %s4 = inlined_call_operand.vmem [shape: f32[2,16,8,8], index: 4, kind: output, shape index: {}]
  %s5 = sld [smem:[#allocation0]]
  $region53: #{tpu_custom_call.1} parent=0
    _
  %s7 = ssub.s32 1, %s5
  %s8 = scalar_select 0, %s7, %s5
  $region1: #{tpu_custom_call.1} parent=0
    #allocation2 [shape = 'u8[65536]{0}', space=vmem, size = 0x10000, scoped, tag = 'input window, operand 3']
    #allocation3 [shape = 's32[2]{0}', space=sflag, size = 0x8, scoped, tag = 'scoped memory for tpu_custom_call.1']
    %9 = vsyncpa [#allocation3], 0
    %s10 = scalar_lea.sflag [#allocation3], 1
    %11 = vsyncpa %s10, 0
    loop: start=0, step=1, limit=4
    $region2: #{tpu_custom_call.1} parent=1 // loop_pre_header
      _
    $region3: #{tpu_custom_call.1} parent=1 // loop_header
      %s13 = sphi 0, %s17
      %p14 = scmp.ge.s32.totalorder %s13, 4
      %s20 = sphi 0, %s46
      %s21 = sphi 0, %s42
      %s22 = sphi 0, %s38
      %s23 = sphi 0, %s34
      %s24 = sphi 0, %s20
      %s25 = sphi 0, %s21
      %s26 = sphi 0, %s22
      %s27 = sphi 0, %s23
      %s28 = sphi 0, %s24
      %s29 = sphi 0, %s25
      %s30 = sphi 0, %s26
      %s31 = sphi 0, %s27
      %s49 = sphi 0, %s51
      %s52 = sphi 0, %s49
      %s53 = sphi 0, %s52
      %s69 = sphi 0, %s53
      %s73 = sphi 0, %s73
      %s75 = sphi 0, %s73
      %s76 = sphi 0, %s75
      %s90 = sphi 0, %s76
      %s94 = sphi 0, %s94
      %s96 = sphi 0, %s94
      %s97 = sphi 0, %s96
      %s111 = sphi 0, %s97
      %s123 = sphi 0, %s125
      %s126 = sphi 0, %s123
      %s127 = sphi 0, %s126
      %s143 = sphi 0, %s127
      %s155 = sphi 0, %s157
      %s158 = sphi 0, %s155
      %s159 = sphi 0, %s158
      %s175 = sphi 0, %s159
    $region4: #{tpu_custom_call.1} parent=1 // loop_header_branch
      %16 = sbr.rel (%p14) target = $region8
    $region5: #{tpu_custom_call.1} parent=1 // loop_body
      %s18 = ssub.s32 %s13, 1
      %s19 = ssub.s32 %s13, 2
      %s32 = sadd.s32 1, %s23
      %p33 = scmp.ge.s32.totalorder %s32, 1
      %s34 = scalar_select %p33, 0, %s32
      %s35 = sadd.s32 1, %s22
      %s36 = scalar_select %p33, %s35, %s22
      %p37 = scmp.ge.s32.totalorder %s36, 1
      %s38 = scalar_select %p37, 0, %s36
      %s39 = sadd.s32 1, %s21
      %s40 = scalar_select %p37, %s39, %s21
      %p41 = scmp.ge.s32.totalorder %s40, 1
      %s42 = scalar_select %p41, 0, %s40
      %s43 = sadd.s32 1, %s20
      %s44 = scalar_select %p41, %s43, %s20
      %p45 = scmp.ge.s32.totalorder %s44, 2
      %s46 = scalar_select %p45, 0, %s44
      %s47 = ssub.s32 %s21, %s42
      %p48 = scmp.eq.s32.totalorder %s47, 0
      %s50 = sadd.s32 %s49, 1
      %s51 = scalar_select %p48, %s49, %s50
      %p54 = pneg %p48
      %p55 = scmp.eq.s32.totalorder %s13, 1
      %p56 = por %p54, %p55
      %p57 = scmp.ne.s32.totalorder %s49, %s52
      %p58 = scmp.eq.s32.totalorder %s13, 0
      %p59 = por %p57, %p58
      %p60 = scmp.ne.s32.totalorder %s49, %s52
      %p61 = scmp.eq.s32.totalorder %s18, 1
      %p62 = por %p60, %p61
      %p63 = scmp.ne.s32.totalorder %s52, %s53
      %p64 = scmp.eq.s32.totalorder %s18, 0
      %p65 = por %p63, %p64
      %p66 = scmp.ne.s32.totalorder %s52, %s53
      %p67 = scmp.eq.s32.totalorder %s19, 1
      %p68 = por %p66, %p67
      %p70 = scmp.ne.s32.totalorder %s53, %s69
      %p71 = scmp.eq.s32.totalorder %s19, 0
      %p72 = por %p70, %p71
      %s74 = sadd.s32 %s73, 1
      %p77 = scmp.eq.s32.totalorder %s13, 1
      %p78 = scmp.ne.s32.totalorder %s73, %s75
      %p79 = scmp.eq.s32.totalorder %s13, 0
      %p80 = por %p78, %p79
      %p81 = scmp.ne.s32.totalorder %s73, %s75
      %p82 = scmp.eq.s32.totalorder %s18, 1
      %p83 = por %p81, %p82
      %p84 = scmp.ne.s32.totalorder %s75, %s76
      %p85 = scmp.eq.s32.totalorder %s18, 0
      %p86 = por %p84, %p85
      %p87 = scmp.ne.s32.totalorder %s75, %s76
      %p88 = scmp.eq.s32.totalorder %s19, 1
      %p89 = por %p87, %p88
      %p91 = scmp.ne.s32.totalorder %s76, %s90
      %p92 = scmp.eq.s32.totalorder %s19, 0
      %p93 = por %p91, %p92
      %s95 = sadd.s32 %s94, 1
      %p98 = scmp.eq.s32.totalorder %s13, 1
      %p99 = scmp.ne.s32.totalorder %s94, %s96
      %p100 = scmp.eq.s32.totalorder %s13, 0
      %p101 = por %p99, %p100
      %p102 = scmp.ne.s32.totalorder %s94, %s96
      %p103 = scmp.eq.s32.totalorder %s18, 1
      %p104 = por %p102, %p103
      %p105 = scmp.ne.s32.totalorder %s96, %s97
      %p106 = scmp.eq.s32.totalorder %s18, 0
      %p107 = por %p105, %p106
      %p108 = scmp.ne.s32.totalorder %s96, %s97
      %p109 = scmp.eq.s32.totalorder %s19, 1
      %p110 = por %p108, %p109
      %p112 = scmp.ne.s32.totalorder %s97, %s111
      %p113 = scmp.eq.s32.totalorder %s19, 0
      %p114 = por %p112, %p113
      %s115 = ssub.s32 %s20, %s46
      %s116 = ssub.s32 %s21, %s42
      %s117 = sor.u32 %s115, %s116
      %s118 = ssub.s32 %s22, %s38
      %s119 = sor.u32 %s117, %s118
      %s120 = ssub.s32 %s23, %s34
      %s121 = sor.u32 %s119, %s120
      %p122 = scmp.eq.s32.totalorder %s121, 0
      %s124 = sadd.s32 %s123, 1
      %s125 = scalar_select %p122, %s123, %s124
      %p128 = pneg %p122
      %p129 = scmp.eq.s32.totalorder %s13, 1
      %p130 = por %p128, %p129
      %p131 = scmp.ne.s32.totalorder %s123, %s126
      %p132 = scmp.eq.s32.totalorder %s13, 0
      %p133 = por %p131, %p132
      %p134 = scmp.ne.s32.totalorder %s123, %s126
      %p135 = scmp.eq.s32.totalorder %s18, 1
      %p136 = por %p134, %p135
      %p137 = scmp.ne.s32.totalorder %s126, %s127
      %p138 = scmp.eq.s32.totalorder %s18, 0
      %p139 = por %p137, %p138
      %p140 = scmp.ne.s32.totalorder %s126, %s127
      %p141 = scmp.eq.s32.totalorder %s19, 1
      %p142 = por %p140, %p141
      %p144 = scmp.ne.s32.totalorder %s127, %s143
      %p145 = scmp.eq.s32.totalorder %s19, 0
      %p146 = por %p144, %p145
      %s147 = ssub.s32 %s20, %s46
      %s148 = ssub.s32 %s21, %s42
      %s149 = sor.u32 %s147, %s148
      %s150 = ssub.s32 %s22, %s38
      %s151 = sor.u32 %s149, %s150
      %s152 = ssub.s32 %s23, %s34
      %s153 = sor.u32 %s151, %s152
      %p154 = scmp.eq.s32.totalorder %s153, 0
      %s156 = sadd.s32 %s155, 1
      %s157 = scalar_select %p154, %s155, %s156
      %p160 = pneg %p154
      %p161 = scmp.eq.s32.totalorder %s13, 1
      %p162 = por %p160, %p161
      %p163 = scmp.ne.s32.totalorder %s155, %s158
      %p164 = scmp.eq.s32.totalorder %s13, 0
      %p165 = por %p163, %p164
      %p166 = scmp.ne.s32.totalorder %s155, %s158
      %p167 = scmp.eq.s32.totalorder %s18, 1
      %p168 = por %p166, %p167
      %p169 = scmp.ne.s32.totalorder %s158, %s159
      %p170 = scmp.eq.s32.totalorder %s18, 0
      %p171 = por %p169, %p170
      %p172 = scmp.ne.s32.totalorder %s158, %s159
      %p173 = scmp.eq.s32.totalorder %s19, 1
      %p174 = por %p172, %p173
      %p176 = scmp.ne.s32.totalorder %s159, %s175
      %p177 = scmp.eq.s32.totalorder %s19, 0
      %p178 = por %p176, %p177
      %p179 = scmp.le.s32.totalorder 1, %s13
      %p180 = scmp.lt.s32.totalorder %s13, 3
      %p181 = pnand %p179, %p180
      %p182 = pneg %p181
      // Predicated region
      $region9: #{tpu_custom_call.1} parent=5 // pred_check
        _
      $region10: #{tpu_custom_call.1} parent=5 // pred_check_branch
        %184 = sbr.rel (%p181) target = $region12
      $region11: #{tpu_custom_call.1} parent=5 // pred_region
        %s185 = ssub.s32 %s13, 1
        // Predicated region
        $region13: #{tpu_custom_call.1} parent=11 // pred_check
          %p186 = pneg %p65
        $region14: #{tpu_custom_call.1} parent=11 // pred_check_branch
          %188 = sbr.rel (%p186) target = $region16
        $region15: #{tpu_custom_call.1} parent=11 // pred_region
          %s189 = smul.u32 4, %s25
          %p190 = scmp.lt.s32.totalorder %s189, 3
          %s191 = scalar_select %p190, %s189, 3
          %s192 = smul.addr %s191, 4
          %s193 = scalar_lea.vmem %s0, %s192
          %s194 = smul.u32 4, %s25
        $region16: #{tpu_custom_call.1} parent=11 // pred_fallthru
          _
        // Predicated region
        $region17: #{tpu_custom_call.1} parent=11 // pred_check
          %p195 = pneg %p86
        $region18: #{tpu_custom_call.1} parent=11 // pred_check_branch
          %197 = sbr.rel (%p195) target = $region20
        $region19: #{tpu_custom_call.1} parent=11 // pred_region
          _
        $region20: #{tpu_custom_call.1} parent=11 // pred_fallthru
          _
        // Predicated region
        $region21: #{tpu_custom_call.1} parent=11 // pred_check
          %p198 = pneg %p107
        $region22: #{tpu_custom_call.1} parent=11 // pred_check_branch
          %200 = sbr.rel (%p198) target = $region24
        $region23: #{tpu_custom_call.1} parent=11 // pred_region
          _
        $region24: #{tpu_custom_call.1} parent=11 // pred_fallthru
          _
      $region12: #{tpu_custom_call.1} parent=5 // pred_fallthru
        _
      %p201 = scmp.lt.s32.totalorder %s13, 2
      // Predicated region
      $region25: #{tpu_custom_call.1} parent=5 // pred_check
        %p202 = pneg %p201
      $region26: #{tpu_custom_call.1} parent=5 // pred_check_branch
        %204 = sbr.rel (%p202) target = $region28
      $region27: #{tpu_custom_call.1} parent=5 // pred_region
        // Predicated region
        $region29: #{tpu_custom_call.1} parent=27 // pred_check
          %p205 = pneg %p133
        $region30: #{tpu_custom_call.1} parent=27 // pred_check_branch
          %207 = sbr.rel (%p205) target = $region32
        $region31: #{tpu_custom_call.1} parent=27 // pred_region
          %s208 = sand.u32 %s123, 1
          %s209 = scalar_lea.sflag [#allocation3], %s208
          %s210 = sand.u32 %s123, 1
          %s211 = smul.addr %s210, 64
          %s212 = scalar_lea.vmem [#allocation2], %s211
          %s213 = smul.u32 4, %s21
          %s214 = smul.u32 2, %s22
          %216 = vsyncadd %s209, 0
          %s217 = sadd.s32 %s23, %s214
          %s218 = smul.addr %s213, 2
          %s219 = sadd.s32 %s217, %s218
          %s220 = smul.addr %s20, 8
          %s221 = sadd.s32 %s219, %s220
          %s222 = smul.addr %s221, 8
          %s223 = scalar_lea.hbm %s3, %s222
          %s224 = sshll.u32 %s223, 4
          %s225 = int_to_ptr.hbm [resolvable:$true] %s224
          %s226 = sshll.u32 %s212, 4
          %s227 = int_to_ptr.vmem [resolvable:$true] %s226
          %232 = dma.hbm_to_vmem [thread:$0]  %s225, 1024, %s227, %s209, 128, 128, 8
        $region32: #{tpu_custom_call.1} parent=27 // pred_fallthru
          _
      $region28: #{tpu_custom_call.1} parent=5 // pred_fallthru
        _
      %p233 = scmp.le.s32.totalorder 1, %s13
      %p234 = scmp.lt.s32.totalorder %s13, 3
      %p235 = pnand %p233, %p234
      %p236 = pneg %p235
      // Predicated region
      $region33: #{tpu_custom_call.1} parent=5 // pred_check
        _
      $region34: #{tpu_custom_call.1} parent=5 // pred_check_branch
        %238 = sbr.rel (%p235) target = $region36
      $region35: #{tpu_custom_call.1} parent=5 // pred_region
        %s239 = ssub.s32 %s13, 1
        %s240 = sand.u32 %s126, 1
        %s241 = scalar_lea.sflag [#allocation3], %s240
        %s242 = sand.u32 %s126, 1
        %s243 = smul.addr %s242, 64
        %s244 = scalar_lea.vmem [#allocation2], %s243
        // Predicated region
        $region37: #{tpu_custom_call.1} parent=35 // pred_check
          %p245 = pneg %p139
        $region38: #{tpu_custom_call.1} parent=35 // pred_check_branch
          %247 = sbr.rel (%p245) target = $region40
        $region39: #{tpu_custom_call.1} parent=35 // pred_region
          %249 = dma.done %s241, 1024
        $region40: #{tpu_custom_call.1} parent=35 // pred_fallthru
          _
        %s250 = smul.u32 4, %s25
        %p251 = scmp.lt.s32.totalorder %s250, 3
        %s252 = scalar_select %p251, %s250, 3
        %s253 = smul.addr %s252, 4
        %s254 = scalar_lea.vmem %s0, %s253
        %p255 = pneg %p65
        %p256 = pneg %p62
        %p257 = pneg %p86
        %p258 = pneg %p83
        %p259 = pneg %p107
        %p260 = pneg %p104
        %s261 = sand.u32 %s126, 1
        %s262 = scalar_lea.sflag [#allocation3], %s261
        %s263 = sand.u32 %s126, 1
        %s264 = smul.addr %s263, 64
        %s265 = scalar_lea.vmem [#allocation2], %s264
        %p266 = pneg %p139
        %p267 = pneg %p136
        %p268 = pneg %p171
        %p269 = pneg %p168
        %s270 = smul.u32 16, %s25
        %p271 = scmp.lt.s32.totalorder %s24, 1
        %s272 = scalar_select %p271, %s24, 1
        %p273 = scmp.lt.s32.totalorder %s270, 15
        %s274 = scalar_select %p273, %s270, 15
        %p275 = scmp.lt.s32.totalorder %s26, 0
        %s276 = scalar_select %p275, %s26, 0
        %p277 = scmp.lt.s32.totalorder %s27, 0
        %s278 = scalar_select %p277, %s27, 0
        %s279 = sadd.s32 %s278, %s276
        %s280 = sadd.s32 %s279, %s274
        %s281 = smul.addr %s272, 16
        %s282 = sadd.s32 %s280, %s281
        %s283 = smul.addr %s282, 8
        %s284 = scalar_lea.vmem %s4, %s283
        %s285 = smul.u32 4, %s25
        %p286 = scmp.lt.s32.totalorder %s285, 3
        %s287 = scalar_select %p286, %s285, 3
        %s288 = smul.addr %s287, 4
        %s289 = scalar_lea.vmem %s0, %s288
        %s290 = smul.u32 4, %s25
        %s291 = smul.u32 4, %s25
        %s292 = smul.u32 2, %s26
        %s293 = smul.u32 16, %s25
        %p294 = scmp.lt.s32.totalorder %s24, 1
        %s295 = scalar_select %p294, %s24, 1
        %p296 = scmp.lt.s32.totalorder %s293, 15
        %s297 = scalar_select %p296, %s293, 15
        %p298 = scmp.lt.s32.totalorder %s26, 0
        %s299 = scalar_select %p298, %s26, 0
        %p300 = scmp.lt.s32.totalorder %s27, 0
        %s301 = scalar_select %p300, %s27, 0
        %s302 = sadd.s32 %s301, %s299
        %s303 = sadd.s32 %s302, %s297
        %s304 = smul.addr %s295, 16
        %s305 = sadd.s32 %s303, %s304
        %s306 = smul.addr %s305, 8
        %s307 = scalar_lea.vmem %s4, %s306
        %s308 = smul.u32 16, %s25
        %v309 = vld [vmem:[%s1] sm:$0xff]
        %s310 = scalar_lea.vmem %s1, 8
        %v311 = vld [vmem:[%s310] sm:$0xff]
        %v312 = vld [vmem:[%s2] sm:$0xff]
        %v313 = vld [vmem:[%s2 + $0x8] sm:$0xff]
        %s314 = scalar_lea.vmem %s2, 16
        %v315 = vld [vmem:[%s314] sm:$0xff]
        %v316 = vld [vmem:[%s314 + $0x8] sm:$0xff]
        %v317 = vld [vmem:[%s289] sm:$0xf]
        %v318 = vld [vmem:[%s289 + $0x4] sm:$0xf]
        %v319 = vld [vmem:[%s289 + $0x8] sm:$0xf]
        %v320 = vld [vmem:[%s289 + $0xc] sm:$0xf]
        %v321 = vld [vmem:[%s244] sm:$0xff]
        %v322 = vld [vmem:[%s244 + $0x8] sm:$0xff]
        %vm323 = vcmask 130048
        %v325 = vsel %vm323, %v309, 0
        %327 = vmatpush.msra.mxu0 0.0
        %328 = vmatpush.msra.mxu0 0.0
        %329 = vmatpush.msra.mxu0 0.0
        %330 = vmatpush.msra.mxu0 0.0
        %331 = vmatpush.msra.mxu0 0.0
        %332 = vmatpush.msra.mxu0 0.0
        %333 = vmatpush.msra.mxu0 0.0
        %334 = vmatpush.msra.mxu0 0.0
        %335 = vmatpush.msra.mxu0 0.0
        %336 = vmatpush.msra.mxu0 0.0
        %337 = vmatpush.msra.mxu0 0.0
        %338 = vmatpush.msra.mxu0 0.0
        %339 = vmatpush.msra.mxu0 0.0
        %340 = vmatpush.msra.mxu0 0.0
        %v341 = vand.u32 %v322, 4294901760
        %342 = vmatpush.msra.mxu0 %v341
        %v343 = vand.u32 %v321, 4294901760
        %344 = vmatpush.msra.mxu0 %v343
        %v345 = vand.u32 %v325, 4294901760
        %v346 = vsub.f32 %v325, %v345
        %v347 = vand.u32 %v346, 4294901760
        %v348 = vsub.f32 %v346, %v347
        %v349 = vand.u32 %v348, 4294901760
        %350 = vmatmul.f32.gmra.mxu0 %v349
        %v351 = vpop.f32.mrf.mxu0
        %v352 = vadd.f32 0.0, %v351
        %353 = vdwg.mxu0
        %354 = vmatpush.msra.mxu0 0.0
        %355 = vmatpush.msra.mxu0 0.0
        %356 = vmatpush.msra.mxu0 0.0
        %357 = vmatpush.msra.mxu0 0.0
        %358 = vmatpush.msra.mxu0 0.0
        %359 = vmatpush.msra.mxu0 0.0
        %360 = vmatpush.msra.mxu0 0.0
        %361 = vmatpush.msra.mxu0 0.0
        %362 = vmatpush.msra.mxu0 0.0
        %363 = vmatpush.msra.mxu0 0.0
        %364 = vmatpush.msra.mxu0 0.0
        %365 = vmatpush.msra.mxu0 0.0
        %366 = vmatpush.msra.mxu0 0.0
        %367 = vmatpush.msra.mxu0 0.0
        %v368 = vand.u32 %v322, 4294901760
        %v369 = vsub.f32 %v322, %v368
        %v370 = vand.u32 %v369, 4294901760
        %v371 = vsub.f32 %v369, %v370
        %v372 = vand.u32 %v371, 4294901760
        %373 = vmatpush.msra.mxu0 %v372
        %v374 = vand.u32 %v321, 4294901760
        %v375 = vsub.f32 %v321, %v374
        %v376 = vand.u32 %v375, 4294901760
        %v377 = vsub.f32 %v375, %v376
        %v378 = vand.u32 %v377, 4294901760
        %379 = vmatpush.msra.mxu0 %v378
        %v380 = vand.u32 %v325, 4294901760
        %381 = vmatmul.f32.gmra.mxu0 %v380
        %v382 = vpop.f32.mrf.mxu0
        %v383 = vadd.f32 %v352, %v382
        %384 = vdwg.mxu0
        %385 = vmatpush.msra.mxu0 0.0
        %386 = vmatpush.msra.mxu0 0.0
        %387 = vmatpush.msra.mxu0 0.0
        %388 = vmatpush.msra.mxu0 0.0
        %389 = vmatpush.msra.mxu0 0.0
        %390 = vmatpush.msra.mxu0 0.0
        %391 = vmatpush.msra.mxu0 0.0
        %392 = vmatpush.msra.mxu0 0.0
        %393 = vmatpush.msra.mxu0 0.0
        %394 = vmatpush.msra.mxu0 0.0
        %395 = vmatpush.msra.mxu0 0.0
        %396 = vmatpush.msra.mxu0 0.0
        %397 = vmatpush.msra.mxu0 0.0
        %398 = vmatpush.msra.mxu0 0.0
        %v399 = vand.u32 %v322, 4294901760
        %v400 = vsub.f32 %v322, %v399
        %401 = vmatpush.msra.mxu0 %v400
        %v402 = vand.u32 %v321, 4294901760
        %v403 = vsub.f32 %v321, %v402
        %404 = vmatpush.msra.mxu0 %v403
        %v405 = vand.u32 %v325, 4294901760
        %v406 = vsub.f32 %v325, %v405
        %407 = vmatmul.f32.gmra.mxu0 %v406
        %v408 = vpop.f32.mrf.mxu0
        %v409 = vadd.f32 %v383, %v408
        %410 = vdwg.mxu0
        %411 = vmatpush.msra.mxu0 0.0
        %412 = vmatpush.msra.mxu0 0.0
        %413 = vmatpush.msra.mxu0 0.0
        %414 = vmatpush.msra.mxu0 0.0
        %415 = vmatpush.msra.mxu0 0.0
        %416 = vmatpush.msra.mxu0 0.0
        %417 = vmatpush.msra.mxu0 0.0
        %418 = vmatpush.msra.mxu0 0.0
        %419 = vmatpush.msra.mxu0 0.0
        %420 = vmatpush.msra.mxu0 0.0
        %421 = vmatpush.msra.mxu0 0.0
        %422 = vmatpush.msra.mxu0 0.0
        %423 = vmatpush.msra.mxu0 0.0
        %424 = vmatpush.msra.mxu0 0.0
        %v425 = vand.u32 %v322, 4294901760
        %426 = vmatpush.msra.mxu0 %v425
        %v427 = vand.u32 %v321, 4294901760
        %428 = vmatpush.msra.mxu0 %v427
        %v429 = vand.u32 %v325, 4294901760
        %v430 = vsub.f32 %v325, %v429
        %v431 = vand.u32 %v430, 4294901760
        %432 = vmatmul.f32.gmra.mxu0 %v431
        %v433 = vpop.f32.mrf.mxu0
        %v434 = vadd.f32 %v409, %v433
        %435 = vdwg.mxu0
        %436 = vmatpush.msra.mxu0 0.0
        %437 = vmatpush.msra.mxu0 0.0
        %438 = vmatpush.msra.mxu0 0.0
        %439 = vmatpush.msra.mxu0 0.0
        %440 = vmatpush.msra.mxu0 0.0
        %441 = vmatpush.msra.mxu0 0.0
        %442 = vmatpush.msra.mxu0 0.0
        %443 = vmatpush.msra.mxu0 0.0
        %444 = vmatpush.msra.mxu0 0.0
        %445 = vmatpush.msra.mxu0 0.0
        %446 = vmatpush.msra.mxu0 0.0
        %447 = vmatpush.msra.mxu0 0.0
        %448 = vmatpush.msra.mxu0 0.0
        %449 = vmatpush.msra.mxu0 0.0
        %v450 = vand.u32 %v322, 4294901760
        %v451 = vsub.f32 %v322, %v450
        %v452 = vand.u32 %v451, 4294901760
        %453 = vmatpush.msra.mxu0 %v452
        %v454 = vand.u32 %v321, 4294901760
        %v455 = vsub.f32 %v321, %v454
        %v456 = vand.u32 %v455, 4294901760
        %457 = vmatpush.msra.mxu0 %v456
        %v458 = vand.u32 %v325, 4294901760
        %459 = vmatmul.f32.gmra.mxu0 %v458
        %v460 = vpop.f32.mrf.mxu0
        %v461 = vadd.f32 %v434, %v460
        %462 = vdwg.mxu0
        %463 = vmatpush.msra.mxu0 0.0
        %464 = vmatpush.msra.mxu0 0.0
        %465 = vmatpush.msra.mxu0 0.0
        %466 = vmatpush.msra.mxu0 0.0
        %467 = vmatpush.msra.mxu0 0.0
        %468 = vmatpush.msra.mxu0 0.0
        %469 = vmatpush.msra.mxu0 0.0
        %470 = vmatpush.msra.mxu0 0.0
        %471 = vmatpush.msra.mxu0 0.0
        %472 = vmatpush.msra.mxu0 0.0
        %473 = vmatpush.msra.mxu0 0.0
        %474 = vmatpush.msra.mxu0 0.0
        %475 = vmatpush.msra.mxu0 0.0
        %476 = vmatpush.msra.mxu0 0.0
        %v477 = vand.u32 %v322, 4294901760
        %478 = vmatpush.msra.mxu0 %v477
        %v479 = vand.u32 %v321, 4294901760
        %480 = vmatpush.msra.mxu0 %v479
        %v481 = vand.u32 %v325, 4294901760
        %482 = vmatmul.f32.gmra.mxu0 %v481
        %v483 = vpop.f32.mrf.mxu0
        %v484 = vadd.f32 %v461, %v483
        %485 = vdwg.mxu0
        %v487 = vsel %vm323, %v311, 0
        %489 = vmatpush.msra.mxu0 0.0
        %490 = vmatpush.msra.mxu0 0.0
        %491 = vmatpush.msra.mxu0 0.0
        %492 = vmatpush.msra.mxu0 0.0
        %493 = vmatpush.msra.mxu0 0.0
        %494 = vmatpush.msra.mxu0 0.0
        %495 = vmatpush.msra.mxu0 0.0
        %496 = vmatpush.msra.mxu0 0.0
        %497 = vmatpush.msra.mxu0 0.0
        %498 = vmatpush.msra.mxu0 0.0
        %499 = vmatpush.msra.mxu0 0.0
        %500 = vmatpush.msra.mxu0 0.0
        %501 = vmatpush.msra.mxu0 0.0
        %502 = vmatpush.msra.mxu0 0.0
        %v503 = vand.u32 %v322, 4294901760
        %504 = vmatpush.msra.mxu0 %v503
        %v505 = vand.u32 %v321, 4294901760
        %506 = vmatpush.msra.mxu0 %v505
        %v507 = vand.u32 %v487, 4294901760
        %v508 = vsub.f32 %v487, %v507
        %v509 = vand.u32 %v508, 4294901760
        %v510 = vsub.f32 %v508, %v509
        %v511 = vand.u32 %v510, 4294901760
        %512 = vmatmul.f32.gmra.mxu0 %v511
        %v513 = vpop.f32.mrf.mxu0
        %v514 = vadd.f32 0.0, %v513
        %515 = vdwg.mxu0
        %516 = vmatpush.msra.mxu0 0.0
        %517 = vmatpush.msra.mxu0 0.0
        %518 = vmatpush.msra.mxu0 0.0
        %519 = vmatpush.msra.mxu0 0.0
        %520 = vmatpush.msra.mxu0 0.0
        %521 = vmatpush.msra.mxu0 0.0
        %522 = vmatpush.msra.mxu0 0.0
        %523 = vmatpush.msra.mxu0 0.0
        %524 = vmatpush.msra.mxu0 0.0
        %525 = vmatpush.msra.mxu0 0.0
        %526 = vmatpush.msra.mxu0 0.0
        %527 = vmatpush.msra.mxu0 0.0
        %528 = vmatpush.msra.mxu0 0.0
        %529 = vmatpush.msra.mxu0 0.0
        %v530 = vand.u32 %v322, 4294901760
        %v531 = vsub.f32 %v322, %v530
        %v532 = vand.u32 %v531, 4294901760
        %v533 = vsub.f32 %v531, %v532
        %v534 = vand.u32 %v533, 4294901760
        %535 = vmatpush.msra.mxu0 %v534
        %v536 = vand.u32 %v321, 4294901760
        %v537 = vsub.f32 %v321, %v536
        %v538 = vand.u32 %v537, 4294901760
        %v539 = vsub.f32 %v537, %v538
        %v540 = vand.u32 %v539, 4294901760
        %541 = vmatpush.msra.mxu0 %v540
        %v542 = vand.u32 %v487, 4294901760
        %543 = vmatmul.f32.gmra.mxu0 %v542
        %v544 = vpop.f32.mrf.mxu0
        %v545 = vadd.f32 %v514, %v544
        %546 = vdwg.mxu0
        %547 = vmatpush.msra.mxu0 0.0
        %548 = vmatpush.msra.mxu0 0.0
        %549 = vmatpush.msra.mxu0 0.0
        %550 = vmatpush.msra.mxu0 0.0
        %551 = vmatpush.msra.mxu0 0.0
        %552 = vmatpush.msra.mxu0 0.0
        %553 = vmatpush.msra.mxu0 0.0
        %554 = vmatpush.msra.mxu0 0.0
        %555 = vmatpush.msra.mxu0 0.0
        %556 = vmatpush.msra.mxu0 0.0
        %557 = vmatpush.msra.mxu0 0.0
        %558 = vmatpush.msra.mxu0 0.0
        %559 = vmatpush.msra.mxu0 0.0
        %560 = vmatpush.msra.mxu0 0.0
        %v561 = vand.u32 %v322, 4294901760
        %v562 = vsub.f32 %v322, %v561
        %563 = vmatpush.msra.mxu0 %v562
        %v564 = vand.u32 %v321, 4294901760
        %v565 = vsub.f32 %v321, %v564
        %566 = vmatpush.msra.mxu0 %v565
        %v567 = vand.u32 %v487, 4294901760
        %v568 = vsub.f32 %v487, %v567
        %569 = vmatmul.f32.gmra.mxu0 %v568
        %v570 = vpop.f32.mrf.mxu0
        %v571 = vadd.f32 %v545, %v570
        %572 = vdwg.mxu0
        %573 = vmatpush.msra.mxu0 0.0
        %574 = vmatpush.msra.mxu0 0.0
        %575 = vmatpush.msra.mxu0 0.0
        %576 = vmatpush.msra.mxu0 0.0
        %577 = vmatpush.msra.mxu0 0.0
        %578 = vmatpush.msra.mxu0 0.0
        %579 = vmatpush.msra.mxu0 0.0
        %580 = vmatpush.msra.mxu0 0.0
        %581 = vmatpush.msra.mxu0 0.0
        %582 = vmatpush.msra.mxu0 0.0
        %583 = vmatpush.msra.mxu0 0.0
        %584 = vmatpush.msra.mxu0 0.0
        %585 = vmatpush.msra.mxu0 0.0
        %586 = vmatpush.msra.mxu0 0.0
        %v587 = vand.u32 %v322, 4294901760
        %588 = vmatpush.msra.mxu0 %v587
        %v589 = vand.u32 %v321, 4294901760
        %590 = vmatpush.msra.mxu0 %v589
        %v591 = vand.u32 %v487, 4294901760
        %v592 = vsub.f32 %v487, %v591
        %v593 = vand.u32 %v592, 4294901760
        %594 = vmatmul.f32.gmra.mxu0 %v593
        %v595 = vpop.f32.mrf.mxu0
        %v596 = vadd.f32 %v571, %v595
        %597 = vdwg.mxu0
        %598 = vmatpush.msra.mxu0 0.0
        %599 = vmatpush.msra.mxu0 0.0
        %600 = vmatpush.msra.mxu0 0.0
        %601 = vmatpush.msra.mxu0 0.0
        %602 = vmatpush.msra.mxu0 0.0
        %603 = vmatpush.msra.mxu0 0.0
        %604 = vmatpush.msra.mxu0 0.0
        %605 = vmatpush.msra.mxu0 0.0
        %606 = vmatpush.msra.mxu0 0.0
        %607 = vmatpush.msra.mxu0 0.0
        %608 = vmatpush.msra.mxu0 0.0
        %609 = vmatpush.msra.mxu0 0.0
        %610 = vmatpush.msra.mxu0 0.0
        %611 = vmatpush.msra.mxu0 0.0
        %v612 = vand.u32 %v322, 4294901760
        %v613 = vsub.f32 %v322, %v612
        %v614 = vand.u32 %v613, 4294901760
        %615 = vmatpush.msra.mxu0 %v614
        %v616 = vand.u32 %v321, 4294901760
        %v617 = vsub.f32 %v321, %v616
        %v618 = vand.u32 %v617, 4294901760
        %619 = vmatpush.msra.mxu0 %v618
        %v620 = vand.u32 %v487, 4294901760
        %621 = vmatmul.f32.gmra.mxu0 %v620
        %v622 = vpop.f32.mrf.mxu0
        %v623 = vadd.f32 %v596, %v622
        %624 = vdwg.mxu0
        %625 = vmatpush.msra.mxu0 0.0
        %626 = vmatpush.msra.mxu0 0.0
        %627 = vmatpush.msra.mxu0 0.0
        %628 = vmatpush.msra.mxu0 0.0
        %629 = vmatpush.msra.mxu0 0.0
        %630 = vmatpush.msra.mxu0 0.0
        %631 = vmatpush.msra.mxu0 0.0
        %632 = vmatpush.msra.mxu0 0.0
        %633 = vmatpush.msra.mxu0 0.0
        %634 = vmatpush.msra.mxu0 0.0
        %635 = vmatpush.msra.mxu0 0.0
        %636 = vmatpush.msra.mxu0 0.0
        %637 = vmatpush.msra.mxu0 0.0
        %638 = vmatpush.msra.mxu0 0.0
        %v639 = vand.u32 %v322, 4294901760
        %640 = vmatpush.msra.mxu0 %v639
        %v641 = vand.u32 %v321, 4294901760
        %642 = vmatpush.msra.mxu0 %v641
        %v643 = vand.u32 %v487, 4294901760
        %644 = vmatmul.f32.gmra.mxu0 %v643
        %v645 = vpop.f32.mrf.mxu0
        %v646 = vadd.f32 %v623, %v645
        %647 = vdwg.mxu0
        %v649 = vsel %vm323, %v484, 0
        %651 = vmatpush.msra.mxu0 0.0
        %652 = vmatpush.msra.mxu0 0.0
        %653 = vmatpush.msra.mxu0 0.0
        %654 = vmatpush.msra.mxu0 0.0
        %655 = vmatpush.msra.mxu0 0.0
        %656 = vmatpush.msra.mxu0 0.0
        %657 = vmatpush.msra.mxu0 0.0
        %658 = vmatpush.msra.mxu0 0.0
        %659 = vmatpush.msra.mxu0 0.0
        %660 = vmatpush.msra.mxu0 0.0
        %661 = vmatpush.msra.mxu0 0.0
        %662 = vmatpush.msra.mxu0 0.0
        %663 = vmatpush.msra.mxu0 0.0
        %664 = vmatpush.msra.mxu0 0.0
        %v665 = vand.u32 %v313, 4294901760
        %666 = vmatpush.msra.mxu0 %v665
        %v667 = vand.u32 %v312, 4294901760
        %668 = vmatpush.msra.mxu0 %v667
        %v669 = vand.u32 %v649, 4294901760
        %v670 = vsub.f32 %v649, %v669
        %v671 = vand.u32 %v670, 4294901760
        %v672 = vsub.f32 %v670, %v671
        %v673 = vand.u32 %v672, 4294901760
        %674 = vmatmul.f32.gmra.mxu0 %v673
        %v675 = vpop.f32.mrf.mxu0
        %v676 = vadd.f32 0.0, %v675
        %677 = vdwg.mxu0
        %678 = vmatpush.msra.mxu0 0.0
        %679 = vmatpush.msra.mxu0 0.0
        %680 = vmatpush.msra.mxu0 0.0
        %681 = vmatpush.msra.mxu0 0.0
        %682 = vmatpush.msra.mxu0 0.0
        %683 = vmatpush.msra.mxu0 0.0
        %684 = vmatpush.msra.mxu0 0.0
        %685 = vmatpush.msra.mxu0 0.0
        %686 = vmatpush.msra.mxu0 0.0
        %687 = vmatpush.msra.mxu0 0.0
        %688 = vmatpush.msra.mxu0 0.0
        %689 = vmatpush.msra.mxu0 0.0
        %690 = vmatpush.msra.mxu0 0.0
        %691 = vmatpush.msra.mxu0 0.0
        %v692 = vand.u32 %v313, 4294901760
        %v693 = vsub.f32 %v313, %v692
        %v694 = vand.u32 %v693, 4294901760
        %v695 = vsub.f32 %v693, %v694
        %v696 = vand.u32 %v695, 4294901760
        %697 = vmatpush.msra.mxu0 %v696
        %v698 = vand.u32 %v312, 4294901760
        %v699 = vsub.f32 %v312, %v698
        %v700 = vand.u32 %v699, 4294901760
        %v701 = vsub.f32 %v699, %v700
        %v702 = vand.u32 %v701, 4294901760
        %703 = vmatpush.msra.mxu0 %v702
        %v704 = vand.u32 %v649, 4294901760
        %705 = vmatmul.f32.gmra.mxu0 %v704
        %v706 = vpop.f32.mrf.mxu0
        %v707 = vadd.f32 %v676, %v706
        %708 = vdwg.mxu0
        %709 = vmatpush.msra.mxu0 0.0
        %710 = vmatpush.msra.mxu0 0.0
        %711 = vmatpush.msra.mxu0 0.0
        %712 = vmatpush.msra.mxu0 0.0
        %713 = vmatpush.msra.mxu0 0.0
        %714 = vmatpush.msra.mxu0 0.0
        %715 = vmatpush.msra.mxu0 0.0
        %716 = vmatpush.msra.mxu0 0.0
        %717 = vmatpush.msra.mxu0 0.0
        %718 = vmatpush.msra.mxu0 0.0
        %719 = vmatpush.msra.mxu0 0.0
        %720 = vmatpush.msra.mxu0 0.0
        %721 = vmatpush.msra.mxu0 0.0
        %722 = vmatpush.msra.mxu0 0.0
        %v723 = vand.u32 %v313, 4294901760
        %v724 = vsub.f32 %v313, %v723
        %725 = vmatpush.msra.mxu0 %v724
        %v726 = vand.u32 %v312, 4294901760
        %v727 = vsub.f32 %v312, %v726
        %728 = vmatpush.msra.mxu0 %v727
        %v729 = vand.u32 %v649, 4294901760
        %v730 = vsub.f32 %v649, %v729
        %731 = vmatmul.f32.gmra.mxu0 %v730
        %v732 = vpop.f32.mrf.mxu0
        %v733 = vadd.f32 %v707, %v732
        %734 = vdwg.mxu0
        %735 = vmatpush.msra.mxu0 0.0
        %736 = vmatpush.msra.mxu0 0.0
        %737 = vmatpush.msra.mxu0 0.0
        %738 = vmatpush.msra.mxu0 0.0
        %739 = vmatpush.msra.mxu0 0.0
        %740 = vmatpush.msra.mxu0 0.0
        %741 = vmatpush.msra.mxu0 0.0
        %742 = vmatpush.msra.mxu0 0.0
        %743 = vmatpush.msra.mxu0 0.0
        %744 = vmatpush.msra.mxu0 0.0
        %745 = vmatpush.msra.mxu0 0.0
        %746 = vmatpush.msra.mxu0 0.0
        %747 = vmatpush.msra.mxu0 0.0
        %748 = vmatpush.msra.mxu0 0.0
        %v749 = vand.u32 %v313, 4294901760
        %750 = vmatpush.msra.mxu0 %v749
        %v751 = vand.u32 %v312, 4294901760
        %752 = vmatpush.msra.mxu0 %v751
        %v753 = vand.u32 %v649, 4294901760
        %v754 = vsub.f32 %v649, %v753
        %v755 = vand.u32 %v754, 4294901760
        %756 = vmatmul.f32.gmra.mxu0 %v755
        %v757 = vpop.f32.mrf.mxu0
        %v758 = vadd.f32 %v733, %v757
        %759 = vdwg.mxu0
        %760 = vmatpush.msra.mxu0 0.0
        %761 = vmatpush.msra.mxu0 0.0
        %762 = vmatpush.msra.mxu0 0.0
        %763 = vmatpush.msra.mxu0 0.0
        %764 = vmatpush.msra.mxu0 0.0
        %765 = vmatpush.msra.mxu0 0.0
        %766 = vmatpush.msra.mxu0 0.0
        %767 = vmatpush.msra.mxu0 0.0
        %768 = vmatpush.msra.mxu0 0.0
        %769 = vmatpush.msra.mxu0 0.0
        %770 = vmatpush.msra.mxu0 0.0
        %771 = vmatpush.msra.mxu0 0.0
        %772 = vmatpush.msra.mxu0 0.0
        %773 = vmatpush.msra.mxu0 0.0
        %v774 = vand.u32 %v313, 4294901760
        %v775 = vsub.f32 %v313, %v774
        %v776 = vand.u32 %v775, 4294901760
        %777 = vmatpush.msra.mxu0 %v776
        %v778 = vand.u32 %v312, 4294901760
        %v779 = vsub.f32 %v312, %v778
        %v780 = vand.u32 %v779, 4294901760
        %781 = vmatpush.msra.mxu0 %v780
        %v782 = vand.u32 %v649, 4294901760
        %783 = vmatmul.f32.gmra.mxu0 %v782
        %v784 = vpop.f32.mrf.mxu0
        %v785 = vadd.f32 %v758, %v784
        %786 = vdwg.mxu0
        %787 = vmatpush.msra.mxu0 0.0
        %788 = vmatpush.msra.mxu0 0.0
        %789 = vmatpush.msra.mxu0 0.0
        %790 = vmatpush.msra.mxu0 0.0
        %791 = vmatpush.msra.mxu0 0.0
        %792 = vmatpush.msra.mxu0 0.0
        %793 = vmatpush.msra.mxu0 0.0
        %794 = vmatpush.msra.mxu0 0.0
        %795 = vmatpush.msra.mxu0 0.0
        %796 = vmatpush.msra.mxu0 0.0
        %797 = vmatpush.msra.mxu0 0.0
        %798 = vmatpush.msra.mxu0 0.0
        %799 = vmatpush.msra.mxu0 0.0
        %800 = vmatpush.msra.mxu0 0.0
        %v801 = vand.u32 %v313, 4294901760
        %802 = vmatpush.msra.mxu0 %v801
        %v803 = vand.u32 %v312, 4294901760
        %804 = vmatpush.msra.mxu0 %v803
        %v805 = vand.u32 %v649, 4294901760
        %806 = vmatmul.f32.gmra.mxu0 %v805
        %v807 = vpop.f32.mrf.mxu0
        %v808 = vadd.f32 %v785, %v807
        %809 = vdwg.mxu0
        %810 = vmatpush.msra.mxu0 0.0
        %811 = vmatpush.msra.mxu0 0.0
        %812 = vmatpush.msra.mxu0 0.0
        %813 = vmatpush.msra.mxu0 0.0
        %814 = vmatpush.msra.mxu0 0.0
        %815 = vmatpush.msra.mxu0 0.0
        %816 = vmatpush.msra.mxu0 0.0
        %817 = vmatpush.msra.mxu0 0.0
        %818 = vmatpush.msra.mxu0 0.0
        %819 = vmatpush.msra.mxu0 0.0
        %820 = vmatpush.msra.mxu0 0.0
        %821 = vmatpush.msra.mxu0 0.0
        %822 = vmatpush.msra.mxu0 0.0
        %823 = vmatpush.msra.mxu0 0.0
        %v824 = vand.u32 %v316, 4294901760
        %825 = vmatpush.msra.mxu0 %v824
        %v826 = vand.u32 %v315, 4294901760
        %827 = vmatpush.msra.mxu0 %v826
        %v828 = vand.u32 %v649, 4294901760
        %v829 = vsub.f32 %v649, %v828
        %v830 = vand.u32 %v829, 4294901760
        %v831 = vsub.f32 %v829, %v830
        %v832 = vand.u32 %v831, 4294901760
        %833 = vmatmul.f32.gmra.mxu0 %v832
        %v834 = vpop.f32.mrf.mxu0
        %v835 = vadd.f32 0.0, %v834
        %836 = vdwg.mxu0
        %837 = vmatpush.msra.mxu0 0.0
        %838 = vmatpush.msra.mxu0 0.0
        %839 = vmatpush.msra.mxu0 0.0
        %840 = vmatpush.msra.mxu0 0.0
        %841 = vmatpush.msra.mxu0 0.0
        %842 = vmatpush.msra.mxu0 0.0
        %843 = vmatpush.msra.mxu0 0.0
        %844 = vmatpush.msra.mxu0 0.0
        %845 = vmatpush.msra.mxu0 0.0
        %846 = vmatpush.msra.mxu0 0.0
        %847 = vmatpush.msra.mxu0 0.0
        %848 = vmatpush.msra.mxu0 0.0
        %849 = vmatpush.msra.mxu0 0.0
        %850 = vmatpush.msra.mxu0 0.0
        %v851 = vand.u32 %v316, 4294901760
        %v852 = vsub.f32 %v316, %v851
        %v853 = vand.u32 %v852, 4294901760
        %v854 = vsub.f32 %v852, %v853
        %v855 = vand.u32 %v854, 4294901760
        %856 = vmatpush.msra.mxu0 %v855
        %v857 = vand.u32 %v315, 4294901760
        %v858 = vsub.f32 %v315, %v857
        %v859 = vand.u32 %v858, 4294901760
        %v860 = vsub.f32 %v858, %v859
        %v861 = vand.u32 %v860, 4294901760
        %862 = vmatpush.msra.mxu0 %v861
        %v863 = vand.u32 %v649, 4294901760
        %864 = vmatmul.f32.gmra.mxu0 %v863
        %v865 = vpop.f32.mrf.mxu0
        %v866 = vadd.f32 %v835, %v865
        %867 = vdwg.mxu0
        %868 = vmatpush.msra.mxu0 0.0
        %869 = vmatpush.msra.mxu0 0.0
        %870 = vmatpush.msra.mxu0 0.0
        %871 = vmatpush.msra.mxu0 0.0
        %872 = vmatpush.msra.mxu0 0.0
        %873 = vmatpush.msra.mxu0 0.0
        %874 = vmatpush.msra.mxu0 0.0
        %875 = vmatpush.msra.mxu0 0.0
        %876 = vmatpush.msra.mxu0 0.0
        %877 = vmatpush.msra.mxu0 0.0
        %878 = vmatpush.msra.mxu0 0.0
        %879 = vmatpush.msra.mxu0 0.0
        %880 = vmatpush.msra.mxu0 0.0
        %881 = vmatpush.msra.mxu0 0.0
        %v882 = vand.u32 %v316, 4294901760
        %v883 = vsub.f32 %v316, %v882
        %884 = vmatpush.msra.mxu0 %v883
        %v885 = vand.u32 %v315, 4294901760
        %v886 = vsub.f32 %v315, %v885
        %887 = vmatpush.msra.mxu0 %v886
        %v888 = vand.u32 %v649, 4294901760
        %v889 = vsub.f32 %v649, %v888
        %890 = vmatmul.f32.gmra.mxu0 %v889
        %v891 = vpop.f32.mrf.mxu0
        %v892 = vadd.f32 %v866, %v891
        %893 = vdwg.mxu0
        %894 = vmatpush.msra.mxu0 0.0
        %895 = vmatpush.msra.mxu0 0.0
        %896 = vmatpush.msra.mxu0 0.0
        %897 = vmatpush.msra.mxu0 0.0
        %898 = vmatpush.msra.mxu0 0.0
        %899 = vmatpush.msra.mxu0 0.0
        %900 = vmatpush.msra.mxu0 0.0
        %901 = vmatpush.msra.mxu0 0.0
        %902 = vmatpush.msra.mxu0 0.0
        %903 = vmatpush.msra.mxu0 0.0
        %904 = vmatpush.msra.mxu0 0.0
        %905 = vmatpush.msra.mxu0 0.0
        %906 = vmatpush.msra.mxu0 0.0
        %907 = vmatpush.msra.mxu0 0.0
        %v908 = vand.u32 %v316, 4294901760
        %909 = vmatpush.msra.mxu0 %v908
        %v910 = vand.u32 %v315, 4294901760
        %911 = vmatpush.msra.mxu0 %v910
        %v912 = vand.u32 %v649, 4294901760
        %v913 = vsub.f32 %v649, %v912
        %v914 = vand.u32 %v913, 4294901760
        %915 = vmatmul.f32.gmra.mxu0 %v914
        %v916 = vpop.f32.mrf.mxu0
        %v917 = vadd.f32 %v892, %v916
        %918 = vdwg.mxu0
        %919 = vmatpush.msra.mxu0 0.0
        %920 = vmatpush.msra.mxu0 0.0
        %921 = vmatpush.msra.mxu0 0.0
        %922 = vmatpush.msra.mxu0 0.0
        %923 = vmatpush.msra.mxu0 0.0
        %924 = vmatpush.msra.mxu0 0.0
        %925 = vmatpush.msra.mxu0 0.0
        %926 = vmatpush.msra.mxu0 0.0
        %927 = vmatpush.msra.mxu0 0.0
        %928 = vmatpush.msra.mxu0 0.0
        %929 = vmatpush.msra.mxu0 0.0
        %930 = vmatpush.msra.mxu0 0.0
        %931 = vmatpush.msra.mxu0 0.0
        %932 = vmatpush.msra.mxu0 0.0
        %v933 = vand.u32 %v316, 4294901760
        %v934 = vsub.f32 %v316, %v933
        %v935 = vand.u32 %v934, 4294901760
        %936 = vmatpush.msra.mxu0 %v935
        %v937 = vand.u32 %v315, 4294901760
        %v938 = vsub.f32 %v315, %v937
        %v939 = vand.u32 %v938, 4294901760
        %940 = vmatpush.msra.mxu0 %v939
        %v941 = vand.u32 %v649, 4294901760
        %942 = vmatmul.f32.gmra.mxu0 %v941
        %v943 = vpop.f32.mrf.mxu0
        %v944 = vadd.f32 %v917, %v943
        %945 = vdwg.mxu0
        %946 = vmatpush.msra.mxu0 0.0
        %947 = vmatpush.msra.mxu0 0.0
        %948 = vmatpush.msra.mxu0 0.0
        %949 = vmatpush.msra.mxu0 0.0
        %950 = vmatpush.msra.mxu0 0.0
        %951 = vmatpush.msra.mxu0 0.0
        %952 = vmatpush.msra.mxu0 0.0
        %953 = vmatpush.msra.mxu0 0.0
        %954 = vmatpush.msra.mxu0 0.0
        %955 = vmatpush.msra.mxu0 0.0
        %956 = vmatpush.msra.mxu0 0.0
        %957 = vmatpush.msra.mxu0 0.0
        %958 = vmatpush.msra.mxu0 0.0
        %959 = vmatpush.msra.mxu0 0.0
        %v960 = vand.u32 %v316, 4294901760
        %961 = vmatpush.msra.mxu0 %v960
        %v962 = vand.u32 %v315, 4294901760
        %963 = vmatpush.msra.mxu0 %v962
        %v964 = vand.u32 %v649, 4294901760
        %965 = vmatmul.f32.gmra.mxu0 %v964
        %v966 = vpop.f32.mrf.mxu0
        %v967 = vadd.f32 %v944, %v966
        %968 = vdwg.mxu0
        %v970 = vsel %vm323, %v646, 0
        %972 = vmatpush.msra.mxu0 0.0
        %973 = vmatpush.msra.mxu0 0.0
        %974 = vmatpush.msra.mxu0 0.0
        %975 = vmatpush.msra.mxu0 0.0
        %976 = vmatpush.msra.mxu0 0.0
        %977 = vmatpush.msra.mxu0 0.0
        %978 = vmatpush.msra.mxu0 0.0
        %979 = vmatpush.msra.mxu0 0.0
        %980 = vmatpush.msra.mxu0 0.0
        %981 = vmatpush.msra.mxu0 0.0
        %982 = vmatpush.msra.mxu0 0.0
        %983 = vmatpush.msra.mxu0 0.0
        %984 = vmatpush.msra.mxu0 0.0
        %985 = vmatpush.msra.mxu0 0.0
        %v986 = vand.u32 %v313, 4294901760
        %987 = vmatpush.msra.mxu0 %v986
        %v988 = vand.u32 %v312, 4294901760
        %989 = vmatpush.msra.mxu0 %v988
        %v990 = vand.u32 %v970, 4294901760
        %v991 = vsub.f32 %v970, %v990
        %v992 = vand.u32 %v991, 4294901760
        %v993 = vsub.f32 %v991, %v992
        %v994 = vand.u32 %v993, 4294901760
        %995 = vmatmul.f32.gmra.mxu0 %v994
        %v996 = vpop.f32.mrf.mxu0
        %v997 = vadd.f32 0.0, %v996
        %998 = vdwg.mxu0
        %999 = vmatpush.msra.mxu0 0.0
        %1000 = vmatpush.msra.mxu0 0.0
        %1001 = vmatpush.msra.mxu0 0.0
        %1002 = vmatpush.msra.mxu0 0.0
        %1003 = vmatpush.msra.mxu0 0.0
        %1004 = vmatpush.msra.mxu0 0.0
        %1005 = vmatpush.msra.mxu0 0.0
        %1006 = vmatpush.msra.mxu0 0.0
        %1007 = vmatpush.msra.mxu0 0.0
        %1008 = vmatpush.msra.mxu0 0.0
        %1009 = vmatpush.msra.mxu0 0.0
        %1010 = vmatpush.msra.mxu0 0.0
        %1011 = vmatpush.msra.mxu0 0.0
        %1012 = vmatpush.msra.mxu0 0.0
        %v1013 = vand.u32 %v313, 4294901760
        %v1014 = vsub.f32 %v313, %v1013
        %v1015 = vand.u32 %v1014, 4294901760
        %v1016 = vsub.f32 %v1014, %v1015
        %v1017 = vand.u32 %v1016, 4294901760
        %1018 = vmatpush.msra.mxu0 %v1017
        %v1019 = vand.u32 %v312, 4294901760
        %v1020 = vsub.f32 %v312, %v1019
        %v1021 = vand.u32 %v1020, 4294901760
        %v1022 = vsub.f32 %v1020, %v1021
        %v1023 = vand.u32 %v1022, 4294901760
        %1024 = vmatpush.msra.mxu0 %v1023
        %v1025 = vand.u32 %v970, 4294901760
        %1026 = vmatmul.f32.gmra.mxu0 %v1025
        %v1027 = vpop.f32.mrf.mxu0
        %v1028 = vadd.f32 %v997, %v1027
        %1029 = vdwg.mxu0
        %1030 = vmatpush.msra.mxu0 0.0
        %1031 = vmatpush.msra.mxu0 0.0
        %1032 = vmatpush.msra.mxu0 0.0
        %1033 = vmatpush.msra.mxu0 0.0
        %1034 = vmatpush.msra.mxu0 0.0
        %1035 = vmatpush.msra.mxu0 0.0
        %1036 = vmatpush.msra.mxu0 0.0
        %1037 = vmatpush.msra.mxu0 0.0
        %1038 = vmatpush.msra.mxu0 0.0
        %1039 = vmatpush.msra.mxu0 0.0
        %1040 = vmatpush.msra.mxu0 0.0
        %1041 = vmatpush.msra.mxu0 0.0
        %1042 = vmatpush.msra.mxu0 0.0
        %1043 = vmatpush.msra.mxu0 0.0
        %v1044 = vand.u32 %v313, 4294901760
        %v1045 = vsub.f32 %v313, %v1044
        %1046 = vmatpush.msra.mxu0 %v1045
        %v1047 = vand.u32 %v312, 4294901760
        %v1048 = vsub.f32 %v312, %v1047
        %1049 = vmatpush.msra.mxu0 %v1048
        %v1050 = vand.u32 %v970, 4294901760
        %v1051 = vsub.f32 %v970, %v1050
        %1052 = vmatmul.f32.gmra.mxu0 %v1051
        %v1053 = vpop.f32.mrf.mxu0
        %v1054 = vadd.f32 %v1028, %v1053
        %1055 = vdwg.mxu0
        %1056 = vmatpush.msra.mxu0 0.0
        %1057 = vmatpush.msra.mxu0 0.0
        %1058 = vmatpush.msra.mxu0 0.0
        %1059 = vmatpush.msra.mxu0 0.0
        %1060 = vmatpush.msra.mxu0 0.0
        %1061 = vmatpush.msra.mxu0 0.0
        %1062 = vmatpush.msra.mxu0 0.0
        %1063 = vmatpush.msra.mxu0 0.0
        %1064 = vmatpush.msra.mxu0 0.0
        %1065 = vmatpush.msra.mxu0 0.0
        %1066 = vmatpush.msra.mxu0 0.0
        %1067 = vmatpush.msra.mxu0 0.0
        %1068 = vmatpush.msra.mxu0 0.0
        %1069 = vmatpush.msra.mxu0 0.0
        %v1070 = vand.u32 %v313, 4294901760
        %1071 = vmatpush.msra.mxu0 %v1070
        %v1072 = vand.u32 %v312, 4294901760
        %1073 = vmatpush.msra.mxu0 %v1072
        %v1074 = vand.u32 %v970, 4294901760
        %v1075 = vsub.f32 %v970, %v1074
        %v1076 = vand.u32 %v1075, 4294901760
        %1077 = vmatmul.f32.gmra.mxu0 %v1076
        %v1078 = vpop.f32.mrf.mxu0
        %v1079 = vadd.f32 %v1054, %v1078
        %1080 = vdwg.mxu0
        %1081 = vmatpush.msra.mxu0 0.0
        %1082 = vmatpush.msra.mxu0 0.0
        %1083 = vmatpush.msra.mxu0 0.0
        %1084 = vmatpush.msra.mxu0 0.0
        %1085 = vmatpush.msra.mxu0 0.0
        %1086 = vmatpush.msra.mxu0 0.0
        %1087 = vmatpush.msra.mxu0 0.0
        %1088 = vmatpush.msra.mxu0 0.0
        %1089 = vmatpush.msra.mxu0 0.0
        %1090 = vmatpush.msra.mxu0 0.0
        %1091 = vmatpush.msra.mxu0 0.0
        %1092 = vmatpush.msra.mxu0 0.0
        %1093 = vmatpush.msra.mxu0 0.0
        %1094 = vmatpush.msra.mxu0 0.0
        %v1095 = vand.u32 %v313, 4294901760
        %v1096 = vsub.f32 %v313, %v1095
        %v1097 = vand.u32 %v1096, 4294901760
        %1098 = vmatpush.msra.mxu0 %v1097
        %v1099 = vand.u32 %v312, 4294901760
        %v1100 = vsub.f32 %v312, %v1099
        %v1101 = vand.u32 %v1100, 4294901760
        %1102 = vmatpush.msra.mxu0 %v1101
        %v1103 = vand.u32 %v970, 4294901760
        %1104 = vmatmul.f32.gmra.mxu0 %v1103
        %v1105 = vpop.f32.mrf.mxu0
        %v1106 = vadd.f32 %v1079, %v1105
        %1107 = vdwg.mxu0
        %1108 = vmatpush.msra.mxu0 0.0
        %1109 = vmatpush.msra.mxu0 0.0
        %1110 = vmatpush.msra.mxu0 0.0
        %1111 = vmatpush.msra.mxu0 0.0
        %1112 = vmatpush.msra.mxu0 0.0
        %1113 = vmatpush.msra.mxu0 0.0
        %1114 = vmatpush.msra.mxu0 0.0
        %1115 = vmatpush.msra.mxu0 0.0
        %1116 = vmatpush.msra.mxu0 0.0
        %1117 = vmatpush.msra.mxu0 0.0
        %1118 = vmatpush.msra.mxu0 0.0
        %1119 = vmatpush.msra.mxu0 0.0
        %1120 = vmatpush.msra.mxu0 0.0
        %1121 = vmatpush.msra.mxu0 0.0
        %v1122 = vand.u32 %v313, 4294901760
        %1123 = vmatpush.msra.mxu0 %v1122
        %v1124 = vand.u32 %v312, 4294901760
        %1125 = vmatpush.msra.mxu0 %v1124
        %v1126 = vand.u32 %v970, 4294901760
        %1127 = vmatmul.f32.gmra.mxu0 %v1126
        %v1128 = vpop.f32.mrf.mxu0
        %v1129 = vadd.f32 %v1106, %v1128
        %1130 = vdwg.mxu0
        %1131 = vmatpush.msra.mxu0 0.0
        %1132 = vmatpush.msra.mxu0 0.0
        %1133 = vmatpush.msra.mxu0 0.0
        %1134 = vmatpush.msra.mxu0 0.0
        %1135 = vmatpush.msra.mxu0 0.0
        %1136 = vmatpush.msra.mxu0 0.0
        %1137 = vmatpush.msra.mxu0 0.0
        %1138 = vmatpush.msra.mxu0 0.0
        %1139 = vmatpush.msra.mxu0 0.0
        %1140 = vmatpush.msra.mxu0 0.0
        %1141 = vmatpush.msra.mxu0 0.0
        %1142 = vmatpush.msra.mxu0 0.0
        %1143 = vmatpush.msra.mxu0 0.0
        %1144 = vmatpush.msra.mxu0 0.0
        %v1145 = vand.u32 %v316, 4294901760
        %1146 = vmatpush.msra.mxu0 %v1145
        %v1147 = vand.u32 %v315, 4294901760
        %1148 = vmatpush.msra.mxu0 %v1147
        %v1149 = vand.u32 %v970, 4294901760
        %v1150 = vsub.f32 %v970, %v1149
        %v1151 = vand.u32 %v1150, 4294901760
        %v1152 = vsub.f32 %v1150, %v1151
        %v1153 = vand.u32 %v1152, 4294901760
        %1154 = vmatmul.f32.gmra.mxu0 %v1153
        %v1155 = vpop.f32.mrf.mxu0
        %v1156 = vadd.f32 0.0, %v1155
        %1157 = vdwg.mxu0
        %1158 = vmatpush.msra.mxu0 0.0
        %1159 = vmatpush.msra.mxu0 0.0
        %1160 = vmatpush.msra.mxu0 0.0
        %1161 = vmatpush.msra.mxu0 0.0
        %1162 = vmatpush.msra.mxu0 0.0
        %1163 = vmatpush.msra.mxu0 0.0
        %1164 = vmatpush.msra.mxu0 0.0
        %1165 = vmatpush.msra.mxu0 0.0
        %1166 = vmatpush.msra.mxu0 0.0
        %1167 = vmatpush.msra.mxu0 0.0
        %1168 = vmatpush.msra.mxu0 0.0
        %1169 = vmatpush.msra.mxu0 0.0
        %1170 = vmatpush.msra.mxu0 0.0
        %1171 = vmatpush.msra.mxu0 0.0
        %v1172 = vand.u32 %v316, 4294901760
        %v1173 = vsub.f32 %v316, %v1172
        %v1174 = vand.u32 %v1173, 4294901760
        %v1175 = vsub.f32 %v1173, %v1174
        %v1176 = vand.u32 %v1175, 4294901760
        %1177 = vmatpush.msra.mxu0 %v1176
        %v1178 = vand.u32 %v315, 4294901760
        %v1179 = vsub.f32 %v315, %v1178
        %v1180 = vand.u32 %v1179, 4294901760
        %v1181 = vsub.f32 %v1179, %v1180
        %v1182 = vand.u32 %v1181, 4294901760
        %1183 = vmatpush.msra.mxu0 %v1182
        %v1184 = vand.u32 %v970, 4294901760
        %1185 = vmatmul.f32.gmra.mxu0 %v1184
        %v1186 = vpop.f32.mrf.mxu0
        %v1187 = vadd.f32 %v1156, %v1186
        %1188 = vdwg.mxu0
        %1189 = vmatpush.msra.mxu0 0.0
        %1190 = vmatpush.msra.mxu0 0.0
        %1191 = vmatpush.msra.mxu0 0.0
        %1192 = vmatpush.msra.mxu0 0.0
        %1193 = vmatpush.msra.mxu0 0.0
        %1194 = vmatpush.msra.mxu0 0.0
        %1195 = vmatpush.msra.mxu0 0.0
        %1196 = vmatpush.msra.mxu0 0.0
        %1197 = vmatpush.msra.mxu0 0.0
        %1198 = vmatpush.msra.mxu0 0.0
        %1199 = vmatpush.msra.mxu0 0.0
        %1200 = vmatpush.msra.mxu0 0.0
        %1201 = vmatpush.msra.mxu0 0.0
        %1202 = vmatpush.msra.mxu0 0.0
        %v1203 = vand.u32 %v316, 4294901760
        %v1204 = vsub.f32 %v316, %v1203
        %1205 = vmatpush.msra.mxu0 %v1204
        %v1206 = vand.u32 %v315, 4294901760
        %v1207 = vsub.f32 %v315, %v1206
        %1208 = vmatpush.msra.mxu0 %v1207
        %v1209 = vand.u32 %v970, 4294901760
        %v1210 = vsub.f32 %v970, %v1209
        %1211 = vmatmul.f32.gmra.mxu0 %v1210
        %v1212 = vpop.f32.mrf.mxu0
        %v1213 = vadd.f32 %v1187, %v1212
        %1214 = vdwg.mxu0
        %1215 = vmatpush.msra.mxu0 0.0
        %1216 = vmatpush.msra.mxu0 0.0
        %1217 = vmatpush.msra.mxu0 0.0
        %1218 = vmatpush.msra.mxu0 0.0
        %1219 = vmatpush.msra.mxu0 0.0
        %1220 = vmatpush.msra.mxu0 0.0
        %1221 = vmatpush.msra.mxu0 0.0
        %1222 = vmatpush.msra.mxu0 0.0
        %1223 = vmatpush.msra.mxu0 0.0
        %1224 = vmatpush.msra.mxu0 0.0
        %1225 = vmatpush.msra.mxu0 0.0
        %1226 = vmatpush.msra.mxu0 0.0
        %1227 = vmatpush.msra.mxu0 0.0
        %1228 = vmatpush.msra.mxu0 0.0
        %v1229 = vand.u32 %v316, 4294901760
        %1230 = vmatpush.msra.mxu0 %v1229
        %v1231 = vand.u32 %v315, 4294901760
        %1232 = vmatpush.msra.mxu0 %v1231
        %v1233 = vand.u32 %v970, 4294901760
        %v1234 = vsub.f32 %v970, %v1233
        %v1235 = vand.u32 %v1234, 4294901760
        %1236 = vmatmul.f32.gmra.mxu0 %v1235
        %v1237 = vpop.f32.mrf.mxu0
        %v1238 = vadd.f32 %v1213, %v1237
        %1239 = vdwg.mxu0
        %1240 = vmatpush.msra.mxu0 0.0
        %1241 = vmatpush.msra.mxu0 0.0
        %1242 = vmatpush.msra.mxu0 0.0
        %1243 = vmatpush.msra.mxu0 0.0
        %1244 = vmatpush.msra.mxu0 0.0
        %1245 = vmatpush.msra.mxu0 0.0
        %1246 = vmatpush.msra.mxu0 0.0
        %1247 = vmatpush.msra.mxu0 0.0
        %1248 = vmatpush.msra.mxu0 0.0
        %1249 = vmatpush.msra.mxu0 0.0
        %1250 = vmatpush.msra.mxu0 0.0
        %1251 = vmatpush.msra.mxu0 0.0
        %1252 = vmatpush.msra.mxu0 0.0
        %1253 = vmatpush.msra.mxu0 0.0
        %v1254 = vand.u32 %v316, 4294901760
        %v1255 = vsub.f32 %v316, %v1254
        %v1256 = vand.u32 %v1255, 4294901760
        %1257 = vmatpush.msra.mxu0 %v1256
        %v1258 = vand.u32 %v315, 4294901760
        %v1259 = vsub.f32 %v315, %v1258
        %v1260 = vand.u32 %v1259, 4294901760
        %1261 = vmatpush.msra.mxu0 %v1260
        %v1262 = vand.u32 %v970, 4294901760
        %1263 = vmatmul.f32.gmra.mxu0 %v1262
        %v1264 = vpop.f32.mrf.mxu0
        %v1265 = vadd.f32 %v1238, %v1264
        %1266 = vdwg.mxu0
        %1267 = vmatpush.msra.mxu0 0.0
        %1268 = vmatpush.msra.mxu0 0.0
        %1269 = vmatpush.msra.mxu0 0.0
        %1270 = vmatpush.msra.mxu0 0.0
        %1271 = vmatpush.msra.mxu0 0.0
        %1272 = vmatpush.msra.mxu0 0.0
        %1273 = vmatpush.msra.mxu0 0.0
        %1274 = vmatpush.msra.mxu0 0.0
        %1275 = vmatpush.msra.mxu0 0.0
        %1276 = vmatpush.msra.mxu0 0.0
        %1277 = vmatpush.msra.mxu0 0.0
        %1278 = vmatpush.msra.mxu0 0.0
        %1279 = vmatpush.msra.mxu0 0.0
        %1280 = vmatpush.msra.mxu0 0.0
        %v1281 = vand.u32 %v316, 4294901760
        %1282 = vmatpush.msra.mxu0 %v1281
        %v1283 = vand.u32 %v315, 4294901760
        %1284 = vmatpush.msra.mxu0 %v1283
        %v1285 = vand.u32 %v970, 4294901760
        %1286 = vmatmul.f32.gmra.mxu0 %v1285
        %v1287 = vpop.f32.mrf.mxu0
        %v1288 = vadd.f32 %v1265, %v1287
        %1289 = vdwg.mxu0
        %s1290 = vtos %v317
        %v1291 = vstv %s1290
        %v1292 = vmul.f32 %v1291, %v808
        %1293 = vrot.lane.b32.xlu0 %v317, 127
        %v1294 = vpop.permute.xlu0 %1293
        %s1295 = vtos %v1294
        %v1296 = vstv %s1295
        %v1297 = vmul.f32 %v1296, %v967
        %v1298 = vadd.f32 %v1292, %v1297
        %1299 = vrot.lane.b32.xlu0 %v317, 126
        %v1300 = vpop.permute.xlu0 %1299
        %s1301 = vtos %v1300
        %v1302 = vstv %s1301
        %v1303 = vmul.f32 %v1302, %v1129
        %v1304 = vadd.f32 %v1298, %v1303
        %1305 = vrot.lane.b32.xlu0 %v317, 125
        %v1306 = vpop.permute.xlu0 %1305
        %s1307 = vtos %v1306
        %v1308 = vstv %s1307
        %v1309 = vmul.f32 %v1308, %v1288
        %v1310 = vadd.f32 %v1304, %v1309
        %vm1311 = vcmask 64512
        %1312 = vst.msk [vmem:[%s307] sm:$0xff] %vm1311, %v1310
        %v1313 = vrot.slane %v317, 1
        %s1314 = vtos %v1313
        %v1315 = vstv %s1314
        %v1316 = vmul.f32 %v1315, %v808
        %1317 = vrot.lane.b32.xlu0 %v1313, 127
        %v1318 = vpop.permute.xlu0 %1317
        %s1319 = vtos %v1318
        %v1320 = vstv %s1319
        %v1321 = vmul.f32 %v1320, %v967
        %v1322 = vadd.f32 %v1316, %v1321
        %1323 = vrot.lane.b32.xlu0 %v1313, 126
        %v1324 = vpop.permute.xlu0 %1323
        %s1325 = vtos %v1324
        %v1326 = vstv %s1325
        %v1327 = vmul.f32 %v1326, %v1129
        %v1328 = vadd.f32 %v1322, %v1327
        %1329 = vrot.lane.b32.xlu0 %v1313, 125
        %v1330 = vpop.permute.xlu0 %1329
        %s1331 = vtos %v1330
        %v1332 = vstv %s1331
        %v1333 = vmul.f32 %v1332, %v1288
        %v1334 = vadd.f32 %v1328, %v1333
        %s1335 = scalar_lea.vmem %s307, 8
        %1336 = vst.msk [vmem:[%s1335] sm:$0xff] %vm1311, %v1334
        %v1337 = vrot.slane %v317, 2
        %s1338 = vtos %v1337
        %v1339 = vstv %s1338
        %v1340 = vmul.f32 %v1339, %v808
        %1341 = vrot.lane.b32.xlu0 %v1337, 127
        %v1342 = vpop.permute.xlu0 %1341
        %s1343 = vtos %v1342
        %v1344 = vstv %s1343
        %v1345 = vmul.f32 %v1344, %v967
        %v1346 = vadd.f32 %v1340, %v1345
        %1347 = vrot.lane.b32.xlu0 %v1337, 126
        %v1348 = vpop.permute.xlu0 %1347
        %s1349 = vtos %v1348
        %v1350 = vstv %s1349
        %v1351 = vmul.f32 %v1350, %v1129
        %v1352 = vadd.f32 %v1346, %v1351
        %1353 = vrot.lane.b32.xlu0 %v1337, 125
        %v1354 = vpop.permute.xlu0 %1353
        %s1355 = vtos %v1354
        %v1356 = vstv %s1355
        %v1357 = vmul.f32 %v1356, %v1288
        %v1358 = vadd.f32 %v1352, %v1357
        %s1359 = scalar_lea.vmem %s307, 16
        %1360 = vst.msk [vmem:[%s1359] sm:$0xff] %vm1311, %v1358
        %v1361 = vrot.slane %v317, 3
        %s1362 = vtos %v1361
        %v1363 = vstv %s1362
        %v1364 = vmul.f32 %v1363, %v808
        %1365 = vrot.lane.b32.xlu0 %v1361, 127
        %v1366 = vpop.permute.xlu0 %1365
        %s1367 = vtos %v1366
        %v1368 = vstv %s1367
        %v1369 = vmul.f32 %v1368, %v967
        %v1370 = vadd.f32 %v1364, %v1369
        %1371 = vrot.lane.b32.xlu0 %v1361, 126
        %v1372 = vpop.permute.xlu0 %1371
        %s1373 = vtos %v1372
        %v1374 = vstv %s1373
        %v1375 = vmul.f32 %v1374, %v1129
        %v1376 = vadd.f32 %v1370, %v1375
        %1377 = vrot.lane.b32.xlu0 %v1361, 125
        %v1378 = vpop.permute.xlu0 %1377
        %s1379 = vtos %v1378
        %v1380 = vstv %s1379
        %v1381 = vmul.f32 %v1380, %v1288
        %v1382 = vadd.f32 %v1376, %v1381
        %s1383 = scalar_lea.vmem %s307, 24
        %1384 = vst.msk [vmem:[%s1383] sm:$0xff] %vm1311, %v1382
        %s1385 = scalar_lea.vmem %s244, 16 [#allocation2]
        %v1386 = vld [vmem:[%s1385] sm:$0xff]
        %v1387 = vld [vmem:[%s1385 + $0x8] sm:$0xff]
        %1388 = vmatpush.msra.mxu0 0.0
        %1389 = vmatpush.msra.mxu0 0.0
        %1390 = vmatpush.msra.mxu0 0.0
        %1391 = vmatpush.msra.mxu0 0.0
        %1392 = vmatpush.msra.mxu0 0.0
        %1393 = vmatpush.msra.mxu0 0.0
        %1394 = vmatpush.msra.mxu0 0.0
        %1395 = vmatpush.msra.mxu0 0.0
        %1396 = vmatpush.msra.mxu0 0.0
        %1397 = vmatpush.msra.mxu0 0.0
        %1398 = vmatpush.msra.mxu0 0.0
        %1399 = vmatpush.msra.mxu0 0.0
        %1400 = vmatpush.msra.mxu0 0.0
        %1401 = vmatpush.msra.mxu0 0.0
        %v1402 = vand.u32 %v1387, 4294901760
        %1403 = vmatpush.msra.mxu0 %v1402
        %v1404 = vand.u32 %v1386, 4294901760
        %1405 = vmatpush.msra.mxu0 %v1404
        %v1406 = vand.u32 %v325, 4294901760
        %v1407 = vsub.f32 %v325, %v1406
        %v1408 = vand.u32 %v1407, 4294901760
        %v1409 = vsub.f32 %v1407, %v1408
        %v1410 = vand.u32 %v1409, 4294901760
        %1411 = vmatmul.f32.gmra.mxu0 %v1410
        %v1412 = vpop.f32.mrf.mxu0
        %v1413 = vadd.f32 0.0, %v1412
        %1414 = vdwg.mxu0
        %1415 = vmatpush.msra.mxu0 0.0
        %1416 = vmatpush.msra.mxu0 0.0
        %1417 = vmatpush.msra.mxu0 0.0
        %1418 = vmatpush.msra.mxu0 0.0
        %1419 = vmatpush.msra.mxu0 0.0
        %1420 = vmatpush.msra.mxu0 0.0
        %1421 = vmatpush.msra.mxu0 0.0
        %1422 = vmatpush.msra.mxu0 0.0
        %1423 = vmatpush.msra.mxu0 0.0
        %1424 = vmatpush.msra.mxu0 0.0
        %1425 = vmatpush.msra.mxu0 0.0
        %1426 = vmatpush.msra.mxu0 0.0
        %1427 = vmatpush.msra.mxu0 0.0
        %1428 = vmatpush.msra.mxu0 0.0
        %v1429 = vand.u32 %v1387, 4294901760
        %v1430 = vsub.f32 %v1387, %v1429
        %v1431 = vand.u32 %v1430, 4294901760
        %v1432 = vsub.f32 %v1430, %v1431
        %v1433 = vand.u32 %v1432, 4294901760
        %1434 = vmatpush.msra.mxu0 %v1433
        %v1435 = vand.u32 %v1386, 4294901760
        %v1436 = vsub.f32 %v1386, %v1435
        %v1437 = vand.u32 %v1436, 4294901760
        %v1438 = vsub.f32 %v1436, %v1437
        %v1439 = vand.u32 %v1438, 4294901760
        %1440 = vmatpush.msra.mxu0 %v1439
        %v1441 = vand.u32 %v325, 4294901760
        %1442 = vmatmul.f32.gmra.mxu0 %v1441
        %v1443 = vpop.f32.mrf.mxu0
        %v1444 = vadd.f32 %v1413, %v1443
        %1445 = vdwg.mxu0
        %1446 = vmatpush.msra.mxu0 0.0
        %1447 = vmatpush.msra.mxu0 0.0
        %1448 = vmatpush.msra.mxu0 0.0
        %1449 = vmatpush.msra.mxu0 0.0
        %1450 = vmatpush.msra.mxu0 0.0
        %1451 = vmatpush.msra.mxu0 0.0
        %1452 = vmatpush.msra.mxu0 0.0
        %1453 = vmatpush.msra.mxu0 0.0
        %1454 = vmatpush.msra.mxu0 0.0
        %1455 = vmatpush.msra.mxu0 0.0
        %1456 = vmatpush.msra.mxu0 0.0
        %1457 = vmatpush.msra.mxu0 0.0
        %1458 = vmatpush.msra.mxu0 0.0
        %1459 = vmatpush.msra.mxu0 0.0
        %v1460 = vand.u32 %v1387, 4294901760
        %v1461 = vsub.f32 %v1387, %v1460
        %1462 = vmatpush.msra.mxu0 %v1461
        %v1463 = vand.u32 %v1386, 4294901760
        %v1464 = vsub.f32 %v1386, %v1463
        %1465 = vmatpush.msra.mxu0 %v1464
        %v1466 = vand.u32 %v325, 4294901760
        %v1467 = vsub.f32 %v325, %v1466
        %1468 = vmatmul.f32.gmra.mxu0 %v1467
        %v1469 = vpop.f32.mrf.mxu0
        %v1470 = vadd.f32 %v1444, %v1469
        %1471 = vdwg.mxu0
        %1472 = vmatpush.msra.mxu0 0.0
        %1473 = vmatpush.msra.mxu0 0.0
        %1474 = vmatpush.msra.mxu0 0.0
        %1475 = vmatpush.msra.mxu0 0.0
        %1476 = vmatpush.msra.mxu0 0.0
        %1477 = vmatpush.msra.mxu0 0.0
        %1478 = vmatpush.msra.mxu0 0.0
        %1479 = vmatpush.msra.mxu0 0.0
        %1480 = vmatpush.msra.mxu0 0.0
        %1481 = vmatpush.msra.mxu0 0.0
        %1482 = vmatpush.msra.mxu0 0.0
        %1483 = vmatpush.msra.mxu0 0.0
        %1484 = vmatpush.msra.mxu0 0.0
        %1485 = vmatpush.msra.mxu0 0.0
        %v1486 = vand.u32 %v1387, 4294901760
        %1487 = vmatpush.msra.mxu0 %v1486
        %v1488 = vand.u32 %v1386, 4294901760
        %1489 = vmatpush.msra.mxu0 %v1488
        %v1490 = vand.u32 %v325, 4294901760
        %v1491 = vsub.f32 %v325, %v1490
        %v1492 = vand.u32 %v1491, 4294901760
        %1493 = vmatmul.f32.gmra.mxu0 %v1492
        %v1494 = vpop.f32.mrf.mxu0
        %v1495 = vadd.f32 %v1470, %v1494
        %1496 = vdwg.mxu0
        %1497 = vmatpush.msra.mxu0 0.0
        %1498 = vmatpush.msra.mxu0 0.0
        %1499 = vmatpush.msra.mxu0 0.0
        %1500 = vmatpush.msra.mxu0 0.0
        %1501 = vmatpush.msra.mxu0 0.0
        %1502 = vmatpush.msra.mxu0 0.0
        %1503 = vmatpush.msra.mxu0 0.0
        %1504 = vmatpush.msra.mxu0 0.0
        %1505 = vmatpush.msra.mxu0 0.0
        %1506 = vmatpush.msra.mxu0 0.0
        %1507 = vmatpush.msra.mxu0 0.0
        %1508 = vmatpush.msra.mxu0 0.0
        %1509 = vmatpush.msra.mxu0 0.0
        %1510 = vmatpush.msra.mxu0 0.0
        %v1511 = vand.u32 %v1387, 4294901760
        %v1512 = vsub.f32 %v1387, %v1511
        %v1513 = vand.u32 %v1512, 4294901760
        %1514 = vmatpush.msra.mxu0 %v1513
        %v1515 = vand.u32 %v1386, 4294901760
        %v1516 = vsub.f32 %v1386, %v1515
        %v1517 = vand.u32 %v1516, 4294901760
        %1518 = vmatpush.msra.mxu0 %v1517
        %v1519 = vand.u32 %v325, 4294901760
        %1520 = vmatmul.f32.gmra.mxu0 %v1519
        %v1521 = vpop.f32.mrf.mxu0
        %v1522 = vadd.f32 %v1495, %v1521
        %1523 = vdwg.mxu0
        %1524 = vmatpush.msra.mxu0 0.0
        %1525 = vmatpush.msra.mxu0 0.0
        %1526 = vmatpush.msra.mxu0 0.0
        %1527 = vmatpush.msra.mxu0 0.0
        %1528 = vmatpush.msra.mxu0 0.0
        %1529 = vmatpush.msra.mxu0 0.0
        %1530 = vmatpush.msra.mxu0 0.0
        %1531 = vmatpush.msra.mxu0 0.0
        %1532 = vmatpush.msra.mxu0 0.0
        %1533 = vmatpush.msra.mxu0 0.0
        %1534 = vmatpush.msra.mxu0 0.0
        %1535 = vmatpush.msra.mxu0 0.0
        %1536 = vmatpush.msra.mxu0 0.0
        %1537 = vmatpush.msra.mxu0 0.0
        %v1538 = vand.u32 %v1387, 4294901760
        %1539 = vmatpush.msra.mxu0 %v1538
        %v1540 = vand.u32 %v1386, 4294901760
        %1541 = vmatpush.msra.mxu0 %v1540
        %v1542 = vand.u32 %v325, 4294901760
        %1543 = vmatmul.f32.gmra.mxu0 %v1542
        %v1544 = vpop.f32.mrf.mxu0
        %v1545 = vadd.f32 %v1522, %v1544
        %1546 = vdwg.mxu0
        %1547 = vmatpush.msra.mxu0 0.0
        %1548 = vmatpush.msra.mxu0 0.0
        %1549 = vmatpush.msra.mxu0 0.0
        %1550 = vmatpush.msra.mxu0 0.0
        %1551 = vmatpush.msra.mxu0 0.0
        %1552 = vmatpush.msra.mxu0 0.0
        %1553 = vmatpush.msra.mxu0 0.0
        %1554 = vmatpush.msra.mxu0 0.0
        %1555 = vmatpush.msra.mxu0 0.0
        %1556 = vmatpush.msra.mxu0 0.0
        %1557 = vmatpush.msra.mxu0 0.0
        %1558 = vmatpush.msra.mxu0 0.0
        %1559 = vmatpush.msra.mxu0 0.0
        %1560 = vmatpush.msra.mxu0 0.0
        %v1561 = vand.u32 %v1387, 4294901760
        %1562 = vmatpush.msra.mxu0 %v1561
        %v1563 = vand.u32 %v1386, 4294901760
        %1564 = vmatpush.msra.mxu0 %v1563
        %v1565 = vand.u32 %v487, 4294901760
        %v1566 = vsub.f32 %v487, %v1565
        %v1567 = vand.u32 %v1566, 4294901760
        %v1568 = vsub.f32 %v1566, %v1567
        %v1569 = vand.u32 %v1568, 4294901760
        %1570 = vmatmul.f32.gmra.mxu0 %v1569
        %v1571 = vpop.f32.mrf.mxu0
        %v1572 = vadd.f32 0.0, %v1571
        %1573 = vdwg.mxu0
        %1574 = vmatpush.msra.mxu0 0.0
        %1575 = vmatpush.msra.mxu0 0.0
        %1576 = vmatpush.msra.mxu0 0.0
        %1577 = vmatpush.msra.mxu0 0.0
        %1578 = vmatpush.msra.mxu0 0.0
        %1579 = vmatpush.msra.mxu0 0.0
        %1580 = vmatpush.msra.mxu0 0.0
        %1581 = vmatpush.msra.mxu0 0.0
        %1582 = vmatpush.msra.mxu0 0.0
        %1583 = vmatpush.msra.mxu0 0.0
        %1584 = vmatpush.msra.mxu0 0.0
        %1585 = vmatpush.msra.mxu0 0.0
        %1586 = vmatpush.msra.mxu0 0.0
        %1587 = vmatpush.msra.mxu0 0.0
        %v1588 = vand.u32 %v1387, 4294901760
        %v1589 = vsub.f32 %v1387, %v1588
        %v1590 = vand.u32 %v1589, 4294901760
        %v1591 = vsub.f32 %v1589, %v1590
        %v1592 = vand.u32 %v1591, 4294901760
        %1593 = vmatpush.msra.mxu0 %v1592
        %v1594 = vand.u32 %v1386, 4294901760
        %v1595 = vsub.f32 %v1386, %v1594
        %v1596 = vand.u32 %v1595, 4294901760
        %v1597 = vsub.f32 %v1595, %v1596
        %v1598 = vand.u32 %v1597, 4294901760
        %1599 = vmatpush.msra.mxu0 %v1598
        %v1600 = vand.u32 %v487, 4294901760
        %1601 = vmatmul.f32.gmra.mxu0 %v1600
        %v1602 = vpop.f32.mrf.mxu0
        %v1603 = vadd.f32 %v1572, %v1602
        %1604 = vdwg.mxu0
        %1605 = vmatpush.msra.mxu0 0.0
        %1606 = vmatpush.msra.mxu0 0.0
        %1607 = vmatpush.msra.mxu0 0.0
        %1608 = vmatpush.msra.mxu0 0.0
        %1609 = vmatpush.msra.mxu0 0.0
        %1610 = vmatpush.msra.mxu0 0.0
        %1611 = vmatpush.msra.mxu0 0.0
        %1612 = vmatpush.msra.mxu0 0.0
        %1613 = vmatpush.msra.mxu0 0.0
        %1614 = vmatpush.msra.mxu0 0.0
        %1615 = vmatpush.msra.mxu0 0.0
        %1616 = vmatpush.msra.mxu0 0.0
        %1617 = vmatpush.msra.mxu0 0.0
        %1618 = vmatpush.msra.mxu0 0.0
        %v1619 = vand.u32 %v1387, 4294901760
        %v1620 = vsub.f32 %v1387, %v1619
        %1621 = vmatpush.msra.mxu0 %v1620
        %v1622 = vand.u32 %v1386, 4294901760
        %v1623 = vsub.f32 %v1386, %v1622
        %1624 = vmatpush.msra.mxu0 %v1623
        %v1625 = vand.u32 %v487, 4294901760
        %v1626 = vsub.f32 %v487, %v1625
        %1627 = vmatmul.f32.gmra.mxu0 %v1626
        %v1628 = vpop.f32.mrf.mxu0
        %v1629 = vadd.f32 %v1603, %v1628
        %1630 = vdwg.mxu0
        %1631 = vmatpush.msra.mxu0 0.0
        %1632 = vmatpush.msra.mxu0 0.0
        %1633 = vmatpush.msra.mxu0 0.0
        %1634 = vmatpush.msra.mxu0 0.0
        %1635 = vmatpush.msra.mxu0 0.0
        %1636 = vmatpush.msra.mxu0 0.0
        %1637 = vmatpush.msra.mxu0 0.0
        %1638 = vmatpush.msra.mxu0 0.0
        %1639 = vmatpush.msra.mxu0 0.0
        %1640 = vmatpush.msra.mxu0 0.0
        %1641 = vmatpush.msra.mxu0 0.0
        %1642 = vmatpush.msra.mxu0 0.0
        %1643 = vmatpush.msra.mxu0 0.0
        %1644 = vmatpush.msra.mxu0 0.0
        %v1645 = vand.u32 %v1387, 4294901760
        %1646 = vmatpush.msra.mxu0 %v1645
        %v1647 = vand.u32 %v1386, 4294901760
        %1648 = vmatpush.msra.mxu0 %v1647
        %v1649 = vand.u32 %v487, 4294901760
        %v1650 = vsub.f32 %v487, %v1649
        %v1651 = vand.u32 %v1650, 4294901760
        %1652 = vmatmul.f32.gmra.mxu0 %v1651
        %v1653 = vpop.f32.mrf.mxu0
        %v1654 = vadd.f32 %v1629, %v1653
        %1655 = vdwg.mxu0
        %1656 = vmatpush.msra.mxu0 0.0
        %1657 = vmatpush.msra.mxu0 0.0
        %1658 = vmatpush.msra.mxu0 0.0
        %1659 = vmatpush.msra.mxu0 0.0
        %1660 = vmatpush.msra.mxu0 0.0
        %1661 = vmatpush.msra.mxu0 0.0
        %1662 = vmatpush.msra.mxu0 0.0
        %1663 = vmatpush.msra.mxu0 0.0
        %1664 = vmatpush.msra.mxu0 0.0
        %1665 = vmatpush.msra.mxu0 0.0
        %1666 = vmatpush.msra.mxu0 0.0
        %1667 = vmatpush.msra.mxu0 0.0
        %1668 = vmatpush.msra.mxu0 0.0
        %1669 = vmatpush.msra.mxu0 0.0
        %v1670 = vand.u32 %v1387, 4294901760
        %v1671 = vsub.f32 %v1387, %v1670
        %v1672 = vand.u32 %v1671, 4294901760
        %1673 = vmatpush.msra.mxu0 %v1672
        %v1674 = vand.u32 %v1386, 4294901760
        %v1675 = vsub.f32 %v1386, %v1674
        %v1676 = vand.u32 %v1675, 4294901760
        %1677 = vmatpush.msra.mxu0 %v1676
        %v1678 = vand.u32 %v487, 4294901760
        %1679 = vmatmul.f32.gmra.mxu0 %v1678
        %v1680 = vpop.f32.mrf.mxu0
        %v1681 = vadd.f32 %v1654, %v1680
        %1682 = vdwg.mxu0
        %1683 = vmatpush.msra.mxu0 0.0
        %1684 = vmatpush.msra.mxu0 0.0
        %1685 = vmatpush.msra.mxu0 0.0
        %1686 = vmatpush.msra.mxu0 0.0
        %1687 = vmatpush.msra.mxu0 0.0
        %1688 = vmatpush.msra.mxu0 0.0
        %1689 = vmatpush.msra.mxu0 0.0
        %1690 = vmatpush.msra.mxu0 0.0
        %1691 = vmatpush.msra.mxu0 0.0
        %1692 = vmatpush.msra.mxu0 0.0
        %1693 = vmatpush.msra.mxu0 0.0
        %1694 = vmatpush.msra.mxu0 0.0
        %1695 = vmatpush.msra.mxu0 0.0
        %1696 = vmatpush.msra.mxu0 0.0
        %v1697 = vand.u32 %v1387, 4294901760
        %1698 = vmatpush.msra.mxu0 %v1697
        %v1699 = vand.u32 %v1386, 4294901760
        %1700 = vmatpush.msra.mxu0 %v1699
        %v1701 = vand.u32 %v487, 4294901760
        %1702 = vmatmul.f32.gmra.mxu0 %v1701
        %v1703 = vpop.f32.mrf.mxu0
        %v1704 = vadd.f32 %v1681, %v1703
        %1705 = vdwg.mxu0
        %v1707 = vsel %vm323, %v1545, 0
        %1709 = vmatpush.msra.mxu0 0.0
        %1710 = vmatpush.msra.mxu0 0.0
        %1711 = vmatpush.msra.mxu0 0.0
        %1712 = vmatpush.msra.mxu0 0.0
        %1713 = vmatpush.msra.mxu0 0.0
        %1714 = vmatpush.msra.mxu0 0.0
        %1715 = vmatpush.msra.mxu0 0.0
        %1716 = vmatpush.msra.mxu0 0.0
        %1717 = vmatpush.msra.mxu0 0.0
        %1718 = vmatpush.msra.mxu0 0.0
        %1719 = vmatpush.msra.mxu0 0.0
        %1720 = vmatpush.msra.mxu0 0.0
        %1721 = vmatpush.msra.mxu0 0.0
        %1722 = vmatpush.msra.mxu0 0.0
        %v1723 = vand.u32 %v313, 4294901760
        %1724 = vmatpush.msra.mxu0 %v1723
        %v1725 = vand.u32 %v312, 4294901760
        %1726 = vmatpush.msra.mxu0 %v1725
        %v1727 = vand.u32 %v1707, 4294901760
        %v1728 = vsub.f32 %v1707, %v1727
        %v1729 = vand.u32 %v1728, 4294901760
        %v1730 = vsub.f32 %v1728, %v1729
        %v1731 = vand.u32 %v1730, 4294901760
        %1732 = vmatmul.f32.gmra.mxu0 %v1731
        %v1733 = vpop.f32.mrf.mxu0
        %v1734 = vadd.f32 0.0, %v1733
        %1735 = vdwg.mxu0
        %1736 = vmatpush.msra.mxu0 0.0
        %1737 = vmatpush.msra.mxu0 0.0
        %1738 = vmatpush.msra.mxu0 0.0
        %1739 = vmatpush.msra.mxu0 0.0
        %1740 = vmatpush.msra.mxu0 0.0
        %1741 = vmatpush.msra.mxu0 0.0
        %1742 = vmatpush.msra.mxu0 0.0
        %1743 = vmatpush.msra.mxu0 0.0
        %1744 = vmatpush.msra.mxu0 0.0
        %1745 = vmatpush.msra.mxu0 0.0
        %1746 = vmatpush.msra.mxu0 0.0
        %1747 = vmatpush.msra.mxu0 0.0
        %1748 = vmatpush.msra.mxu0 0.0
        %1749 = vmatpush.msra.mxu0 0.0
        %v1750 = vand.u32 %v313, 4294901760
        %v1751 = vsub.f32 %v313, %v1750
        %v1752 = vand.u32 %v1751, 4294901760
        %v1753 = vsub.f32 %v1751, %v1752
        %v1754 = vand.u32 %v1753, 4294901760
        %1755 = vmatpush.msra.mxu0 %v1754
        %v1756 = vand.u32 %v312, 4294901760
        %v1757 = vsub.f32 %v312, %v1756
        %v1758 = vand.u32 %v1757, 4294901760
        %v1759 = vsub.f32 %v1757, %v1758
        %v1760 = vand.u32 %v1759, 4294901760
        %1761 = vmatpush.msra.mxu0 %v1760
        %v1762 = vand.u32 %v1707, 4294901760
        %1763 = vmatmul.f32.gmra.mxu0 %v1762
        %v1764 = vpop.f32.mrf.mxu0
        %v1765 = vadd.f32 %v1734, %v1764
        %1766 = vdwg.mxu0
        %1767 = vmatpush.msra.mxu0 0.0
        %1768 = vmatpush.msra.mxu0 0.0
        %1769 = vmatpush.msra.mxu0 0.0
        %1770 = vmatpush.msra.mxu0 0.0
        %1771 = vmatpush.msra.mxu0 0.0
        %1772 = vmatpush.msra.mxu0 0.0
        %1773 = vmatpush.msra.mxu0 0.0
        %1774 = vmatpush.msra.mxu0 0.0
        %1775 = vmatpush.msra.mxu0 0.0
        %1776 = vmatpush.msra.mxu0 0.0
        %1777 = vmatpush.msra.mxu0 0.0
        %1778 = vmatpush.msra.mxu0 0.0
        %1779 = vmatpush.msra.mxu0 0.0
        %1780 = vmatpush.msra.mxu0 0.0
        %v1781 = vand.u32 %v313, 4294901760
        %v1782 = vsub.f32 %v313, %v1781
        %1783 = vmatpush.msra.mxu0 %v1782
        %v1784 = vand.u32 %v312, 4294901760
        %v1785 = vsub.f32 %v312, %v1784
        %1786 = vmatpush.msra.mxu0 %v1785
        %v1787 = vand.u32 %v1707, 4294901760
        %v1788 = vsub.f32 %v1707, %v1787
        %1789 = vmatmul.f32.gmra.mxu0 %v1788
        %v1790 = vpop.f32.mrf.mxu0
        %v1791 = vadd.f32 %v1765, %v1790
        %1792 = vdwg.mxu0
        %1793 = vmatpush.msra.mxu0 0.0
        %1794 = vmatpush.msra.mxu0 0.0
        %1795 = vmatpush.msra.mxu0 0.0
        %1796 = vmatpush.msra.mxu0 0.0
        %1797 = vmatpush.msra.mxu0 0.0
        %1798 = vmatpush.msra.mxu0 0.0
        %1799 = vmatpush.msra.mxu0 0.0
        %1800 = vmatpush.msra.mxu0 0.0
        %1801 = vmatpush.msra.mxu0 0.0
        %1802 = vmatpush.msra.mxu0 0.0
        %1803 = vmatpush.msra.mxu0 0.0
        %1804 = vmatpush.msra.mxu0 0.0
        %1805 = vmatpush.msra.mxu0 0.0
        %1806 = vmatpush.msra.mxu0 0.0
        %v1807 = vand.u32 %v313, 4294901760
        %1808 = vmatpush.msra.mxu0 %v1807
        %v1809 = vand.u32 %v312, 4294901760
        %1810 = vmatpush.msra.mxu0 %v1809
        %v1811 = vand.u32 %v1707, 4294901760
        %v1812 = vsub.f32 %v1707, %v1811
        %v1813 = vand.u32 %v1812, 4294901760
        %1814 = vmatmul.f32.gmra.mxu0 %v1813
        %v1815 = vpop.f32.mrf.mxu0
        %v1816 = vadd.f32 %v1791, %v1815
        %1817 = vdwg.mxu0
        %1818 = vmatpush.msra.mxu0 0.0
        %1819 = vmatpush.msra.mxu0 0.0
        %1820 = vmatpush.msra.mxu0 0.0
        %1821 = vmatpush.msra.mxu0 0.0
        %1822 = vmatpush.msra.mxu0 0.0
        %1823 = vmatpush.msra.mxu0 0.0
        %1824 = vmatpush.msra.mxu0 0.0
        %1825 = vmatpush.msra.mxu0 0.0
        %1826 = vmatpush.msra.mxu0 0.0
        %1827 = vmatpush.msra.mxu0 0.0
        %1828 = vmatpush.msra.mxu0 0.0
        %1829 = vmatpush.msra.mxu0 0.0
        %1830 = vmatpush.msra.mxu0 0.0
        %1831 = vmatpush.msra.mxu0 0.0
        %v1832 = vand.u32 %v313, 4294901760
        %v1833 = vsub.f32 %v313, %v1832
        %v1834 = vand.u32 %v1833, 4294901760
        %1835 = vmatpush.msra.mxu0 %v1834
        %v1836 = vand.u32 %v312, 4294901760
        %v1837 = vsub.f32 %v312, %v1836
        %v1838 = vand.u32 %v1837, 4294901760
        %1839 = vmatpush.msra.mxu0 %v1838
        %v1840 = vand.u32 %v1707, 4294901760
        %1841 = vmatmul.f32.gmra.mxu0 %v1840
        %v1842 = vpop.f32.mrf.mxu0
        %v1843 = vadd.f32 %v1816, %v1842
        %1844 = vdwg.mxu0
        %1845 = vmatpush.msra.mxu0 0.0
        %1846 = vmatpush.msra.mxu0 0.0
        %1847 = vmatpush.msra.mxu0 0.0
        %1848 = vmatpush.msra.mxu0 0.0
        %1849 = vmatpush.msra.mxu0 0.0
        %1850 = vmatpush.msra.mxu0 0.0
        %1851 = vmatpush.msra.mxu0 0.0
        %1852 = vmatpush.msra.mxu0 0.0
        %1853 = vmatpush.msra.mxu0 0.0
        %1854 = vmatpush.msra.mxu0 0.0
        %1855 = vmatpush.msra.mxu0 0.0
        %1856 = vmatpush.msra.mxu0 0.0
        %1857 = vmatpush.msra.mxu0 0.0
        %1858 = vmatpush.msra.mxu0 0.0
        %v1859 = vand.u32 %v313, 4294901760
        %1860 = vmatpush.msra.mxu0 %v1859
        %v1861 = vand.u32 %v312, 4294901760
        %1862 = vmatpush.msra.mxu0 %v1861
        %v1863 = vand.u32 %v1707, 4294901760
        %1864 = vmatmul.f32.gmra.mxu0 %v1863
        %v1865 = vpop.f32.mrf.mxu0
        %v1866 = vadd.f32 %v1843, %v1865
        %1867 = vdwg.mxu0
        %1868 = vmatpush.msra.mxu0 0.0
        %1869 = vmatpush.msra.mxu0 0.0
        %1870 = vmatpush.msra.mxu0 0.0
        %1871 = vmatpush.msra.mxu0 0.0
        %1872 = vmatpush.msra.mxu0 0.0
        %1873 = vmatpush.msra.mxu0 0.0
        %1874 = vmatpush.msra.mxu0 0.0
        %1875 = vmatpush.msra.mxu0 0.0
        %1876 = vmatpush.msra.mxu0 0.0
        %1877 = vmatpush.msra.mxu0 0.0
        %1878 = vmatpush.msra.mxu0 0.0
        %1879 = vmatpush.msra.mxu0 0.0
        %1880 = vmatpush.msra.mxu0 0.0
        %1881 = vmatpush.msra.mxu0 0.0
        %v1882 = vand.u32 %v316, 4294901760
        %1883 = vmatpush.msra.mxu0 %v1882
        %v1884 = vand.u32 %v315, 4294901760
        %1885 = vmatpush.msra.mxu0 %v1884
        %v1886 = vand.u32 %v1707, 4294901760
        %v1887 = vsub.f32 %v1707, %v1886
        %v1888 = vand.u32 %v1887, 4294901760
        %v1889 = vsub.f32 %v1887, %v1888
        %v1890 = vand.u32 %v1889, 4294901760
        %1891 = vmatmul.f32.gmra.mxu0 %v1890
        %v1892 = vpop.f32.mrf.mxu0
        %v1893 = vadd.f32 0.0, %v1892
        %1894 = vdwg.mxu0
        %1895 = vmatpush.msra.mxu0 0.0
        %1896 = vmatpush.msra.mxu0 0.0
        %1897 = vmatpush.msra.mxu0 0.0
        %1898 = vmatpush.msra.mxu0 0.0
        %1899 = vmatpush.msra.mxu0 0.0
        %1900 = vmatpush.msra.mxu0 0.0
        %1901 = vmatpush.msra.mxu0 0.0
        %1902 = vmatpush.msra.mxu0 0.0
        %1903 = vmatpush.msra.mxu0 0.0
        %1904 = vmatpush.msra.mxu0 0.0
        %1905 = vmatpush.msra.mxu0 0.0
        %1906 = vmatpush.msra.mxu0 0.0
        %1907 = vmatpush.msra.mxu0 0.0
        %1908 = vmatpush.msra.mxu0 0.0
        %v1909 = vand.u32 %v316, 4294901760
        %v1910 = vsub.f32 %v316, %v1909
        %v1911 = vand.u32 %v1910, 4294901760
        %v1912 = vsub.f32 %v1910, %v1911
        %v1913 = vand.u32 %v1912, 4294901760
        %1914 = vmatpush.msra.mxu0 %v1913
        %v1915 = vand.u32 %v315, 4294901760
        %v1916 = vsub.f32 %v315, %v1915
        %v1917 = vand.u32 %v1916, 4294901760
        %v1918 = vsub.f32 %v1916, %v1917
        %v1919 = vand.u32 %v1918, 4294901760
        %1920 = vmatpush.msra.mxu0 %v1919
        %v1921 = vand.u32 %v1707, 4294901760
        %1922 = vmatmul.f32.gmra.mxu0 %v1921
        %v1923 = vpop.f32.mrf.mxu0
        %v1924 = vadd.f32 %v1893, %v1923
        %1925 = vdwg.mxu0
        %1926 = vmatpush.msra.mxu0 0.0
        %1927 = vmatpush.msra.mxu0 0.0
        %1928 = vmatpush.msra.mxu0 0.0
        %1929 = vmatpush.msra.mxu0 0.0
        %1930 = vmatpush.msra.mxu0 0.0
        %1931 = vmatpush.msra.mxu0 0.0
        %1932 = vmatpush.msra.mxu0 0.0
        %1933 = vmatpush.msra.mxu0 0.0
        %1934 = vmatpush.msra.mxu0 0.0
        %1935 = vmatpush.msra.mxu0 0.0
        %1936 = vmatpush.msra.mxu0 0.0
        %1937 = vmatpush.msra.mxu0 0.0
        %1938 = vmatpush.msra.mxu0 0.0
        %1939 = vmatpush.msra.mxu0 0.0
        %v1940 = vand.u32 %v316, 4294901760
        %v1941 = vsub.f32 %v316, %v1940
        %1942 = vmatpush.msra.mxu0 %v1941
        %v1943 = vand.u32 %v315, 4294901760
        %v1944 = vsub.f32 %v315, %v1943
        %1945 = vmatpush.msra.mxu0 %v1944
        %v1946 = vand.u32 %v1707, 4294901760
        %v1947 = vsub.f32 %v1707, %v1946
        %1948 = vmatmul.f32.gmra.mxu0 %v1947
        %v1949 = vpop.f32.mrf.mxu0
        %v1950 = vadd.f32 %v1924, %v1949
        %1951 = vdwg.mxu0
        %1952 = vmatpush.msra.mxu0 0.0
        %1953 = vmatpush.msra.mxu0 0.0
        %1954 = vmatpush.msra.mxu0 0.0
        %1955 = vmatpush.msra.mxu0 0.0
        %1956 = vmatpush.msra.mxu0 0.0
        %1957 = vmatpush.msra.mxu0 0.0
        %1958 = vmatpush.msra.mxu0 0.0
        %1959 = vmatpush.msra.mxu0 0.0
        %1960 = vmatpush.msra.mxu0 0.0
        %1961 = vmatpush.msra.mxu0 0.0
        %1962 = vmatpush.msra.mxu0 0.0
        %1963 = vmatpush.msra.mxu0 0.0
        %1964 = vmatpush.msra.mxu0 0.0
        %1965 = vmatpush.msra.mxu0 0.0
        %v1966 = vand.u32 %v316, 4294901760
        %1967 = vmatpush.msra.mxu0 %v1966
        %v1968 = vand.u32 %v315, 4294901760
        %1969 = vmatpush.msra.mxu0 %v1968
        %v1970 = vand.u32 %v1707, 4294901760
        %v1971 = vsub.f32 %v1707, %v1970
        %v1972 = vand.u32 %v1971, 4294901760
        %1973 = vmatmul.f32.gmra.mxu0 %v1972
        %v1974 = vpop.f32.mrf.mxu0
        %v1975 = vadd.f32 %v1950, %v1974
        %1976 = vdwg.mxu0
        %1977 = vmatpush.msra.mxu0 0.0
        %1978 = vmatpush.msra.mxu0 0.0
        %1979 = vmatpush.msra.mxu0 0.0
        %1980 = vmatpush.msra.mxu0 0.0
        %1981 = vmatpush.msra.mxu0 0.0
        %1982 = vmatpush.msra.mxu0 0.0
        %1983 = vmatpush.msra.mxu0 0.0
        %1984 = vmatpush.msra.mxu0 0.0
        %1985 = vmatpush.msra.mxu0 0.0
        %1986 = vmatpush.msra.mxu0 0.0
        %1987 = vmatpush.msra.mxu0 0.0
        %1988 = vmatpush.msra.mxu0 0.0
        %1989 = vmatpush.msra.mxu0 0.0
        %1990 = vmatpush.msra.mxu0 0.0
        %v1991 = vand.u32 %v316, 4294901760
        %v1992 = vsub.f32 %v316, %v1991
        %v1993 = vand.u32 %v1992, 4294901760
        %1994 = vmatpush.msra.mxu0 %v1993
        %v1995 = vand.u32 %v315, 4294901760
        %v1996 = vsub.f32 %v315, %v1995
        %v1997 = vand.u32 %v1996, 4294901760
        %1998 = vmatpush.msra.mxu0 %v1997
        %v1999 = vand.u32 %v1707, 4294901760
        %2000 = vmatmul.f32.gmra.mxu0 %v1999
        %v2001 = vpop.f32.mrf.mxu0
        %v2002 = vadd.f32 %v1975, %v2001
        %2003 = vdwg.mxu0
        %2004 = vmatpush.msra.mxu0 0.0
        %2005 = vmatpush.msra.mxu0 0.0
        %2006 = vmatpush.msra.mxu0 0.0
        %2007 = vmatpush.msra.mxu0 0.0
        %2008 = vmatpush.msra.mxu0 0.0
        %2009 = vmatpush.msra.mxu0 0.0
        %2010 = vmatpush.msra.mxu0 0.0
        %2011 = vmatpush.msra.mxu0 0.0
        %2012 = vmatpush.msra.mxu0 0.0
        %2013 = vmatpush.msra.mxu0 0.0
        %2014 = vmatpush.msra.mxu0 0.0
        %2015 = vmatpush.msra.mxu0 0.0
        %2016 = vmatpush.msra.mxu0 0.0
        %2017 = vmatpush.msra.mxu0 0.0
        %v2018 = vand.u32 %v316, 4294901760
        %2019 = vmatpush.msra.mxu0 %v2018
        %v2020 = vand.u32 %v315, 4294901760
        %2021 = vmatpush.msra.mxu0 %v2020
        %v2022 = vand.u32 %v1707, 4294901760
        %2023 = vmatmul.f32.gmra.mxu0 %v2022
        %v2024 = vpop.f32.mrf.mxu0
        %v2025 = vadd.f32 %v2002, %v2024
        %2026 = vdwg.mxu0
        %v2028 = vsel %vm323, %v1704, 0
        %2030 = vmatpush.msra.mxu0 0.0
        %2031 = vmatpush.msra.mxu0 0.0
        %2032 = vmatpush.msra.mxu0 0.0
        %2033 = vmatpush.msra.mxu0 0.0
        %2034 = vmatpush.msra.mxu0 0.0
        %2035 = vmatpush.msra.mxu0 0.0
        %2036 = vmatpush.msra.mxu0 0.0
        %2037 = vmatpush.msra.mxu0 0.0
        %2038 = vmatpush.msra.mxu0 0.0
        %2039 = vmatpush.msra.mxu0 0.0
        %2040 = vmatpush.msra.mxu0 0.0
        %2041 = vmatpush.msra.mxu0 0.0
        %2042 = vmatpush.msra.mxu0 0.0
        %2043 = vmatpush.msra.mxu0 0.0
        %v2044 = vand.u32 %v313, 4294901760
        %2045 = vmatpush.msra.mxu0 %v2044
        %v2046 = vand.u32 %v312, 4294901760
        %2047 = vmatpush.msra.mxu0 %v2046
        %v2048 = vand.u32 %v2028, 4294901760
        %v2049 = vsub.f32 %v2028, %v2048
        %v2050 = vand.u32 %v2049, 4294901760
        %v2051 = vsub.f32 %v2049, %v2050
        %v2052 = vand.u32 %v2051, 4294901760
        %2053 = vmatmul.f32.gmra.mxu0 %v2052
        %v2054 = vpop.f32.mrf.mxu0
        %v2055 = vadd.f32 0.0, %v2054
        %2056 = vdwg.mxu0
        %2057 = vmatpush.msra.mxu0 0.0
        %2058 = vmatpush.msra.mxu0 0.0
        %2059 = vmatpush.msra.mxu0 0.0
        %2060 = vmatpush.msra.mxu0 0.0
        %2061 = vmatpush.msra.mxu0 0.0
        %2062 = vmatpush.msra.mxu0 0.0
        %2063 = vmatpush.msra.mxu0 0.0
        %2064 = vmatpush.msra.mxu0 0.0
        %2065 = vmatpush.msra.mxu0 0.0
        %2066 = vmatpush.msra.mxu0 0.0
        %2067 = vmatpush.msra.mxu0 0.0
        %2068 = vmatpush.msra.mxu0 0.0
        %2069 = vmatpush.msra.mxu0 0.0
        %2070 = vmatpush.msra.mxu0 0.0
        %v2071 = vand.u32 %v313, 4294901760
        %v2072 = vsub.f32 %v313, %v2071
        %v2073 = vand.u32 %v2072, 4294901760
        %v2074 = vsub.f32 %v2072, %v2073
        %v2075 = vand.u32 %v2074, 4294901760
        %2076 = vmatpush.msra.mxu0 %v2075
        %v2077 = vand.u32 %v312, 4294901760
        %v2078 = vsub.f32 %v312, %v2077
        %v2079 = vand.u32 %v2078, 4294901760
        %v2080 = vsub.f32 %v2078, %v2079
        %v2081 = vand.u32 %v2080, 4294901760
        %2082 = vmatpush.msra.mxu0 %v2081
        %v2083 = vand.u32 %v2028, 4294901760
        %2084 = vmatmul.f32.gmra.mxu0 %v2083
        %v2085 = vpop.f32.mrf.mxu0
        %v2086 = vadd.f32 %v2055, %v2085
        %2087 = vdwg.mxu0
        %2088 = vmatpush.msra.mxu0 0.0
        %2089 = vmatpush.msra.mxu0 0.0
        %2090 = vmatpush.msra.mxu0 0.0
        %2091 = vmatpush.msra.mxu0 0.0
        %2092 = vmatpush.msra.mxu0 0.0
        %2093 = vmatpush.msra.mxu0 0.0
        %2094 = vmatpush.msra.mxu0 0.0
        %2095 = vmatpush.msra.mxu0 0.0
        %2096 = vmatpush.msra.mxu0 0.0
        %2097 = vmatpush.msra.mxu0 0.0
        %2098 = vmatpush.msra.mxu0 0.0
        %2099 = vmatpush.msra.mxu0 0.0
        %2100 = vmatpush.msra.mxu0 0.0
        %2101 = vmatpush.msra.mxu0 0.0
        %v2102 = vand.u32 %v313, 4294901760
        %v2103 = vsub.f32 %v313, %v2102
        %2104 = vmatpush.msra.mxu0 %v2103
        %v2105 = vand.u32 %v312, 4294901760
        %v2106 = vsub.f32 %v312, %v2105
        %2107 = vmatpush.msra.mxu0 %v2106
        %v2108 = vand.u32 %v2028, 4294901760
        %v2109 = vsub.f32 %v2028, %v2108
        %2110 = vmatmul.f32.gmra.mxu0 %v2109
        %v2111 = vpop.f32.mrf.mxu0
        %v2112 = vadd.f32 %v2086, %v2111
        %2113 = vdwg.mxu0
        %2114 = vmatpush.msra.mxu0 0.0
        %2115 = vmatpush.msra.mxu0 0.0
        %2116 = vmatpush.msra.mxu0 0.0
        %2117 = vmatpush.msra.mxu0 0.0
        %2118 = vmatpush.msra.mxu0 0.0
        %2119 = vmatpush.msra.mxu0 0.0
        %2120 = vmatpush.msra.mxu0 0.0
        %2121 = vmatpush.msra.mxu0 0.0
        %2122 = vmatpush.msra.mxu0 0.0
        %2123 = vmatpush.msra.mxu0 0.0
        %2124 = vmatpush.msra.mxu0 0.0
        %2125 = vmatpush.msra.mxu0 0.0
        %2126 = vmatpush.msra.mxu0 0.0
        %2127 = vmatpush.msra.mxu0 0.0
        %v2128 = vand.u32 %v313, 4294901760
        %2129 = vmatpush.msra.mxu0 %v2128
        %v2130 = vand.u32 %v312, 4294901760
        %2131 = vmatpush.msra.mxu0 %v2130
        %v2132 = vand.u32 %v2028, 4294901760
        %v2133 = vsub.f32 %v2028, %v2132
        %v2134 = vand.u32 %v2133, 4294901760
        %2135 = vmatmul.f32.gmra.mxu0 %v2134
        %v2136 = vpop.f32.mrf.mxu0
        %v2137 = vadd.f32 %v2112, %v2136
        %2138 = vdwg.mxu0
        %2139 = vmatpush.msra.mxu0 0.0
        %2140 = vmatpush.msra.mxu0 0.0
        %2141 = vmatpush.msra.mxu0 0.0
        %2142 = vmatpush.msra.mxu0 0.0
        %2143 = vmatpush.msra.mxu0 0.0
        %2144 = vmatpush.msra.mxu0 0.0
        %2145 = vmatpush.msra.mxu0 0.0
        %2146 = vmatpush.msra.mxu0 0.0
        %2147 = vmatpush.msra.mxu0 0.0
        %2148 = vmatpush.msra.mxu0 0.0
        %2149 = vmatpush.msra.mxu0 0.0
        %2150 = vmatpush.msra.mxu0 0.0
        %2151 = vmatpush.msra.mxu0 0.0
        %2152 = vmatpush.msra.mxu0 0.0
        %v2153 = vand.u32 %v313, 4294901760
        %v2154 = vsub.f32 %v313, %v2153
        %v2155 = vand.u32 %v2154, 4294901760
        %2156 = vmatpush.msra.mxu0 %v2155
        %v2157 = vand.u32 %v312, 4294901760
        %v2158 = vsub.f32 %v312, %v2157
        %v2159 = vand.u32 %v2158, 4294901760
        %2160 = vmatpush.msra.mxu0 %v2159
        %v2161 = vand.u32 %v2028, 4294901760
        %2162 = vmatmul.f32.gmra.mxu0 %v2161
        %v2163 = vpop.f32.mrf.mxu0
        %v2164 = vadd.f32 %v2137, %v2163
        %2165 = vdwg.mxu0
        %2166 = vmatpush.msra.mxu0 0.0
        %2167 = vmatpush.msra.mxu0 0.0
        %2168 = vmatpush.msra.mxu0 0.0
        %2169 = vmatpush.msra.mxu0 0.0
        %2170 = vmatpush.msra.mxu0 0.0
        %2171 = vmatpush.msra.mxu0 0.0
        %2172 = vmatpush.msra.mxu0 0.0
        %2173 = vmatpush.msra.mxu0 0.0
        %2174 = vmatpush.msra.mxu0 0.0
        %2175 = vmatpush.msra.mxu0 0.0
        %2176 = vmatpush.msra.mxu0 0.0
        %2177 = vmatpush.msra.mxu0 0.0
        %2178 = vmatpush.msra.mxu0 0.0
        %2179 = vmatpush.msra.mxu0 0.0
        %v2180 = vand.u32 %v313, 4294901760
        %2181 = vmatpush.msra.mxu0 %v2180
        %v2182 = vand.u32 %v312, 4294901760
        %2183 = vmatpush.msra.mxu0 %v2182
        %v2184 = vand.u32 %v2028, 4294901760
        %2185 = vmatmul.f32.gmra.mxu0 %v2184
        %v2186 = vpop.f32.mrf.mxu0
        %v2187 = vadd.f32 %v2164, %v2186
        %2188 = vdwg.mxu0
        %2189 = vmatpush.msra.mxu0 0.0
        %2190 = vmatpush.msra.mxu0 0.0
        %2191 = vmatpush.msra.mxu0 0.0
        %2192 = vmatpush.msra.mxu0 0.0
        %2193 = vmatpush.msra.mxu0 0.0
        %2194 = vmatpush.msra.mxu0 0.0
        %2195 = vmatpush.msra.mxu0 0.0
        %2196 = vmatpush.msra.mxu0 0.0
        %2197 = vmatpush.msra.mxu0 0.0
        %2198 = vmatpush.msra.mxu0 0.0
        %2199 = vmatpush.msra.mxu0 0.0
        %2200 = vmatpush.msra.mxu0 0.0
        %2201 = vmatpush.msra.mxu0 0.0
        %2202 = vmatpush.msra.mxu0 0.0
        %v2203 = vand.u32 %v316, 4294901760
        %2204 = vmatpush.msra.mxu0 %v2203
        %v2205 = vand.u32 %v315, 4294901760
        %2206 = vmatpush.msra.mxu0 %v2205
        %v2207 = vand.u32 %v2028, 4294901760
        %v2208 = vsub.f32 %v2028, %v2207
        %v2209 = vand.u32 %v2208, 4294901760
        %v2210 = vsub.f32 %v2208, %v2209
        %v2211 = vand.u32 %v2210, 4294901760
        %2212 = vmatmul.f32.gmra.mxu0 %v2211
        %v2213 = vpop.f32.mrf.mxu0
        %v2214 = vadd.f32 0.0, %v2213
        %2215 = vdwg.mxu0
        %2216 = vmatpush.msra.mxu0 0.0
        %2217 = vmatpush.msra.mxu0 0.0
        %2218 = vmatpush.msra.mxu0 0.0
        %2219 = vmatpush.msra.mxu0 0.0
        %2220 = vmatpush.msra.mxu0 0.0
        %2221 = vmatpush.msra.mxu0 0.0
        %2222 = vmatpush.msra.mxu0 0.0
        %2223 = vmatpush.msra.mxu0 0.0
        %2224 = vmatpush.msra.mxu0 0.0
        %2225 = vmatpush.msra.mxu0 0.0
        %2226 = vmatpush.msra.mxu0 0.0
        %2227 = vmatpush.msra.mxu0 0.0
        %2228 = vmatpush.msra.mxu0 0.0
        %2229 = vmatpush.msra.mxu0 0.0
        %v2230 = vand.u32 %v316, 4294901760
        %v2231 = vsub.f32 %v316, %v2230
        %v2232 = vand.u32 %v2231, 4294901760
        %v2233 = vsub.f32 %v2231, %v2232
        %v2234 = vand.u32 %v2233, 4294901760
        %2235 = vmatpush.msra.mxu0 %v2234
        %v2236 = vand.u32 %v315, 4294901760
        %v2237 = vsub.f32 %v315, %v2236
        %v2238 = vand.u32 %v2237, 4294901760
        %v2239 = vsub.f32 %v2237, %v2238
        %v2240 = vand.u32 %v2239, 4294901760
        %2241 = vmatpush.msra.mxu0 %v2240
        %v2242 = vand.u32 %v2028, 4294901760
        %2243 = vmatmul.f32.gmra.mxu0 %v2242
        %v2244 = vpop.f32.mrf.mxu0
        %v2245 = vadd.f32 %v2214, %v2244
        %2246 = vdwg.mxu0
        %2247 = vmatpush.msra.mxu0 0.0
        %2248 = vmatpush.msra.mxu0 0.0
        %2249 = vmatpush.msra.mxu0 0.0
        %2250 = vmatpush.msra.mxu0 0.0
        %2251 = vmatpush.msra.mxu0 0.0
        %2252 = vmatpush.msra.mxu0 0.0
        %2253 = vmatpush.msra.mxu0 0.0
        %2254 = vmatpush.msra.mxu0 0.0
        %2255 = vmatpush.msra.mxu0 0.0
        %2256 = vmatpush.msra.mxu0 0.0
        %2257 = vmatpush.msra.mxu0 0.0
        %2258 = vmatpush.msra.mxu0 0.0
        %2259 = vmatpush.msra.mxu0 0.0
        %2260 = vmatpush.msra.mxu0 0.0
        %v2261 = vand.u32 %v316, 4294901760
        %v2262 = vsub.f32 %v316, %v2261
        %2263 = vmatpush.msra.mxu0 %v2262
        %v2264 = vand.u32 %v315, 4294901760
        %v2265 = vsub.f32 %v315, %v2264
        %2266 = vmatpush.msra.mxu0 %v2265
        %v2267 = vand.u32 %v2028, 4294901760
        %v2268 = vsub.f32 %v2028, %v2267
        %2269 = vmatmul.f32.gmra.mxu0 %v2268
        %v2270 = vpop.f32.mrf.mxu0
        %v2271 = vadd.f32 %v2245, %v2270
        %2272 = vdwg.mxu0
        %2273 = vmatpush.msra.mxu0 0.0
        %2274 = vmatpush.msra.mxu0 0.0
        %2275 = vmatpush.msra.mxu0 0.0
        %2276 = vmatpush.msra.mxu0 0.0
        %2277 = vmatpush.msra.mxu0 0.0
        %2278 = vmatpush.msra.mxu0 0.0
        %2279 = vmatpush.msra.mxu0 0.0
        %2280 = vmatpush.msra.mxu0 0.0
        %2281 = vmatpush.msra.mxu0 0.0
        %2282 = vmatpush.msra.mxu0 0.0
        %2283 = vmatpush.msra.mxu0 0.0
        %2284 = vmatpush.msra.mxu0 0.0
        %2285 = vmatpush.msra.mxu0 0.0
        %2286 = vmatpush.msra.mxu0 0.0
        %v2287 = vand.u32 %v316, 4294901760
        %2288 = vmatpush.msra.mxu0 %v2287
        %v2289 = vand.u32 %v315, 4294901760
        %2290 = vmatpush.msra.mxu0 %v2289
        %v2291 = vand.u32 %v2028, 4294901760
        %v2292 = vsub.f32 %v2028, %v2291
        %v2293 = vand.u32 %v2292, 4294901760
        %2294 = vmatmul.f32.gmra.mxu0 %v2293
        %v2295 = vpop.f32.mrf.mxu0
        %v2296 = vadd.f32 %v2271, %v2295
        %2297 = vdwg.mxu0
        %2298 = vmatpush.msra.mxu0 0.0
        %2299 = vmatpush.msra.mxu0 0.0
        %2300 = vmatpush.msra.mxu0 0.0
        %2301 = vmatpush.msra.mxu0 0.0
        %2302 = vmatpush.msra.mxu0 0.0
        %2303 = vmatpush.msra.mxu0 0.0
        %2304 = vmatpush.msra.mxu0 0.0
        %2305 = vmatpush.msra.mxu0 0.0
        %2306 = vmatpush.msra.mxu0 0.0
        %2307 = vmatpush.msra.mxu0 0.0
        %2308 = vmatpush.msra.mxu0 0.0
        %2309 = vmatpush.msra.mxu0 0.0
        %2310 = vmatpush.msra.mxu0 0.0
        %2311 = vmatpush.msra.mxu0 0.0
        %v2312 = vand.u32 %v316, 4294901760
        %v2313 = vsub.f32 %v316, %v2312
        %v2314 = vand.u32 %v2313, 4294901760
        %2315 = vmatpush.msra.mxu0 %v2314
        %v2316 = vand.u32 %v315, 4294901760
        %v2317 = vsub.f32 %v315, %v2316
        %v2318 = vand.u32 %v2317, 4294901760
        %2319 = vmatpush.msra.mxu0 %v2318
        %v2320 = vand.u32 %v2028, 4294901760
        %2321 = vmatmul.f32.gmra.mxu0 %v2320
        %v2322 = vpop.f32.mrf.mxu0
        %v2323 = vadd.f32 %v2296, %v2322
        %2324 = vdwg.mxu0
        %2325 = vmatpush.msra.mxu0 0.0
        %2326 = vmatpush.msra.mxu0 0.0
        %2327 = vmatpush.msra.mxu0 0.0
        %2328 = vmatpush.msra.mxu0 0.0
        %2329 = vmatpush.msra.mxu0 0.0
        %2330 = vmatpush.msra.mxu0 0.0
        %2331 = vmatpush.msra.mxu0 0.0
        %2332 = vmatpush.msra.mxu0 0.0
        %2333 = vmatpush.msra.mxu0 0.0
        %2334 = vmatpush.msra.mxu0 0.0
        %2335 = vmatpush.msra.mxu0 0.0
        %2336 = vmatpush.msra.mxu0 0.0
        %2337 = vmatpush.msra.mxu0 0.0
        %2338 = vmatpush.msra.mxu0 0.0
        %v2339 = vand.u32 %v316, 4294901760
        %2340 = vmatpush.msra.mxu0 %v2339
        %v2341 = vand.u32 %v315, 4294901760
        %2342 = vmatpush.msra.mxu0 %v2341
        %v2343 = vand.u32 %v2028, 4294901760
        %2344 = vmatmul.f32.gmra.mxu0 %v2343
        %v2345 = vpop.f32.mrf.mxu0
        %v2346 = vadd.f32 %v2323, %v2345
        %2347 = vdwg.mxu0
        %s2348 = vtos %v318
        %v2349 = vstv %s2348
        %v2350 = vmul.f32 %v2349, %v1866
        %2351 = vrot.lane.b32.xlu0 %v318, 127
        %v2352 = vpop.permute.xlu0 %2351
        %s2353 = vtos %v2352
        %v2354 = vstv %s2353
        %v2355 = vmul.f32 %v2354, %v2025
        %v2356 = vadd.f32 %v2350, %v2355
        %2357 = vrot.lane.b32.xlu0 %v318, 126
        %v2358 = vpop.permute.xlu0 %2357
        %s2359 = vtos %v2358
        %v2360 = vstv %s2359
        %v2361 = vmul.f32 %v2360, %v2187
        %v2362 = vadd.f32 %v2356, %v2361
        %2363 = vrot.lane.b32.xlu0 %v318, 125
        %v2364 = vpop.permute.xlu0 %2363
        %s2365 = vtos %v2364
        %v2366 = vstv %s2365
        %v2367 = vmul.f32 %v2366, %v2346
        %v2368 = vadd.f32 %v2362, %v2367
        %s2369 = scalar_lea.vmem %s307, 32
        %2370 = vst.msk [vmem:[%s2369] sm:$0xff] %vm1311, %v2368
        %v2371 = vrot.slane %v318, 1
        %s2372 = vtos %v2371
        %v2373 = vstv %s2372
        %v2374 = vmul.f32 %v2373, %v1866
        %2375 = vrot.lane.b32.xlu0 %v2371, 127
        %v2376 = vpop.permute.xlu0 %2375
        %s2377 = vtos %v2376
        %v2378 = vstv %s2377
        %v2379 = vmul.f32 %v2378, %v2025
        %v2380 = vadd.f32 %v2374, %v2379
        %2381 = vrot.lane.b32.xlu0 %v2371, 126
        %v2382 = vpop.permute.xlu0 %2381
        %s2383 = vtos %v2382
        %v2384 = vstv %s2383
        %v2385 = vmul.f32 %v2384, %v2187
        %v2386 = vadd.f32 %v2380, %v2385
        %2387 = vrot.lane.b32.xlu0 %v2371, 125
        %v2388 = vpop.permute.xlu0 %2387
        %s2389 = vtos %v2388
        %v2390 = vstv %s2389
        %v2391 = vmul.f32 %v2390, %v2346
        %v2392 = vadd.f32 %v2386, %v2391
        %s2393 = scalar_lea.vmem %s307, 40
        %2394 = vst.msk [vmem:[%s2393] sm:$0xff] %vm1311, %v2392
        %v2395 = vrot.slane %v318, 2
        %s2396 = vtos %v2395
        %v2397 = vstv %s2396
        %v2398 = vmul.f32 %v2397, %v1866
        %2399 = vrot.lane.b32.xlu0 %v2395, 127
        %v2400 = vpop.permute.xlu0 %2399
        %s2401 = vtos %v2400
        %v2402 = vstv %s2401
        %v2403 = vmul.f32 %v2402, %v2025
        %v2404 = vadd.f32 %v2398, %v2403
        %2405 = vrot.lane.b32.xlu0 %v2395, 126
        %v2406 = vpop.permute.xlu0 %2405
        %s2407 = vtos %v2406
        %v2408 = vstv %s2407
        %v2409 = vmul.f32 %v2408, %v2187
        %v2410 = vadd.f32 %v2404, %v2409
        %2411 = vrot.lane.b32.xlu0 %v2395, 125
        %v2412 = vpop.permute.xlu0 %2411
        %s2413 = vtos %v2412
        %v2414 = vstv %s2413
        %v2415 = vmul.f32 %v2414, %v2346
        %v2416 = vadd.f32 %v2410, %v2415
        %s2417 = scalar_lea.vmem %s307, 48
        %2418 = vst.msk [vmem:[%s2417] sm:$0xff] %vm1311, %v2416
        %v2419 = vrot.slane %v318, 3
        %s2420 = vtos %v2419
        %v2421 = vstv %s2420
        %v2422 = vmul.f32 %v2421, %v1866
        %2423 = vrot.lane.b32.xlu0 %v2419, 127
        %v2424 = vpop.permute.xlu0 %2423
        %s2425 = vtos %v2424
        %v2426 = vstv %s2425
        %v2427 = vmul.f32 %v2426, %v2025
        %v2428 = vadd.f32 %v2422, %v2427
        %2429 = vrot.lane.b32.xlu0 %v2419, 126
        %v2430 = vpop.permute.xlu0 %2429
        %s2431 = vtos %v2430
        %v2432 = vstv %s2431
        %v2433 = vmul.f32 %v2432, %v2187
        %v2434 = vadd.f32 %v2428, %v2433
        %2435 = vrot.lane.b32.xlu0 %v2419, 125
        %v2436 = vpop.permute.xlu0 %2435
        %s2437 = vtos %v2436
        %v2438 = vstv %s2437
        %v2439 = vmul.f32 %v2438, %v2346
        %v2440 = vadd.f32 %v2434, %v2439
        %s2441 = scalar_lea.vmem %s307, 56
        %2442 = vst.msk [vmem:[%s2441] sm:$0xff] %vm1311, %v2440
        %s2443 = scalar_lea.vmem %s244, 32 [#allocation2]
        %v2444 = vld [vmem:[%s2443] sm:$0xff]
        %v2445 = vld [vmem:[%s2443 + $0x8] sm:$0xff]
        %2446 = vmatpush.msra.mxu0 0.0
        %2447 = vmatpush.msra.mxu0 0.0
        %2448 = vmatpush.msra.mxu0 0.0
        %2449 = vmatpush.msra.mxu0 0.0
        %2450 = vmatpush.msra.mxu0 0.0
        %2451 = vmatpush.msra.mxu0 0.0
        %2452 = vmatpush.msra.mxu0 0.0
        %2453 = vmatpush.msra.mxu0 0.0
        %2454 = vmatpush.msra.mxu0 0.0
        %2455 = vmatpush.msra.mxu0 0.0
        %2456 = vmatpush.msra.mxu0 0.0
        %2457 = vmatpush.msra.mxu0 0.0
        %2458 = vmatpush.msra.mxu0 0.0
        %2459 = vmatpush.msra.mxu0 0.0
        %v2460 = vand.u32 %v2445, 4294901760
        %2461 = vmatpush.msra.mxu0 %v2460
        %v2462 = vand.u32 %v2444, 4294901760
        %2463 = vmatpush.msra.mxu0 %v2462
        %v2464 = vand.u32 %v325, 4294901760
        %v2465 = vsub.f32 %v325, %v2464
        %v2466 = vand.u32 %v2465, 4294901760
        %v2467 = vsub.f32 %v2465, %v2466
        %v2468 = vand.u32 %v2467, 4294901760
        %2469 = vmatmul.f32.gmra.mxu0 %v2468
        %v2470 = vpop.f32.mrf.mxu0
        %v2471 = vadd.f32 0.0, %v2470
        %2472 = vdwg.mxu0
        %2473 = vmatpush.msra.mxu0 0.0
        %2474 = vmatpush.msra.mxu0 0.0
        %2475 = vmatpush.msra.mxu0 0.0
        %2476 = vmatpush.msra.mxu0 0.0
        %2477 = vmatpush.msra.mxu0 0.0
        %2478 = vmatpush.msra.mxu0 0.0
        %2479 = vmatpush.msra.mxu0 0.0
        %2480 = vmatpush.msra.mxu0 0.0
        %2481 = vmatpush.msra.mxu0 0.0
        %2482 = vmatpush.msra.mxu0 0.0
        %2483 = vmatpush.msra.mxu0 0.0
        %2484 = vmatpush.msra.mxu0 0.0
        %2485 = vmatpush.msra.mxu0 0.0
        %2486 = vmatpush.msra.mxu0 0.0
        %v2487 = vand.u32 %v2445, 4294901760
        %v2488 = vsub.f32 %v2445, %v2487
        %v2489 = vand.u32 %v2488, 4294901760
        %v2490 = vsub.f32 %v2488, %v2489
        %v2491 = vand.u32 %v2490, 4294901760
        %2492 = vmatpush.msra.mxu0 %v2491
        %v2493 = vand.u32 %v2444, 4294901760
        %v2494 = vsub.f32 %v2444, %v2493
        %v2495 = vand.u32 %v2494, 4294901760
        %v2496 = vsub.f32 %v2494, %v2495
        %v2497 = vand.u32 %v2496, 4294901760
        %2498 = vmatpush.msra.mxu0 %v2497
        %v2499 = vand.u32 %v325, 4294901760
        %2500 = vmatmul.f32.gmra.mxu0 %v2499
        %v2501 = vpop.f32.mrf.mxu0
        %v2502 = vadd.f32 %v2471, %v2501
        %2503 = vdwg.mxu0
        %2504 = vmatpush.msra.mxu0 0.0
        %2505 = vmatpush.msra.mxu0 0.0
        %2506 = vmatpush.msra.mxu0 0.0
        %2507 = vmatpush.msra.mxu0 0.0
        %2508 = vmatpush.msra.mxu0 0.0
        %2509 = vmatpush.msra.mxu0 0.0
        %2510 = vmatpush.msra.mxu0 0.0
        %2511 = vmatpush.msra.mxu0 0.0
        %2512 = vmatpush.msra.mxu0 0.0
        %2513 = vmatpush.msra.mxu0 0.0
        %2514 = vmatpush.msra.mxu0 0.0
        %2515 = vmatpush.msra.mxu0 0.0
        %2516 = vmatpush.msra.mxu0 0.0
        %2517 = vmatpush.msra.mxu0 0.0
        %v2518 = vand.u32 %v2445, 4294901760
        %v2519 = vsub.f32 %v2445, %v2518
        %2520 = vmatpush.msra.mxu0 %v2519
        %v2521 = vand.u32 %v2444, 4294901760
        %v2522 = vsub.f32 %v2444, %v2521
        %2523 = vmatpush.msra.mxu0 %v2522
        %v2524 = vand.u32 %v325, 4294901760
        %v2525 = vsub.f32 %v325, %v2524
        %2526 = vmatmul.f32.gmra.mxu0 %v2525
        %v2527 = vpop.f32.mrf.mxu0
        %v2528 = vadd.f32 %v2502, %v2527
        %2529 = vdwg.mxu0
        %2530 = vmatpush.msra.mxu0 0.0
        %2531 = vmatpush.msra.mxu0 0.0
        %2532 = vmatpush.msra.mxu0 0.0
        %2533 = vmatpush.msra.mxu0 0.0
        %2534 = vmatpush.msra.mxu0 0.0
        %2535 = vmatpush.msra.mxu0 0.0
        %2536 = vmatpush.msra.mxu0 0.0
        %2537 = vmatpush.msra.mxu0 0.0
        %2538 = vmatpush.msra.mxu0 0.0
        %2539 = vmatpush.msra.mxu0 0.0
        %2540 = vmatpush.msra.mxu0 0.0
        %2541 = vmatpush.msra.mxu0 0.0
        %2542 = vmatpush.msra.mxu0 0.0
        %2543 = vmatpush.msra.mxu0 0.0
        %v2544 = vand.u32 %v2445, 4294901760
        %2545 = vmatpush.msra.mxu0 %v2544
        %v2546 = vand.u32 %v2444, 4294901760
        %2547 = vmatpush.msra.mxu0 %v2546
        %v2548 = vand.u32 %v325, 4294901760
        %v2549 = vsub.f32 %v325, %v2548
        %v2550 = vand.u32 %v2549, 4294901760
        %2551 = vmatmul.f32.gmra.mxu0 %v2550
        %v2552 = vpop.f32.mrf.mxu0
        %v2553 = vadd.f32 %v2528, %v2552
        %2554 = vdwg.mxu0
        %2555 = vmatpush.msra.mxu0 0.0
        %2556 = vmatpush.msra.mxu0 0.0
        %2557 = vmatpush.msra.mxu0 0.0
        %2558 = vmatpush.msra.mxu0 0.0
        %2559 = vmatpush.msra.mxu0 0.0
        %2560 = vmatpush.msra.mxu0 0.0
        %2561 = vmatpush.msra.mxu0 0.0
        %2562 = vmatpush.msra.mxu0 0.0
        %2563 = vmatpush.msra.mxu0 0.0
        %2564 = vmatpush.msra.mxu0 0.0
        %2565 = vmatpush.msra.mxu0 0.0
        %2566 = vmatpush.msra.mxu0 0.0
        %2567 = vmatpush.msra.mxu0 0.0
        %2568 = vmatpush.msra.mxu0 0.0
        %v2569 = vand.u32 %v2445, 4294901760
        %v2570 = vsub.f32 %v2445, %v2569
        %v2571 = vand.u32 %v2570, 4294901760
        %2572 = vmatpush.msra.mxu0 %v2571
        %v2573 = vand.u32 %v2444, 4294901760
        %v2574 = vsub.f32 %v2444, %v2573
        %v2575 = vand.u32 %v2574, 4294901760
        %2576 = vmatpush.msra.mxu0 %v2575
        %v2577 = vand.u32 %v325, 4294901760
        %2578 = vmatmul.f32.gmra.mxu0 %v2577
        %v2579 = vpop.f32.mrf.mxu0
        %v2580 = vadd.f32 %v2553, %v2579
        %2581 = vdwg.mxu0
        %2582 = vmatpush.msra.mxu0 0.0
        %2583 = vmatpush.msra.mxu0 0.0
        %2584 = vmatpush.msra.mxu0 0.0
        %2585 = vmatpush.msra.mxu0 0.0
        %2586 = vmatpush.msra.mxu0 0.0
        %2587 = vmatpush.msra.mxu0 0.0
        %2588 = vmatpush.msra.mxu0 0.0
        %2589 = vmatpush.msra.mxu0 0.0
        %2590 = vmatpush.msra.mxu0 0.0
        %2591 = vmatpush.msra.mxu0 0.0
        %2592 = vmatpush.msra.mxu0 0.0
        %2593 = vmatpush.msra.mxu0 0.0
        %2594 = vmatpush.msra.mxu0 0.0
        %2595 = vmatpush.msra.mxu0 0.0
        %v2596 = vand.u32 %v2445, 4294901760
        %2597 = vmatpush.msra.mxu0 %v2596
        %v2598 = vand.u32 %v2444, 4294901760
        %2599 = vmatpush.msra.mxu0 %v2598
        %v2600 = vand.u32 %v325, 4294901760
        %2601 = vmatmul.f32.gmra.mxu0 %v2600
        %v2602 = vpop.f32.mrf.mxu0
        %v2603 = vadd.f32 %v2580, %v2602
        %2604 = vdwg.mxu0
        %2605 = vmatpush.msra.mxu0 0.0
        %2606 = vmatpush.msra.mxu0 0.0
        %2607 = vmatpush.msra.mxu0 0.0
        %2608 = vmatpush.msra.mxu0 0.0
        %2609 = vmatpush.msra.mxu0 0.0
        %2610 = vmatpush.msra.mxu0 0.0
        %2611 = vmatpush.msra.mxu0 0.0
        %2612 = vmatpush.msra.mxu0 0.0
        %2613 = vmatpush.msra.mxu0 0.0
        %2614 = vmatpush.msra.mxu0 0.0
        %2615 = vmatpush.msra.mxu0 0.0
        %2616 = vmatpush.msra.mxu0 0.0
        %2617 = vmatpush.msra.mxu0 0.0
        %2618 = vmatpush.msra.mxu0 0.0
        %v2619 = vand.u32 %v2445, 4294901760
        %2620 = vmatpush.msra.mxu0 %v2619
        %v2621 = vand.u32 %v2444, 4294901760
        %2622 = vmatpush.msra.mxu0 %v2621
        %v2623 = vand.u32 %v487, 4294901760
        %v2624 = vsub.f32 %v487, %v2623
        %v2625 = vand.u32 %v2624, 4294901760
        %v2626 = vsub.f32 %v2624, %v2625
        %v2627 = vand.u32 %v2626, 4294901760
        %2628 = vmatmul.f32.gmra.mxu0 %v2627
        %v2629 = vpop.f32.mrf.mxu0
        %v2630 = vadd.f32 0.0, %v2629
        %2631 = vdwg.mxu0
        %2632 = vmatpush.msra.mxu0 0.0
        %2633 = vmatpush.msra.mxu0 0.0
        %2634 = vmatpush.msra.mxu0 0.0
        %2635 = vmatpush.msra.mxu0 0.0
        %2636 = vmatpush.msra.mxu0 0.0
        %2637 = vmatpush.msra.mxu0 0.0
        %2638 = vmatpush.msra.mxu0 0.0
        %2639 = vmatpush.msra.mxu0 0.0
        %2640 = vmatpush.msra.mxu0 0.0
        %2641 = vmatpush.msra.mxu0 0.0
        %2642 = vmatpush.msra.mxu0 0.0
        %2643 = vmatpush.msra.mxu0 0.0
        %2644 = vmatpush.msra.mxu0 0.0
        %2645 = vmatpush.msra.mxu0 0.0
        %v2646 = vand.u32 %v2445, 4294901760
        %v2647 = vsub.f32 %v2445, %v2646
        %v2648 = vand.u32 %v2647, 4294901760
        %v2649 = vsub.f32 %v2647, %v2648
        %v2650 = vand.u32 %v2649, 4294901760
        %2651 = vmatpush.msra.mxu0 %v2650
        %v2652 = vand.u32 %v2444, 4294901760
        %v2653 = vsub.f32 %v2444, %v2652
        %v2654 = vand.u32 %v2653, 4294901760
        %v2655 = vsub.f32 %v2653, %v2654
        %v2656 = vand.u32 %v2655, 4294901760
        %2657 = vmatpush.msra.mxu0 %v2656
        %v2658 = vand.u32 %v487, 4294901760
        %2659 = vmatmul.f32.gmra.mxu0 %v2658
        %v2660 = vpop.f32.mrf.mxu0
        %v2661 = vadd.f32 %v2630, %v2660
        %2662 = vdwg.mxu0
        %2663 = vmatpush.msra.mxu0 0.0
        %2664 = vmatpush.msra.mxu0 0.0
        %2665 = vmatpush.msra.mxu0 0.0
        %2666 = vmatpush.msra.mxu0 0.0
        %2667 = vmatpush.msra.mxu0 0.0
        %2668 = vmatpush.msra.mxu0 0.0
        %2669 = vmatpush.msra.mxu0 0.0
        %2670 = vmatpush.msra.mxu0 0.0
        %2671 = vmatpush.msra.mxu0 0.0
        %2672 = vmatpush.msra.mxu0 0.0
        %2673 = vmatpush.msra.mxu0 0.0
        %2674 = vmatpush.msra.mxu0 0.0
        %2675 = vmatpush.msra.mxu0 0.0
        %2676 = vmatpush.msra.mxu0 0.0
        %v2677 = vand.u32 %v2445, 4294901760
        %v2678 = vsub.f32 %v2445, %v2677
        %2679 = vmatpush.msra.mxu0 %v2678
        %v2680 = vand.u32 %v2444, 4294901760
        %v2681 = vsub.f32 %v2444, %v2680
        %2682 = vmatpush.msra.mxu0 %v2681
        %v2683 = vand.u32 %v487, 4294901760
        %v2684 = vsub.f32 %v487, %v2683
        %2685 = vmatmul.f32.gmra.mxu0 %v2684
        %v2686 = vpop.f32.mrf.mxu0
        %v2687 = vadd.f32 %v2661, %v2686
        %2688 = vdwg.mxu0
        %2689 = vmatpush.msra.mxu0 0.0
        %2690 = vmatpush.msra.mxu0 0.0
        %2691 = vmatpush.msra.mxu0 0.0
        %2692 = vmatpush.msra.mxu0 0.0
        %2693 = vmatpush.msra.mxu0 0.0
        %2694 = vmatpush.msra.mxu0 0.0
        %2695 = vmatpush.msra.mxu0 0.0
        %2696 = vmatpush.msra.mxu0 0.0
        %2697 = vmatpush.msra.mxu0 0.0
        %2698 = vmatpush.msra.mxu0 0.0
        %2699 = vmatpush.msra.mxu0 0.0
        %2700 = vmatpush.msra.mxu0 0.0
        %2701 = vmatpush.msra.mxu0 0.0
        %2702 = vmatpush.msra.mxu0 0.0
        %v2703 = vand.u32 %v2445, 4294901760
        %2704 = vmatpush.msra.mxu0 %v2703
        %v2705 = vand.u32 %v2444, 4294901760
        %2706 = vmatpush.msra.mxu0 %v2705
        %v2707 = vand.u32 %v487, 4294901760
        %v2708 = vsub.f32 %v487, %v2707
        %v2709 = vand.u32 %v2708, 4294901760
        %2710 = vmatmul.f32.gmra.mxu0 %v2709
        %v2711 = vpop.f32.mrf.mxu0
        %v2712 = vadd.f32 %v2687, %v2711
        %2713 = vdwg.mxu0
        %2714 = vmatpush.msra.mxu0 0.0
        %2715 = vmatpush.msra.mxu0 0.0
        %2716 = vmatpush.msra.mxu0 0.0
        %2717 = vmatpush.msra.mxu0 0.0
        %2718 = vmatpush.msra.mxu0 0.0
        %2719 = vmatpush.msra.mxu0 0.0
        %2720 = vmatpush.msra.mxu0 0.0
        %2721 = vmatpush.msra.mxu0 0.0
        %2722 = vmatpush.msra.mxu0 0.0
        %2723 = vmatpush.msra.mxu0 0.0
        %2724 = vmatpush.msra.mxu0 0.0
        %2725 = vmatpush.msra.mxu0 0.0
        %2726 = vmatpush.msra.mxu0 0.0
        %2727 = vmatpush.msra.mxu0 0.0
        %v2728 = vand.u32 %v2445, 4294901760
        %v2729 = vsub.f32 %v2445, %v2728
        %v2730 = vand.u32 %v2729, 4294901760
        %2731 = vmatpush.msra.mxu0 %v2730
        %v2732 = vand.u32 %v2444, 4294901760
        %v2733 = vsub.f32 %v2444, %v2732
        %v2734 = vand.u32 %v2733, 4294901760
        %2735 = vmatpush.msra.mxu0 %v2734
        %v2736 = vand.u32 %v487, 4294901760
        %2737 = vmatmul.f32.gmra.mxu0 %v2736
        %v2738 = vpop.f32.mrf.mxu0
        %v2739 = vadd.f32 %v2712, %v2738
        %2740 = vdwg.mxu0
        %2741 = vmatpush.msra.mxu0 0.0
        %2742 = vmatpush.msra.mxu0 0.0
        %2743 = vmatpush.msra.mxu0 0.0
        %2744 = vmatpush.msra.mxu0 0.0
        %2745 = vmatpush.msra.mxu0 0.0
        %2746 = vmatpush.msra.mxu0 0.0
        %2747 = vmatpush.msra.mxu0 0.0
        %2748 = vmatpush.msra.mxu0 0.0
        %2749 = vmatpush.msra.mxu0 0.0
        %2750 = vmatpush.msra.mxu0 0.0
        %2751 = vmatpush.msra.mxu0 0.0
        %2752 = vmatpush.msra.mxu0 0.0
        %2753 = vmatpush.msra.mxu0 0.0
        %2754 = vmatpush.msra.mxu0 0.0
        %v2755 = vand.u32 %v2445, 4294901760
        %2756 = vmatpush.msra.mxu0 %v2755
        %v2757 = vand.u32 %v2444, 4294901760
        %2758 = vmatpush.msra.mxu0 %v2757
        %v2759 = vand.u32 %v487, 4294901760
        %2760 = vmatmul.f32.gmra.mxu0 %v2759
        %v2761 = vpop.f32.mrf.mxu0
        %v2762 = vadd.f32 %v2739, %v2761
        %2763 = vdwg.mxu0
        %v2765 = vsel %vm323, %v2603, 0
        %2767 = vmatpush.msra.mxu0 0.0
        %2768 = vmatpush.msra.mxu0 0.0
        %2769 = vmatpush.msra.mxu0 0.0
        %2770 = vmatpush.msra.mxu0 0.0
        %2771 = vmatpush.msra.mxu0 0.0
        %2772 = vmatpush.msra.mxu0 0.0
        %2773 = vmatpush.msra.mxu0 0.0
        %2774 = vmatpush.msra.mxu0 0.0
        %2775 = vmatpush.msra.mxu0 0.0
        %2776 = vmatpush.msra.mxu0 0.0
        %2777 = vmatpush.msra.mxu0 0.0
        %2778 = vmatpush.msra.mxu0 0.0
        %2779 = vmatpush.msra.mxu0 0.0
        %2780 = vmatpush.msra.mxu0 0.0
        %v2781 = vand.u32 %v313, 4294901760
        %2782 = vmatpush.msra.mxu0 %v2781
        %v2783 = vand.u32 %v312, 4294901760
        %2784 = vmatpush.msra.mxu0 %v2783
        %v2785 = vand.u32 %v2765, 4294901760
        %v2786 = vsub.f32 %v2765, %v2785
        %v2787 = vand.u32 %v2786, 4294901760
        %v2788 = vsub.f32 %v2786, %v2787
        %v2789 = vand.u32 %v2788, 4294901760
        %2790 = vmatmul.f32.gmra.mxu0 %v2789
        %v2791 = vpop.f32.mrf.mxu0
        %v2792 = vadd.f32 0.0, %v2791
        %2793 = vdwg.mxu0
        %2794 = vmatpush.msra.mxu0 0.0
        %2795 = vmatpush.msra.mxu0 0.0
        %2796 = vmatpush.msra.mxu0 0.0
        %2797 = vmatpush.msra.mxu0 0.0
        %2798 = vmatpush.msra.mxu0 0.0
        %2799 = vmatpush.msra.mxu0 0.0
        %2800 = vmatpush.msra.mxu0 0.0
        %2801 = vmatpush.msra.mxu0 0.0
        %2802 = vmatpush.msra.mxu0 0.0
        %2803 = vmatpush.msra.mxu0 0.0
        %2804 = vmatpush.msra.mxu0 0.0
        %2805 = vmatpush.msra.mxu0 0.0
        %2806 = vmatpush.msra.mxu0 0.0
        %2807 = vmatpush.msra.mxu0 0.0
        %v2808 = vand.u32 %v313, 4294901760
        %v2809 = vsub.f32 %v313, %v2808
        %v2810 = vand.u32 %v2809, 4294901760
        %v2811 = vsub.f32 %v2809, %v2810
        %v2812 = vand.u32 %v2811, 4294901760
        %2813 = vmatpush.msra.mxu0 %v2812
        %v2814 = vand.u32 %v312, 4294901760
        %v2815 = vsub.f32 %v312, %v2814
        %v2816 = vand.u32 %v2815, 4294901760
        %v2817 = vsub.f32 %v2815, %v2816
        %v2818 = vand.u32 %v2817, 4294901760
        %2819 = vmatpush.msra.mxu0 %v2818
        %v2820 = vand.u32 %v2765, 4294901760
        %2821 = vmatmul.f32.gmra.mxu0 %v2820
        %v2822 = vpop.f32.mrf.mxu0
        %v2823 = vadd.f32 %v2792, %v2822
        %2824 = vdwg.mxu0
        %2825 = vmatpush.msra.mxu0 0.0
        %2826 = vmatpush.msra.mxu0 0.0
        %2827 = vmatpush.msra.mxu0 0.0
        %2828 = vmatpush.msra.mxu0 0.0
        %2829 = vmatpush.msra.mxu0 0.0
        %2830 = vmatpush.msra.mxu0 0.0
        %2831 = vmatpush.msra.mxu0 0.0
        %2832 = vmatpush.msra.mxu0 0.0
        %2833 = vmatpush.msra.mxu0 0.0
        %2834 = vmatpush.msra.mxu0 0.0
        %2835 = vmatpush.msra.mxu0 0.0
        %2836 = vmatpush.msra.mxu0 0.0
        %2837 = vmatpush.msra.mxu0 0.0
        %2838 = vmatpush.msra.mxu0 0.0
        %v2839 = vand.u32 %v313, 4294901760
        %v2840 = vsub.f32 %v313, %v2839
        %2841 = vmatpush.msra.mxu0 %v2840
        %v2842 = vand.u32 %v312, 4294901760
        %v2843 = vsub.f32 %v312, %v2842
        %2844 = vmatpush.msra.mxu0 %v2843
        %v2845 = vand.u32 %v2765, 4294901760
        %v2846 = vsub.f32 %v2765, %v2845
        %2847 = vmatmul.f32.gmra.mxu0 %v2846
        %v2848 = vpop.f32.mrf.mxu0
        %v2849 = vadd.f32 %v2823, %v2848
        %2850 = vdwg.mxu0
        %2851 = vmatpush.msra.mxu0 0.0
        %2852 = vmatpush.msra.mxu0 0.0
        %2853 = vmatpush.msra.mxu0 0.0
        %2854 = vmatpush.msra.mxu0 0.0
        %2855 = vmatpush.msra.mxu0 0.0
        %2856 = vmatpush.msra.mxu0 0.0
        %2857 = vmatpush.msra.mxu0 0.0
        %2858 = vmatpush.msra.mxu0 0.0
        %2859 = vmatpush.msra.mxu0 0.0
        %2860 = vmatpush.msra.mxu0 0.0
        %2861 = vmatpush.msra.mxu0 0.0
        %2862 = vmatpush.msra.mxu0 0.0
        %2863 = vmatpush.msra.mxu0 0.0
        %2864 = vmatpush.msra.mxu0 0.0
        %v2865 = vand.u32 %v313, 4294901760
        %2866 = vmatpush.msra.mxu0 %v2865
        %v2867 = vand.u32 %v312, 4294901760
        %2868 = vmatpush.msra.mxu0 %v2867
        %v2869 = vand.u32 %v2765, 4294901760
        %v2870 = vsub.f32 %v2765, %v2869
        %v2871 = vand.u32 %v2870, 4294901760
        %2872 = vmatmul.f32.gmra.mxu0 %v2871
        %v2873 = vpop.f32.mrf.mxu0
        %v2874 = vadd.f32 %v2849, %v2873
        %2875 = vdwg.mxu0
        %2876 = vmatpush.msra.mxu0 0.0
        %2877 = vmatpush.msra.mxu0 0.0
        %2878 = vmatpush.msra.mxu0 0.0
        %2879 = vmatpush.msra.mxu0 0.0
        %2880 = vmatpush.msra.mxu0 0.0
        %2881 = vmatpush.msra.mxu0 0.0
        %2882 = vmatpush.msra.mxu0 0.0
        %2883 = vmatpush.msra.mxu0 0.0
        %2884 = vmatpush.msra.mxu0 0.0
        %2885 = vmatpush.msra.mxu0 0.0
        %2886 = vmatpush.msra.mxu0 0.0
        %2887 = vmatpush.msra.mxu0 0.0
        %2888 = vmatpush.msra.mxu0 0.0
        %2889 = vmatpush.msra.mxu0 0.0
        %v2890 = vand.u32 %v313, 4294901760
        %v2891 = vsub.f32 %v313, %v2890
        %v2892 = vand.u32 %v2891, 4294901760
        %2893 = vmatpush.msra.mxu0 %v2892
        %v2894 = vand.u32 %v312, 4294901760
        %v2895 = vsub.f32 %v312, %v2894
        %v2896 = vand.u32 %v2895, 4294901760
        %2897 = vmatpush.msra.mxu0 %v2896
        %v2898 = vand.u32 %v2765, 4294901760
        %2899 = vmatmul.f32.gmra.mxu0 %v2898
        %v2900 = vpop.f32.mrf.mxu0
        %v2901 = vadd.f32 %v2874, %v2900
        %2902 = vdwg.mxu0
        %2903 = vmatpush.msra.mxu0 0.0
        %2904 = vmatpush.msra.mxu0 0.0
        %2905 = vmatpush.msra.mxu0 0.0
        %2906 = vmatpush.msra.mxu0 0.0
        %2907 = vmatpush.msra.mxu0 0.0
        %2908 = vmatpush.msra.mxu0 0.0
        %2909 = vmatpush.msra.mxu0 0.0
        %2910 = vmatpush.msra.mxu0 0.0
        %2911 = vmatpush.msra.mxu0 0.0
        %2912 = vmatpush.msra.mxu0 0.0
        %2913 = vmatpush.msra.mxu0 0.0
        %2914 = vmatpush.msra.mxu0 0.0
        %2915 = vmatpush.msra.mxu0 0.0
        %2916 = vmatpush.msra.mxu0 0.0
        %v2917 = vand.u32 %v313, 4294901760
        %2918 = vmatpush.msra.mxu0 %v2917
        %v2919 = vand.u32 %v312, 4294901760
        %2920 = vmatpush.msra.mxu0 %v2919
        %v2921 = vand.u32 %v2765, 4294901760
        %2922 = vmatmul.f32.gmra.mxu0 %v2921
        %v2923 = vpop.f32.mrf.mxu0
        %v2924 = vadd.f32 %v2901, %v2923
        %2925 = vdwg.mxu0
        %2926 = vmatpush.msra.mxu0 0.0
        %2927 = vmatpush.msra.mxu0 0.0
        %2928 = vmatpush.msra.mxu0 0.0
        %2929 = vmatpush.msra.mxu0 0.0
        %2930 = vmatpush.msra.mxu0 0.0
        %2931 = vmatpush.msra.mxu0 0.0
        %2932 = vmatpush.msra.mxu0 0.0
        %2933 = vmatpush.msra.mxu0 0.0
        %2934 = vmatpush.msra.mxu0 0.0
        %2935 = vmatpush.msra.mxu0 0.0
        %2936 = vmatpush.msra.mxu0 0.0
        %2937 = vmatpush.msra.mxu0 0.0
        %2938 = vmatpush.msra.mxu0 0.0
        %2939 = vmatpush.msra.mxu0 0.0
        %v2940 = vand.u32 %v316, 4294901760
        %2941 = vmatpush.msra.mxu0 %v2940
        %v2942 = vand.u32 %v315, 4294901760
        %2943 = vmatpush.msra.mxu0 %v2942
        %v2944 = vand.u32 %v2765, 4294901760
        %v2945 = vsub.f32 %v2765, %v2944
        %v2946 = vand.u32 %v2945, 4294901760
        %v2947 = vsub.f32 %v2945, %v2946
        %v2948 = vand.u32 %v2947, 4294901760
        %2949 = vmatmul.f32.gmra.mxu0 %v2948
        %v2950 = vpop.f32.mrf.mxu0
        %v2951 = vadd.f32 0.0, %v2950
        %2952 = vdwg.mxu0
        %2953 = vmatpush.msra.mxu0 0.0
        %2954 = vmatpush.msra.mxu0 0.0
        %2955 = vmatpush.msra.mxu0 0.0
        %2956 = vmatpush.msra.mxu0 0.0
        %2957 = vmatpush.msra.mxu0 0.0
        %2958 = vmatpush.msra.mxu0 0.0
        %2959 = vmatpush.msra.mxu0 0.0
        %2960 = vmatpush.msra.mxu0 0.0
        %2961 = vmatpush.msra.mxu0 0.0
        %2962 = vmatpush.msra.mxu0 0.0
        %2963 = vmatpush.msra.mxu0 0.0
        %2964 = vmatpush.msra.mxu0 0.0
        %2965 = vmatpush.msra.mxu0 0.0
        %2966 = vmatpush.msra.mxu0 0.0
        %v2967 = vand.u32 %v316, 4294901760
        %v2968 = vsub.f32 %v316, %v2967
        %v2969 = vand.u32 %v2968, 4294901760
        %v2970 = vsub.f32 %v2968, %v2969
        %v2971 = vand.u32 %v2970, 4294901760
        %2972 = vmatpush.msra.mxu0 %v2971
        %v2973 = vand.u32 %v315, 4294901760
        %v2974 = vsub.f32 %v315, %v2973
        %v2975 = vand.u32 %v2974, 4294901760
        %v2976 = vsub.f32 %v2974, %v2975
        %v2977 = vand.u32 %v2976, 4294901760
        %2978 = vmatpush.msra.mxu0 %v2977
        %v2979 = vand.u32 %v2765, 4294901760
        %2980 = vmatmul.f32.gmra.mxu0 %v2979
        %v2981 = vpop.f32.mrf.mxu0
        %v2982 = vadd.f32 %v2951, %v2981
        %2983 = vdwg.mxu0
        %2984 = vmatpush.msra.mxu0 0.0
        %2985 = vmatpush.msra.mxu0 0.0
        %2986 = vmatpush.msra.mxu0 0.0
        %2987 = vmatpush.msra.mxu0 0.0
        %2988 = vmatpush.msra.mxu0 0.0
        %2989 = vmatpush.msra.mxu0 0.0
        %2990 = vmatpush.msra.mxu0 0.0
        %2991 = vmatpush.msra.mxu0 0.0
        %2992 = vmatpush.msra.mxu0 0.0
        %2993 = vmatpush.msra.mxu0 0.0
        %2994 = vmatpush.msra.mxu0 0.0
        %2995 = vmatpush.msra.mxu0 0.0
        %2996 = vmatpush.msra.mxu0 0.0
        %2997 = vmatpush.msra.mxu0 0.0
        %v2998 = vand.u32 %v316, 4294901760
        %v2999 = vsub.f32 %v316, %v2998
        %3000 = vmatpush.msra.mxu0 %v2999
        %v3001 = vand.u32 %v315, 4294901760
        %v3002 = vsub.f32 %v315, %v3001
        %3003 = vmatpush.msra.mxu0 %v3002
        %v3004 = vand.u32 %v2765, 4294901760
        %v3005 = vsub.f32 %v2765, %v3004
        %3006 = vmatmul.f32.gmra.mxu0 %v3005
        %v3007 = vpop.f32.mrf.mxu0
        %v3008 = vadd.f32 %v2982, %v3007
        %3009 = vdwg.mxu0
        %3010 = vmatpush.msra.mxu0 0.0
        %3011 = vmatpush.msra.mxu0 0.0
        %3012 = vmatpush.msra.mxu0 0.0
        %3013 = vmatpush.msra.mxu0 0.0
        %3014 = vmatpush.msra.mxu0 0.0
        %3015 = vmatpush.msra.mxu0 0.0
        %3016 = vmatpush.msra.mxu0 0.0
        %3017 = vmatpush.msra.mxu0 0.0
        %3018 = vmatpush.msra.mxu0 0.0
        %3019 = vmatpush.msra.mxu0 0.0
        %3020 = vmatpush.msra.mxu0 0.0
        %3021 = vmatpush.msra.mxu0 0.0
        %3022 = vmatpush.msra.mxu0 0.0
        %3023 = vmatpush.msra.mxu0 0.0
        %v3024 = vand.u32 %v316, 4294901760
        %3025 = vmatpush.msra.mxu0 %v3024
        %v3026 = vand.u32 %v315, 4294901760
        %3027 = vmatpush.msra.mxu0 %v3026
        %v3028 = vand.u32 %v2765, 4294901760
        %v3029 = vsub.f32 %v2765, %v3028
        %v3030 = vand.u32 %v3029, 4294901760
        %3031 = vmatmul.f32.gmra.mxu0 %v3030
        %v3032 = vpop.f32.mrf.mxu0
        %v3033 = vadd.f32 %v3008, %v3032
        %3034 = vdwg.mxu0
        %3035 = vmatpush.msra.mxu0 0.0
        %3036 = vmatpush.msra.mxu0 0.0
        %3037 = vmatpush.msra.mxu0 0.0
        %3038 = vmatpush.msra.mxu0 0.0
        %3039 = vmatpush.msra.mxu0 0.0
        %3040 = vmatpush.msra.mxu0 0.0
        %3041 = vmatpush.msra.mxu0 0.0
        %3042 = vmatpush.msra.mxu0 0.0
        %3043 = vmatpush.msra.mxu0 0.0
        %3044 = vmatpush.msra.mxu0 0.0
        %3045 = vmatpush.msra.mxu0 0.0
        %3046 = vmatpush.msra.mxu0 0.0
        %3047 = vmatpush.msra.mxu0 0.0
        %3048 = vmatpush.msra.mxu0 0.0
        %v3049 = vand.u32 %v316, 4294901760
        %v3050 = vsub.f32 %v316, %v3049
        %v3051 = vand.u32 %v3050, 4294901760
        %3052 = vmatpush.msra.mxu0 %v3051
        %v3053 = vand.u32 %v315, 4294901760
        %v3054 = vsub.f32 %v315, %v3053
        %v3055 = vand.u32 %v3054, 4294901760
        %3056 = vmatpush.msra.mxu0 %v3055
        %v3057 = vand.u32 %v2765, 4294901760
        %3058 = vmatmul.f32.gmra.mxu0 %v3057
        %v3059 = vpop.f32.mrf.mxu0
        %v3060 = vadd.f32 %v3033, %v3059
        %3061 = vdwg.mxu0
        %3062 = vmatpush.msra.mxu0 0.0
        %3063 = vmatpush.msra.mxu0 0.0
        %3064 = vmatpush.msra.mxu0 0.0
        %3065 = vmatpush.msra.mxu0 0.0
        %3066 = vmatpush.msra.mxu0 0.0
        %3067 = vmatpush.msra.mxu0 0.0
        %3068 = vmatpush.msra.mxu0 0.0
        %3069 = vmatpush.msra.mxu0 0.0
        %3070 = vmatpush.msra.mxu0 0.0
        %3071 = vmatpush.msra.mxu0 0.0
        %3072 = vmatpush.msra.mxu0 0.0
        %3073 = vmatpush.msra.mxu0 0.0
        %3074 = vmatpush.msra.mxu0 0.0
        %3075 = vmatpush.msra.mxu0 0.0
        %v3076 = vand.u32 %v316, 4294901760
        %3077 = vmatpush.msra.mxu0 %v3076
        %v3078 = vand.u32 %v315, 4294901760
        %3079 = vmatpush.msra.mxu0 %v3078
        %v3080 = vand.u32 %v2765, 4294901760
        %3081 = vmatmul.f32.gmra.mxu0 %v3080
        %v3082 = vpop.f32.mrf.mxu0
        %v3083 = vadd.f32 %v3060, %v3082
        %3084 = vdwg.mxu0
        %v3086 = vsel %vm323, %v2762, 0
        %3088 = vmatpush.msra.mxu0 0.0
        %3089 = vmatpush.msra.mxu0 0.0
        %3090 = vmatpush.msra.mxu0 0.0
        %3091 = vmatpush.msra.mxu0 0.0
        %3092 = vmatpush.msra.mxu0 0.0
        %3093 = vmatpush.msra.mxu0 0.0
        %3094 = vmatpush.msra.mxu0 0.0
        %3095 = vmatpush.msra.mxu0 0.0
        %3096 = vmatpush.msra.mxu0 0.0
        %3097 = vmatpush.msra.mxu0 0.0
        %3098 = vmatpush.msra.mxu0 0.0
        %3099 = vmatpush.msra.mxu0 0.0
        %3100 = vmatpush.msra.mxu0 0.0
        %3101 = vmatpush.msra.mxu0 0.0
        %v3102 = vand.u32 %v313, 4294901760
        %3103 = vmatpush.msra.mxu0 %v3102
        %v3104 = vand.u32 %v312, 4294901760
        %3105 = vmatpush.msra.mxu0 %v3104
        %v3106 = vand.u32 %v3086, 4294901760
        %v3107 = vsub.f32 %v3086, %v3106
        %v3108 = vand.u32 %v3107, 4294901760
        %v3109 = vsub.f32 %v3107, %v3108
        %v3110 = vand.u32 %v3109, 4294901760
        %3111 = vmatmul.f32.gmra.mxu0 %v3110
        %v3112 = vpop.f32.mrf.mxu0
        %v3113 = vadd.f32 0.0, %v3112
        %3114 = vdwg.mxu0
        %3115 = vmatpush.msra.mxu0 0.0
        %3116 = vmatpush.msra.mxu0 0.0
        %3117 = vmatpush.msra.mxu0 0.0
        %3118 = vmatpush.msra.mxu0 0.0
        %3119 = vmatpush.msra.mxu0 0.0
        %3120 = vmatpush.msra.mxu0 0.0
        %3121 = vmatpush.msra.mxu0 0.0
        %3122 = vmatpush.msra.mxu0 0.0
        %3123 = vmatpush.msra.mxu0 0.0
        %3124 = vmatpush.msra.mxu0 0.0
        %3125 = vmatpush.msra.mxu0 0.0
        %3126 = vmatpush.msra.mxu0 0.0
        %3127 = vmatpush.msra.mxu0 0.0
        %3128 = vmatpush.msra.mxu0 0.0
        %v3129 = vand.u32 %v313, 4294901760
        %v3130 = vsub.f32 %v313, %v3129
        %v3131 = vand.u32 %v3130, 4294901760
        %v3132 = vsub.f32 %v3130, %v3131
        %v3133 = vand.u32 %v3132, 4294901760
        %3134 = vmatpush.msra.mxu0 %v3133
        %v3135 = vand.u32 %v312, 4294901760
        %v3136 = vsub.f32 %v312, %v3135
        %v3137 = vand.u32 %v3136, 4294901760
        %v3138 = vsub.f32 %v3136, %v3137
        %v3139 = vand.u32 %v3138, 4294901760
        %3140 = vmatpush.msra.mxu0 %v3139
        %v3141 = vand.u32 %v3086, 4294901760
        %3142 = vmatmul.f32.gmra.mxu0 %v3141
        %v3143 = vpop.f32.mrf.mxu0
        %v3144 = vadd.f32 %v3113, %v3143
        %3145 = vdwg.mxu0
        %3146 = vmatpush.msra.mxu0 0.0
        %3147 = vmatpush.msra.mxu0 0.0
        %3148 = vmatpush.msra.mxu0 0.0
        %3149 = vmatpush.msra.mxu0 0.0
        %3150 = vmatpush.msra.mxu0 0.0
        %3151 = vmatpush.msra.mxu0 0.0
        %3152 = vmatpush.msra.mxu0 0.0
        %3153 = vmatpush.msra.mxu0 0.0
        %3154 = vmatpush.msra.mxu0 0.0
        %3155 = vmatpush.msra.mxu0 0.0
        %3156 = vmatpush.msra.mxu0 0.0
        %3157 = vmatpush.msra.mxu0 0.0
        %3158 = vmatpush.msra.mxu0 0.0
        %3159 = vmatpush.msra.mxu0 0.0
        %v3160 = vand.u32 %v313, 4294901760
        %v3161 = vsub.f32 %v313, %v3160
        %3162 = vmatpush.msra.mxu0 %v3161
        %v3163 = vand.u32 %v312, 4294901760
        %v3164 = vsub.f32 %v312, %v3163
        %3165 = vmatpush.msra.mxu0 %v3164
        %v3166 = vand.u32 %v3086, 4294901760
        %v3167 = vsub.f32 %v3086, %v3166
        %3168 = vmatmul.f32.gmra.mxu0 %v3167
        %v3169 = vpop.f32.mrf.mxu0
        %v3170 = vadd.f32 %v3144, %v3169
        %3171 = vdwg.mxu0
        %3172 = vmatpush.msra.mxu0 0.0
        %3173 = vmatpush.msra.mxu0 0.0
        %3174 = vmatpush.msra.mxu0 0.0
        %3175 = vmatpush.msra.mxu0 0.0
        %3176 = vmatpush.msra.mxu0 0.0
        %3177 = vmatpush.msra.mxu0 0.0
        %3178 = vmatpush.msra.mxu0 0.0
        %3179 = vmatpush.msra.mxu0 0.0
        %3180 = vmatpush.msra.mxu0 0.0
        %3181 = vmatpush.msra.mxu0 0.0
        %3182 = vmatpush.msra.mxu0 0.0
        %3183 = vmatpush.msra.mxu0 0.0
        %3184 = vmatpush.msra.mxu0 0.0
        %3185 = vmatpush.msra.mxu0 0.0
        %v3186 = vand.u32 %v313, 4294901760
        %3187 = vmatpush.msra.mxu0 %v3186
        %v3188 = vand.u32 %v312, 4294901760
        %3189 = vmatpush.msra.mxu0 %v3188
        %v3190 = vand.u32 %v3086, 4294901760
        %v3191 = vsub.f32 %v3086, %v3190
        %v3192 = vand.u32 %v3191, 4294901760
        %3193 = vmatmul.f32.gmra.mxu0 %v3192
        %v3194 = vpop.f32.mrf.mxu0
        %v3195 = vadd.f32 %v3170, %v3194
        %3196 = vdwg.mxu0
        %3197 = vmatpush.msra.mxu0 0.0
        %3198 = vmatpush.msra.mxu0 0.0
        %3199 = vmatpush.msra.mxu0 0.0
        %3200 = vmatpush.msra.mxu0 0.0
        %3201 = vmatpush.msra.mxu0 0.0
        %3202 = vmatpush.msra.mxu0 0.0
        %3203 = vmatpush.msra.mxu0 0.0
        %3204 = vmatpush.msra.mxu0 0.0
        %3205 = vmatpush.msra.mxu0 0.0
        %3206 = vmatpush.msra.mxu0 0.0
        %3207 = vmatpush.msra.mxu0 0.0
        %3208 = vmatpush.msra.mxu0 0.0
        %3209 = vmatpush.msra.mxu0 0.0
        %3210 = vmatpush.msra.mxu0 0.0
        %v3211 = vand.u32 %v313, 4294901760
        %v3212 = vsub.f32 %v313, %v3211
        %v3213 = vand.u32 %v3212, 4294901760
        %3214 = vmatpush.msra.mxu0 %v3213
        %v3215 = vand.u32 %v312, 4294901760
        %v3216 = vsub.f32 %v312, %v3215
        %v3217 = vand.u32 %v3216, 4294901760
        %3218 = vmatpush.msra.mxu0 %v3217
        %v3219 = vand.u32 %v3086, 4294901760
        %3220 = vmatmul.f32.gmra.mxu0 %v3219
        %v3221 = vpop.f32.mrf.mxu0
        %v3222 = vadd.f32 %v3195, %v3221
        %3223 = vdwg.mxu0
        %3224 = vmatpush.msra.mxu0 0.0
        %3225 = vmatpush.msra.mxu0 0.0
        %3226 = vmatpush.msra.mxu0 0.0
        %3227 = vmatpush.msra.mxu0 0.0
        %3228 = vmatpush.msra.mxu0 0.0
        %3229 = vmatpush.msra.mxu0 0.0
        %3230 = vmatpush.msra.mxu0 0.0
        %3231 = vmatpush.msra.mxu0 0.0
        %3232 = vmatpush.msra.mxu0 0.0
        %3233 = vmatpush.msra.mxu0 0.0
        %3234 = vmatpush.msra.mxu0 0.0
        %3235 = vmatpush.msra.mxu0 0.0
        %3236 = vmatpush.msra.mxu0 0.0
        %3237 = vmatpush.msra.mxu0 0.0
        %v3238 = vand.u32 %v313, 4294901760
        %3239 = vmatpush.msra.mxu0 %v3238
        %v3240 = vand.u32 %v312, 4294901760
        %3241 = vmatpush.msra.mxu0 %v3240
        %v3242 = vand.u32 %v3086, 4294901760
        %3243 = vmatmul.f32.gmra.mxu0 %v3242
        %v3244 = vpop.f32.mrf.mxu0
        %v3245 = vadd.f32 %v3222, %v3244
        %3246 = vdwg.mxu0
        %3247 = vmatpush.msra.mxu0 0.0
        %3248 = vmatpush.msra.mxu0 0.0
        %3249 = vmatpush.msra.mxu0 0.0
        %3250 = vmatpush.msra.mxu0 0.0
        %3251 = vmatpush.msra.mxu0 0.0
        %3252 = vmatpush.msra.mxu0 0.0
        %3253 = vmatpush.msra.mxu0 0.0
        %3254 = vmatpush.msra.mxu0 0.0
        %3255 = vmatpush.msra.mxu0 0.0
        %3256 = vmatpush.msra.mxu0 0.0
        %3257 = vmatpush.msra.mxu0 0.0
        %3258 = vmatpush.msra.mxu0 0.0
        %3259 = vmatpush.msra.mxu0 0.0
        %3260 = vmatpush.msra.mxu0 0.0
        %v3261 = vand.u32 %v316, 4294901760
        %3262 = vmatpush.msra.mxu0 %v3261
        %v3263 = vand.u32 %v315, 4294901760
        %3264 = vmatpush.msra.mxu0 %v3263
        %v3265 = vand.u32 %v3086, 4294901760
        %v3266 = vsub.f32 %v3086, %v3265
        %v3267 = vand.u32 %v3266, 4294901760
        %v3268 = vsub.f32 %v3266, %v3267
        %v3269 = vand.u32 %v3268, 4294901760
        %3270 = vmatmul.f32.gmra.mxu0 %v3269
        %v3271 = vpop.f32.mrf.mxu0
        %v3272 = vadd.f32 0.0, %v3271
        %3273 = vdwg.mxu0
        %3274 = vmatpush.msra.mxu0 0.0
        %3275 = vmatpush.msra.mxu0 0.0
        %3276 = vmatpush.msra.mxu0 0.0
        %3277 = vmatpush.msra.mxu0 0.0
        %3278 = vmatpush.msra.mxu0 0.0
        %3279 = vmatpush.msra.mxu0 0.0
        %3280 = vmatpush.msra.mxu0 0.0
        %3281 = vmatpush.msra.mxu0 0.0
        %3282 = vmatpush.msra.mxu0 0.0
        %3283 = vmatpush.msra.mxu0 0.0
        %3284 = vmatpush.msra.mxu0 0.0
        %3285 = vmatpush.msra.mxu0 0.0
        %3286 = vmatpush.msra.mxu0 0.0
        %3287 = vmatpush.msra.mxu0 0.0
        %v3288 = vand.u32 %v316, 4294901760
        %v3289 = vsub.f32 %v316, %v3288
        %v3290 = vand.u32 %v3289, 4294901760
        %v3291 = vsub.f32 %v3289, %v3290
        %v3292 = vand.u32 %v3291, 4294901760
        %3293 = vmatpush.msra.mxu0 %v3292
        %v3294 = vand.u32 %v315, 4294901760
        %v3295 = vsub.f32 %v315, %v3294
        %v3296 = vand.u32 %v3295, 4294901760
        %v3297 = vsub.f32 %v3295, %v3296
        %v3298 = vand.u32 %v3297, 4294901760
        %3299 = vmatpush.msra.mxu0 %v3298
        %v3300 = vand.u32 %v3086, 4294901760
        %3301 = vmatmul.f32.gmra.mxu0 %v3300
        %v3302 = vpop.f32.mrf.mxu0
        %v3303 = vadd.f32 %v3272, %v3302
        %3304 = vdwg.mxu0
        %3305 = vmatpush.msra.mxu0 0.0
        %3306 = vmatpush.msra.mxu0 0.0
        %3307 = vmatpush.msra.mxu0 0.0
        %3308 = vmatpush.msra.mxu0 0.0
        %3309 = vmatpush.msra.mxu0 0.0
        %3310 = vmatpush.msra.mxu0 0.0
        %3311 = vmatpush.msra.mxu0 0.0
        %3312 = vmatpush.msra.mxu0 0.0
        %3313 = vmatpush.msra.mxu0 0.0
        %3314 = vmatpush.msra.mxu0 0.0
        %3315 = vmatpush.msra.mxu0 0.0
        %3316 = vmatpush.msra.mxu0 0.0
        %3317 = vmatpush.msra.mxu0 0.0
        %3318 = vmatpush.msra.mxu0 0.0
        %v3319 = vand.u32 %v316, 4294901760
        %v3320 = vsub.f32 %v316, %v3319
        %3321 = vmatpush.msra.mxu0 %v3320
        %v3322 = vand.u32 %v315, 4294901760
        %v3323 = vsub.f32 %v315, %v3322
        %3324 = vmatpush.msra.mxu0 %v3323
        %v3325 = vand.u32 %v3086, 4294901760
        %v3326 = vsub.f32 %v3086, %v3325
        %3327 = vmatmul.f32.gmra.mxu0 %v3326
        %v3328 = vpop.f32.mrf.mxu0
        %v3329 = vadd.f32 %v3303, %v3328
        %3330 = vdwg.mxu0
        %3331 = vmatpush.msra.mxu0 0.0
        %3332 = vmatpush.msra.mxu0 0.0
        %3333 = vmatpush.msra.mxu0 0.0
        %3334 = vmatpush.msra.mxu0 0.0
        %3335 = vmatpush.msra.mxu0 0.0
        %3336 = vmatpush.msra.mxu0 0.0
        %3337 = vmatpush.msra.mxu0 0.0
        %3338 = vmatpush.msra.mxu0 0.0
        %3339 = vmatpush.msra.mxu0 0.0
        %3340 = vmatpush.msra.mxu0 0.0
        %3341 = vmatpush.msra.mxu0 0.0
        %3342 = vmatpush.msra.mxu0 0.0
        %3343 = vmatpush.msra.mxu0 0.0
        %3344 = vmatpush.msra.mxu0 0.0
        %v3345 = vand.u32 %v316, 4294901760
        %3346 = vmatpush.msra.mxu0 %v3345
        %v3347 = vand.u32 %v315, 4294901760
        %3348 = vmatpush.msra.mxu0 %v3347
        %v3349 = vand.u32 %v3086, 4294901760
        %v3350 = vsub.f32 %v3086, %v3349
        %v3351 = vand.u32 %v3350, 4294901760
        %3352 = vmatmul.f32.gmra.mxu0 %v3351
        %v3353 = vpop.f32.mrf.mxu0
        %v3354 = vadd.f32 %v3329, %v3353
        %3355 = vdwg.mxu0
        %3356 = vmatpush.msra.mxu0 0.0
        %3357 = vmatpush.msra.mxu0 0.0
        %3358 = vmatpush.msra.mxu0 0.0
        %3359 = vmatpush.msra.mxu0 0.0
        %3360 = vmatpush.msra.mxu0 0.0
        %3361 = vmatpush.msra.mxu0 0.0
        %3362 = vmatpush.msra.mxu0 0.0
        %3363 = vmatpush.msra.mxu0 0.0
        %3364 = vmatpush.msra.mxu0 0.0
        %3365 = vmatpush.msra.mxu0 0.0
        %3366 = vmatpush.msra.mxu0 0.0
        %3367 = vmatpush.msra.mxu0 0.0
        %3368 = vmatpush.msra.mxu0 0.0
        %3369 = vmatpush.msra.mxu0 0.0
        %v3370 = vand.u32 %v316, 4294901760
        %v3371 = vsub.f32 %v316, %v3370
        %v3372 = vand.u32 %v3371, 4294901760
        %3373 = vmatpush.msra.mxu0 %v3372
        %v3374 = vand.u32 %v315, 4294901760
        %v3375 = vsub.f32 %v315, %v3374
        %v3376 = vand.u32 %v3375, 4294901760
        %3377 = vmatpush.msra.mxu0 %v3376
        %v3378 = vand.u32 %v3086, 4294901760
        %3379 = vmatmul.f32.gmra.mxu0 %v3378
        %v3380 = vpop.f32.mrf.mxu0
        %v3381 = vadd.f32 %v3354, %v3380
        %3382 = vdwg.mxu0
        %3383 = vmatpush.msra.mxu0 0.0
        %3384 = vmatpush.msra.mxu0 0.0
        %3385 = vmatpush.msra.mxu0 0.0
        %3386 = vmatpush.msra.mxu0 0.0
        %3387 = vmatpush.msra.mxu0 0.0
        %3388 = vmatpush.msra.mxu0 0.0
        %3389 = vmatpush.msra.mxu0 0.0
        %3390 = vmatpush.msra.mxu0 0.0
        %3391 = vmatpush.msra.mxu0 0.0
        %3392 = vmatpush.msra.mxu0 0.0
        %3393 = vmatpush.msra.mxu0 0.0
        %3394 = vmatpush.msra.mxu0 0.0
        %3395 = vmatpush.msra.mxu0 0.0
        %3396 = vmatpush.msra.mxu0 0.0
        %v3397 = vand.u32 %v316, 4294901760
        %3398 = vmatpush.msra.mxu0 %v3397
        %v3399 = vand.u32 %v315, 4294901760
        %3400 = vmatpush.msra.mxu0 %v3399
        %v3401 = vand.u32 %v3086, 4294901760
        %3402 = vmatmul.f32.gmra.mxu0 %v3401
        %v3403 = vpop.f32.mrf.mxu0
        %v3404 = vadd.f32 %v3381, %v3403
        %3405 = vdwg.mxu0
        %s3406 = vtos %v319
        %v3407 = vstv %s3406
        %v3408 = vmul.f32 %v3407, %v2924
        %3409 = vrot.lane.b32.xlu0 %v319, 127
        %v3410 = vpop.permute.xlu0 %3409
        %s3411 = vtos %v3410
        %v3412 = vstv %s3411
        %v3413 = vmul.f32 %v3412, %v3083
        %v3414 = vadd.f32 %v3408, %v3413
        %3415 = vrot.lane.b32.xlu0 %v319, 126
        %v3416 = vpop.permute.xlu0 %3415
        %s3417 = vtos %v3416
        %v3418 = vstv %s3417
        %v3419 = vmul.f32 %v3418, %v3245
        %v3420 = vadd.f32 %v3414, %v3419
        %3421 = vrot.lane.b32.xlu0 %v319, 125
        %v3422 = vpop.permute.xlu0 %3421
        %s3423 = vtos %v3422
        %v3424 = vstv %s3423
        %v3425 = vmul.f32 %v3424, %v3404
        %v3426 = vadd.f32 %v3420, %v3425
        %s3427 = scalar_lea.vmem %s307, 64
        %3428 = vst.msk [vmem:[%s3427] sm:$0xff] %vm1311, %v3426
        %v3429 = vrot.slane %v319, 1
        %s3430 = vtos %v3429
        %v3431 = vstv %s3430
        %v3432 = vmul.f32 %v3431, %v2924
        %3433 = vrot.lane.b32.xlu0 %v3429, 127
        %v3434 = vpop.permute.xlu0 %3433
        %s3435 = vtos %v3434
        %v3436 = vstv %s3435
        %v3437 = vmul.f32 %v3436, %v3083
        %v3438 = vadd.f32 %v3432, %v3437
        %3439 = vrot.lane.b32.xlu0 %v3429, 126
        %v3440 = vpop.permute.xlu0 %3439
        %s3441 = vtos %v3440
        %v3442 = vstv %s3441
        %v3443 = vmul.f32 %v3442, %v3245
        %v3444 = vadd.f32 %v3438, %v3443
        %3445 = vrot.lane.b32.xlu0 %v3429, 125
        %v3446 = vpop.permute.xlu0 %3445
        %s3447 = vtos %v3446
        %v3448 = vstv %s3447
        %v3449 = vmul.f32 %v3448, %v3404
        %v3450 = vadd.f32 %v3444, %v3449
        %s3451 = scalar_lea.vmem %s307, 72
        %3452 = vst.msk [vmem:[%s3451] sm:$0xff] %vm1311, %v3450
        %v3453 = vrot.slane %v319, 2
        %s3454 = vtos %v3453
        %v3455 = vstv %s3454
        %v3456 = vmul.f32 %v3455, %v2924
        %3457 = vrot.lane.b32.xlu0 %v3453, 127
        %v3458 = vpop.permute.xlu0 %3457
        %s3459 = vtos %v3458
        %v3460 = vstv %s3459
        %v3461 = vmul.f32 %v3460, %v3083
        %v3462 = vadd.f32 %v3456, %v3461
        %3463 = vrot.lane.b32.xlu0 %v3453, 126
        %v3464 = vpop.permute.xlu0 %3463
        %s3465 = vtos %v3464
        %v3466 = vstv %s3465
        %v3467 = vmul.f32 %v3466, %v3245
        %v3468 = vadd.f32 %v3462, %v3467
        %3469 = vrot.lane.b32.xlu0 %v3453, 125
        %v3470 = vpop.permute.xlu0 %3469
        %s3471 = vtos %v3470
        %v3472 = vstv %s3471
        %v3473 = vmul.f32 %v3472, %v3404
        %v3474 = vadd.f32 %v3468, %v3473
        %s3475 = scalar_lea.vmem %s307, 80
        %3476 = vst.msk [vmem:[%s3475] sm:$0xff] %vm1311, %v3474
        %v3477 = vrot.slane %v319, 3
        %s3478 = vtos %v3477
        %v3479 = vstv %s3478
        %v3480 = vmul.f32 %v3479, %v2924
        %3481 = vrot.lane.b32.xlu0 %v3477, 127
        %v3482 = vpop.permute.xlu0 %3481
        %s3483 = vtos %v3482
        %v3484 = vstv %s3483
        %v3485 = vmul.f32 %v3484, %v3083
        %v3486 = vadd.f32 %v3480, %v3485
        %3487 = vrot.lane.b32.xlu0 %v3477, 126
        %v3488 = vpop.permute.xlu0 %3487
        %s3489 = vtos %v3488
        %v3490 = vstv %s3489
        %v3491 = vmul.f32 %v3490, %v3245
        %v3492 = vadd.f32 %v3486, %v3491
        %3493 = vrot.lane.b32.xlu0 %v3477, 125
        %v3494 = vpop.permute.xlu0 %3493
        %s3495 = vtos %v3494
        %v3496 = vstv %s3495
        %v3497 = vmul.f32 %v3496, %v3404
        %v3498 = vadd.f32 %v3492, %v3497
        %s3499 = scalar_lea.vmem %s307, 88
        %3500 = vst.msk [vmem:[%s3499] sm:$0xff] %vm1311, %v3498
        %s3501 = scalar_lea.vmem %s244, 48 [#allocation2]
        %v3502 = vld [vmem:[%s3501] sm:$0xff]
        %v3503 = vld [vmem:[%s3501 + $0x8] sm:$0xff]
        %3504 = vmatpush.msra.mxu0 0.0
        %3505 = vmatpush.msra.mxu0 0.0
        %3506 = vmatpush.msra.mxu0 0.0
        %3507 = vmatpush.msra.mxu0 0.0
        %3508 = vmatpush.msra.mxu0 0.0
        %3509 = vmatpush.msra.mxu0 0.0
        %3510 = vmatpush.msra.mxu0 0.0
        %3511 = vmatpush.msra.mxu0 0.0
        %3512 = vmatpush.msra.mxu0 0.0
        %3513 = vmatpush.msra.mxu0 0.0
        %3514 = vmatpush.msra.mxu0 0.0
        %3515 = vmatpush.msra.mxu0 0.0
        %3516 = vmatpush.msra.mxu0 0.0
        %3517 = vmatpush.msra.mxu0 0.0
        %v3518 = vand.u32 %v3503, 4294901760
        %3519 = vmatpush.msra.mxu0 %v3518
        %v3520 = vand.u32 %v3502, 4294901760
        %3521 = vmatpush.msra.mxu0 %v3520
        %v3522 = vand.u32 %v325, 4294901760
        %v3523 = vsub.f32 %v325, %v3522
        %v3524 = vand.u32 %v3523, 4294901760
        %v3525 = vsub.f32 %v3523, %v3524
        %v3526 = vand.u32 %v3525, 4294901760
        %3527 = vmatmul.f32.gmra.mxu0 %v3526
        %v3528 = vpop.f32.mrf.mxu0
        %v3529 = vadd.f32 0.0, %v3528
        %3530 = vdwg.mxu0
        %3531 = vmatpush.msra.mxu0 0.0
        %3532 = vmatpush.msra.mxu0 0.0
        %3533 = vmatpush.msra.mxu0 0.0
        %3534 = vmatpush.msra.mxu0 0.0
        %3535 = vmatpush.msra.mxu0 0.0
        %3536 = vmatpush.msra.mxu0 0.0
        %3537 = vmatpush.msra.mxu0 0.0
        %3538 = vmatpush.msra.mxu0 0.0
        %3539 = vmatpush.msra.mxu0 0.0
        %3540 = vmatpush.msra.mxu0 0.0
        %3541 = vmatpush.msra.mxu0 0.0
        %3542 = vmatpush.msra.mxu0 0.0
        %3543 = vmatpush.msra.mxu0 0.0
        %3544 = vmatpush.msra.mxu0 0.0
        %v3545 = vand.u32 %v3503, 4294901760
        %v3546 = vsub.f32 %v3503, %v3545
        %v3547 = vand.u32 %v3546, 4294901760
        %v3548 = vsub.f32 %v3546, %v3547
        %v3549 = vand.u32 %v3548, 4294901760
        %3550 = vmatpush.msra.mxu0 %v3549
        %v3551 = vand.u32 %v3502, 4294901760
        %v3552 = vsub.f32 %v3502, %v3551
        %v3553 = vand.u32 %v3552, 4294901760
        %v3554 = vsub.f32 %v3552, %v3553
        %v3555 = vand.u32 %v3554, 4294901760
        %3556 = vmatpush.msra.mxu0 %v3555
        %v3557 = vand.u32 %v325, 4294901760
        %3558 = vmatmul.f32.gmra.mxu0 %v3557
        %v3559 = vpop.f32.mrf.mxu0
        %v3560 = vadd.f32 %v3529, %v3559
        %3561 = vdwg.mxu0
        %3562 = vmatpush.msra.mxu0 0.0
        %3563 = vmatpush.msra.mxu0 0.0
        %3564 = vmatpush.msra.mxu0 0.0
        %3565 = vmatpush.msra.mxu0 0.0
        %3566 = vmatpush.msra.mxu0 0.0
        %3567 = vmatpush.msra.mxu0 0.0
        %3568 = vmatpush.msra.mxu0 0.0
        %3569 = vmatpush.msra.mxu0 0.0
        %3570 = vmatpush.msra.mxu0 0.0
        %3571 = vmatpush.msra.mxu0 0.0
        %3572 = vmatpush.msra.mxu0 0.0
        %3573 = vmatpush.msra.mxu0 0.0
        %3574 = vmatpush.msra.mxu0 0.0
        %3575 = vmatpush.msra.mxu0 0.0
        %v3576 = vand.u32 %v3503, 4294901760
        %v3577 = vsub.f32 %v3503, %v3576
        %3578 = vmatpush.msra.mxu0 %v3577
        %v3579 = vand.u32 %v3502, 4294901760
        %v3580 = vsub.f32 %v3502, %v3579
        %3581 = vmatpush.msra.mxu0 %v3580
        %v3582 = vand.u32 %v325, 4294901760
        %v3583 = vsub.f32 %v325, %v3582
        %3584 = vmatmul.f32.gmra.mxu0 %v3583
        %v3585 = vpop.f32.mrf.mxu0
        %v3586 = vadd.f32 %v3560, %v3585
        %3587 = vdwg.mxu0
        %3588 = vmatpush.msra.mxu0 0.0
        %3589 = vmatpush.msra.mxu0 0.0
        %3590 = vmatpush.msra.mxu0 0.0
        %3591 = vmatpush.msra.mxu0 0.0
        %3592 = vmatpush.msra.mxu0 0.0
        %3593 = vmatpush.msra.mxu0 0.0
        %3594 = vmatpush.msra.mxu0 0.0
        %3595 = vmatpush.msra.mxu0 0.0
        %3596 = vmatpush.msra.mxu0 0.0
        %3597 = vmatpush.msra.mxu0 0.0
        %3598 = vmatpush.msra.mxu0 0.0
        %3599 = vmatpush.msra.mxu0 0.0
        %3600 = vmatpush.msra.mxu0 0.0
        %3601 = vmatpush.msra.mxu0 0.0
        %v3602 = vand.u32 %v3503, 4294901760
        %3603 = vmatpush.msra.mxu0 %v3602
        %v3604 = vand.u32 %v3502, 4294901760
        %3605 = vmatpush.msra.mxu0 %v3604
        %v3606 = vand.u32 %v325, 4294901760
        %v3607 = vsub.f32 %v325, %v3606
        %v3608 = vand.u32 %v3607, 4294901760
        %3609 = vmatmul.f32.gmra.mxu0 %v3608
        %v3610 = vpop.f32.mrf.mxu0
        %v3611 = vadd.f32 %v3586, %v3610
        %3612 = vdwg.mxu0
        %3613 = vmatpush.msra.mxu0 0.0
        %3614 = vmatpush.msra.mxu0 0.0
        %3615 = vmatpush.msra.mxu0 0.0
        %3616 = vmatpush.msra.mxu0 0.0
        %3617 = vmatpush.msra.mxu0 0.0
        %3618 = vmatpush.msra.mxu0 0.0
        %3619 = vmatpush.msra.mxu0 0.0
        %3620 = vmatpush.msra.mxu0 0.0
        %3621 = vmatpush.msra.mxu0 0.0
        %3622 = vmatpush.msra.mxu0 0.0
        %3623 = vmatpush.msra.mxu0 0.0
        %3624 = vmatpush.msra.mxu0 0.0
        %3625 = vmatpush.msra.mxu0 0.0
        %3626 = vmatpush.msra.mxu0 0.0
        %v3627 = vand.u32 %v3503, 4294901760
        %v3628 = vsub.f32 %v3503, %v3627
        %v3629 = vand.u32 %v3628, 4294901760
        %3630 = vmatpush.msra.mxu0 %v3629
        %v3631 = vand.u32 %v3502, 4294901760
        %v3632 = vsub.f32 %v3502, %v3631
        %v3633 = vand.u32 %v3632, 4294901760
        %3634 = vmatpush.msra.mxu0 %v3633
        %v3635 = vand.u32 %v325, 4294901760
        %3636 = vmatmul.f32.gmra.mxu0 %v3635
        %v3637 = vpop.f32.mrf.mxu0
        %v3638 = vadd.f32 %v3611, %v3637
        %3639 = vdwg.mxu0
        %3640 = vmatpush.msra.mxu0 0.0
        %3641 = vmatpush.msra.mxu0 0.0
        %3642 = vmatpush.msra.mxu0 0.0
        %3643 = vmatpush.msra.mxu0 0.0
        %3644 = vmatpush.msra.mxu0 0.0
        %3645 = vmatpush.msra.mxu0 0.0
        %3646 = vmatpush.msra.mxu0 0.0
        %3647 = vmatpush.msra.mxu0 0.0
        %3648 = vmatpush.msra.mxu0 0.0
        %3649 = vmatpush.msra.mxu0 0.0
        %3650 = vmatpush.msra.mxu0 0.0
        %3651 = vmatpush.msra.mxu0 0.0
        %3652 = vmatpush.msra.mxu0 0.0
        %3653 = vmatpush.msra.mxu0 0.0
        %v3654 = vand.u32 %v3503, 4294901760
        %3655 = vmatpush.msra.mxu0 %v3654
        %v3656 = vand.u32 %v3502, 4294901760
        %3657 = vmatpush.msra.mxu0 %v3656
        %v3658 = vand.u32 %v325, 4294901760
        %3659 = vmatmul.f32.gmra.mxu0 %v3658
        %v3660 = vpop.f32.mrf.mxu0
        %v3661 = vadd.f32 %v3638, %v3660
        %3662 = vdwg.mxu0
        %3663 = vmatpush.msra.mxu0 0.0
        %3664 = vmatpush.msra.mxu0 0.0
        %3665 = vmatpush.msra.mxu0 0.0
        %3666 = vmatpush.msra.mxu0 0.0
        %3667 = vmatpush.msra.mxu0 0.0
        %3668 = vmatpush.msra.mxu0 0.0
        %3669 = vmatpush.msra.mxu0 0.0
        %3670 = vmatpush.msra.mxu0 0.0
        %3671 = vmatpush.msra.mxu0 0.0
        %3672 = vmatpush.msra.mxu0 0.0
        %3673 = vmatpush.msra.mxu0 0.0
        %3674 = vmatpush.msra.mxu0 0.0
        %3675 = vmatpush.msra.mxu0 0.0
        %3676 = vmatpush.msra.mxu0 0.0
        %v3677 = vand.u32 %v3503, 4294901760
        %3678 = vmatpush.msra.mxu0 %v3677
        %v3679 = vand.u32 %v3502, 4294901760
        %3680 = vmatpush.msra.mxu0 %v3679
        %v3681 = vand.u32 %v487, 4294901760
        %v3682 = vsub.f32 %v487, %v3681
        %v3683 = vand.u32 %v3682, 4294901760
        %v3684 = vsub.f32 %v3682, %v3683
        %v3685 = vand.u32 %v3684, 4294901760
        %3686 = vmatmul.f32.gmra.mxu0 %v3685
        %v3687 = vpop.f32.mrf.mxu0
        %v3688 = vadd.f32 0.0, %v3687
        %3689 = vdwg.mxu0
        %3690 = vmatpush.msra.mxu0 0.0
        %3691 = vmatpush.msra.mxu0 0.0
        %3692 = vmatpush.msra.mxu0 0.0
        %3693 = vmatpush.msra.mxu0 0.0
        %3694 = vmatpush.msra.mxu0 0.0
        %3695 = vmatpush.msra.mxu0 0.0
        %3696 = vmatpush.msra.mxu0 0.0
        %3697 = vmatpush.msra.mxu0 0.0
        %3698 = vmatpush.msra.mxu0 0.0
        %3699 = vmatpush.msra.mxu0 0.0
        %3700 = vmatpush.msra.mxu0 0.0
        %3701 = vmatpush.msra.mxu0 0.0
        %3702 = vmatpush.msra.mxu0 0.0
        %3703 = vmatpush.msra.mxu0 0.0
        %v3704 = vand.u32 %v3503, 4294901760
        %v3705 = vsub.f32 %v3503, %v3704
        %v3706 = vand.u32 %v3705, 4294901760
        %v3707 = vsub.f32 %v3705, %v3706
        %v3708 = vand.u32 %v3707, 4294901760
        %3709 = vmatpush.msra.mxu0 %v3708
        %v3710 = vand.u32 %v3502, 4294901760
        %v3711 = vsub.f32 %v3502, %v3710
        %v3712 = vand.u32 %v3711, 4294901760
        %v3713 = vsub.f32 %v3711, %v3712
        %v3714 = vand.u32 %v3713, 4294901760
        %3715 = vmatpush.msra.mxu0 %v3714
        %v3716 = vand.u32 %v487, 4294901760
        %3717 = vmatmul.f32.gmra.mxu0 %v3716
        %v3718 = vpop.f32.mrf.mxu0
        %v3719 = vadd.f32 %v3688, %v3718
        %3720 = vdwg.mxu0
        %3721 = vmatpush.msra.mxu0 0.0
        %3722 = vmatpush.msra.mxu0 0.0
        %3723 = vmatpush.msra.mxu0 0.0
        %3724 = vmatpush.msra.mxu0 0.0
        %3725 = vmatpush.msra.mxu0 0.0
        %3726 = vmatpush.msra.mxu0 0.0
        %3727 = vmatpush.msra.mxu0 0.0
        %3728 = vmatpush.msra.mxu0 0.0
        %3729 = vmatpush.msra.mxu0 0.0
        %3730 = vmatpush.msra.mxu0 0.0
        %3731 = vmatpush.msra.mxu0 0.0
        %3732 = vmatpush.msra.mxu0 0.0
        %3733 = vmatpush.msra.mxu0 0.0
        %3734 = vmatpush.msra.mxu0 0.0
        %v3735 = vand.u32 %v3503, 4294901760
        %v3736 = vsub.f32 %v3503, %v3735
        %3737 = vmatpush.msra.mxu0 %v3736
        %v3738 = vand.u32 %v3502, 4294901760
        %v3739 = vsub.f32 %v3502, %v3738
        %3740 = vmatpush.msra.mxu0 %v3739
        %v3741 = vand.u32 %v487, 4294901760
        %v3742 = vsub.f32 %v487, %v3741
        %3743 = vmatmul.f32.gmra.mxu0 %v3742
        %v3744 = vpop.f32.mrf.mxu0
        %v3745 = vadd.f32 %v3719, %v3744
        %3746 = vdwg.mxu0
        %3747 = vmatpush.msra.mxu0 0.0
        %3748 = vmatpush.msra.mxu0 0.0
        %3749 = vmatpush.msra.mxu0 0.0
        %3750 = vmatpush.msra.mxu0 0.0
        %3751 = vmatpush.msra.mxu0 0.0
        %3752 = vmatpush.msra.mxu0 0.0
        %3753 = vmatpush.msra.mxu0 0.0
        %3754 = vmatpush.msra.mxu0 0.0
        %3755 = vmatpush.msra.mxu0 0.0
        %3756 = vmatpush.msra.mxu0 0.0
        %3757 = vmatpush.msra.mxu0 0.0
        %3758 = vmatpush.msra.mxu0 0.0
        %3759 = vmatpush.msra.mxu0 0.0
        %3760 = vmatpush.msra.mxu0 0.0
        %v3761 = vand.u32 %v3503, 4294901760
        %3762 = vmatpush.msra.mxu0 %v3761
        %v3763 = vand.u32 %v3502, 4294901760
        %3764 = vmatpush.msra.mxu0 %v3763
        %v3765 = vand.u32 %v487, 4294901760
        %v3766 = vsub.f32 %v487, %v3765
        %v3767 = vand.u32 %v3766, 4294901760
        %3768 = vmatmul.f32.gmra.mxu0 %v3767
        %v3769 = vpop.f32.mrf.mxu0
        %v3770 = vadd.f32 %v3745, %v3769
        %3771 = vdwg.mxu0
        %3772 = vmatpush.msra.mxu0 0.0
        %3773 = vmatpush.msra.mxu0 0.0
        %3774 = vmatpush.msra.mxu0 0.0
        %3775 = vmatpush.msra.mxu0 0.0
        %3776 = vmatpush.msra.mxu0 0.0
        %3777 = vmatpush.msra.mxu0 0.0
        %3778 = vmatpush.msra.mxu0 0.0
        %3779 = vmatpush.msra.mxu0 0.0
        %3780 = vmatpush.msra.mxu0 0.0
        %3781 = vmatpush.msra.mxu0 0.0
        %3782 = vmatpush.msra.mxu0 0.0
        %3783 = vmatpush.msra.mxu0 0.0
        %3784 = vmatpush.msra.mxu0 0.0
        %3785 = vmatpush.msra.mxu0 0.0
        %v3786 = vand.u32 %v3503, 4294901760
        %v3787 = vsub.f32 %v3503, %v3786
        %v3788 = vand.u32 %v3787, 4294901760
        %3789 = vmatpush.msra.mxu0 %v3788
        %v3790 = vand.u32 %v3502, 4294901760
        %v3791 = vsub.f32 %v3502, %v3790
        %v3792 = vand.u32 %v3791, 4294901760
        %3793 = vmatpush.msra.mxu0 %v3792
        %v3794 = vand.u32 %v487, 4294901760
        %3795 = vmatmul.f32.gmra.mxu0 %v3794
        %v3796 = vpop.f32.mrf.mxu0
        %v3797 = vadd.f32 %v3770, %v3796
        %3798 = vdwg.mxu0
        %3799 = vmatpush.msra.mxu0 0.0
        %3800 = vmatpush.msra.mxu0 0.0
        %3801 = vmatpush.msra.mxu0 0.0
        %3802 = vmatpush.msra.mxu0 0.0
        %3803 = vmatpush.msra.mxu0 0.0
        %3804 = vmatpush.msra.mxu0 0.0
        %3805 = vmatpush.msra.mxu0 0.0
        %3806 = vmatpush.msra.mxu0 0.0
        %3807 = vmatpush.msra.mxu0 0.0
        %3808 = vmatpush.msra.mxu0 0.0
        %3809 = vmatpush.msra.mxu0 0.0
        %3810 = vmatpush.msra.mxu0 0.0
        %3811 = vmatpush.msra.mxu0 0.0
        %3812 = vmatpush.msra.mxu0 0.0
        %v3813 = vand.u32 %v3503, 4294901760
        %3814 = vmatpush.msra.mxu0 %v3813
        %v3815 = vand.u32 %v3502, 4294901760
        %3816 = vmatpush.msra.mxu0 %v3815
        %v3817 = vand.u32 %v487, 4294901760
        %3818 = vmatmul.f32.gmra.mxu0 %v3817
        %v3819 = vpop.f32.mrf.mxu0
        %v3820 = vadd.f32 %v3797, %v3819
        %3821 = vdwg.mxu0
        %v3823 = vsel %vm323, %v3661, 0
        %3825 = vmatpush.msra.mxu0 0.0
        %3826 = vmatpush.msra.mxu0 0.0
        %3827 = vmatpush.msra.mxu0 0.0
        %3828 = vmatpush.msra.mxu0 0.0
        %3829 = vmatpush.msra.mxu0 0.0
        %3830 = vmatpush.msra.mxu0 0.0
        %3831 = vmatpush.msra.mxu0 0.0
        %3832 = vmatpush.msra.mxu0 0.0
        %3833 = vmatpush.msra.mxu0 0.0
        %3834 = vmatpush.msra.mxu0 0.0
        %3835 = vmatpush.msra.mxu0 0.0
        %3836 = vmatpush.msra.mxu0 0.0
        %3837 = vmatpush.msra.mxu0 0.0
        %3838 = vmatpush.msra.mxu0 0.0
        %v3839 = vand.u32 %v313, 4294901760
        %3840 = vmatpush.msra.mxu0 %v3839
        %v3841 = vand.u32 %v312, 4294901760
        %3842 = vmatpush.msra.mxu0 %v3841
        %v3843 = vand.u32 %v3823, 4294901760
        %v3844 = vsub.f32 %v3823, %v3843
        %v3845 = vand.u32 %v3844, 4294901760
        %v3846 = vsub.f32 %v3844, %v3845
        %v3847 = vand.u32 %v3846, 4294901760
        %3848 = vmatmul.f32.gmra.mxu0 %v3847
        %v3849 = vpop.f32.mrf.mxu0
        %v3850 = vadd.f32 0.0, %v3849
        %3851 = vdwg.mxu0
        %3852 = vmatpush.msra.mxu0 0.0
        %3853 = vmatpush.msra.mxu0 0.0
        %3854 = vmatpush.msra.mxu0 0.0
        %3855 = vmatpush.msra.mxu0 0.0
        %3856 = vmatpush.msra.mxu0 0.0
        %3857 = vmatpush.msra.mxu0 0.0
        %3858 = vmatpush.msra.mxu0 0.0
        %3859 = vmatpush.msra.mxu0 0.0
        %3860 = vmatpush.msra.mxu0 0.0
        %3861 = vmatpush.msra.mxu0 0.0
        %3862 = vmatpush.msra.mxu0 0.0
        %3863 = vmatpush.msra.mxu0 0.0
        %3864 = vmatpush.msra.mxu0 0.0
        %3865 = vmatpush.msra.mxu0 0.0
        %v3866 = vand.u32 %v313, 4294901760
        %v3867 = vsub.f32 %v313, %v3866
        %v3868 = vand.u32 %v3867, 4294901760
        %v3869 = vsub.f32 %v3867, %v3868
        %v3870 = vand.u32 %v3869, 4294901760
        %3871 = vmatpush.msra.mxu0 %v3870
        %v3872 = vand.u32 %v312, 4294901760
        %v3873 = vsub.f32 %v312, %v3872
        %v3874 = vand.u32 %v3873, 4294901760
        %v3875 = vsub.f32 %v3873, %v3874
        %v3876 = vand.u32 %v3875, 4294901760
        %3877 = vmatpush.msra.mxu0 %v3876
        %v3878 = vand.u32 %v3823, 4294901760
        %3879 = vmatmul.f32.gmra.mxu0 %v3878
        %v3880 = vpop.f32.mrf.mxu0
        %v3881 = vadd.f32 %v3850, %v3880
        %3882 = vdwg.mxu0
        %3883 = vmatpush.msra.mxu0 0.0
        %3884 = vmatpush.msra.mxu0 0.0
        %3885 = vmatpush.msra.mxu0 0.0
        %3886 = vmatpush.msra.mxu0 0.0
        %3887 = vmatpush.msra.mxu0 0.0
        %3888 = vmatpush.msra.mxu0 0.0
        %3889 = vmatpush.msra.mxu0 0.0
        %3890 = vmatpush.msra.mxu0 0.0
        %3891 = vmatpush.msra.mxu0 0.0
        %3892 = vmatpush.msra.mxu0 0.0
        %3893 = vmatpush.msra.mxu0 0.0
        %3894 = vmatpush.msra.mxu0 0.0
        %3895 = vmatpush.msra.mxu0 0.0
        %3896 = vmatpush.msra.mxu0 0.0
        %v3897 = vand.u32 %v313, 4294901760
        %v3898 = vsub.f32 %v313, %v3897
        %3899 = vmatpush.msra.mxu0 %v3898
        %v3900 = vand.u32 %v312, 4294901760
        %v3901 = vsub.f32 %v312, %v3900
        %3902 = vmatpush.msra.mxu0 %v3901
        %v3903 = vand.u32 %v3823, 4294901760
        %v3904 = vsub.f32 %v3823, %v3903
        %3905 = vmatmul.f32.gmra.mxu0 %v3904
        %v3906 = vpop.f32.mrf.mxu0
        %v3907 = vadd.f32 %v3881, %v3906
        %3908 = vdwg.mxu0
        %3909 = vmatpush.msra.mxu0 0.0
        %3910 = vmatpush.msra.mxu0 0.0
        %3911 = vmatpush.msra.mxu0 0.0
        %3912 = vmatpush.msra.mxu0 0.0
        %3913 = vmatpush.msra.mxu0 0.0
        %3914 = vmatpush.msra.mxu0 0.0
        %3915 = vmatpush.msra.mxu0 0.0
        %3916 = vmatpush.msra.mxu0 0.0
        %3917 = vmatpush.msra.mxu0 0.0
        %3918 = vmatpush.msra.mxu0 0.0
        %3919 = vmatpush.msra.mxu0 0.0
        %3920 = vmatpush.msra.mxu0 0.0
        %3921 = vmatpush.msra.mxu0 0.0
        %3922 = vmatpush.msra.mxu0 0.0
        %v3923 = vand.u32 %v313, 4294901760
        %3924 = vmatpush.msra.mxu0 %v3923
        %v3925 = vand.u32 %v312, 4294901760
        %3926 = vmatpush.msra.mxu0 %v3925
        %v3927 = vand.u32 %v3823, 4294901760
        %v3928 = vsub.f32 %v3823, %v3927
        %v3929 = vand.u32 %v3928, 4294901760
        %3930 = vmatmul.f32.gmra.mxu0 %v3929
        %v3931 = vpop.f32.mrf.mxu0
        %v3932 = vadd.f32 %v3907, %v3931
        %3933 = vdwg.mxu0
        %3934 = vmatpush.msra.mxu0 0.0
        %3935 = vmatpush.msra.mxu0 0.0
        %3936 = vmatpush.msra.mxu0 0.0
        %3937 = vmatpush.msra.mxu0 0.0
        %3938 = vmatpush.msra.mxu0 0.0
        %3939 = vmatpush.msra.mxu0 0.0
        %3940 = vmatpush.msra.mxu0 0.0
        %3941 = vmatpush.msra.mxu0 0.0
        %3942 = vmatpush.msra.mxu0 0.0
        %3943 = vmatpush.msra.mxu0 0.0
        %3944 = vmatpush.msra.mxu0 0.0
        %3945 = vmatpush.msra.mxu0 0.0
        %3946 = vmatpush.msra.mxu0 0.0
        %3947 = vmatpush.msra.mxu0 0.0
        %v3948 = vand.u32 %v313, 4294901760
        %v3949 = vsub.f32 %v313, %v3948
        %v3950 = vand.u32 %v3949, 4294901760
        %3951 = vmatpush.msra.mxu0 %v3950
        %v3952 = vand.u32 %v312, 4294901760
        %v3953 = vsub.f32 %v312, %v3952
        %v3954 = vand.u32 %v3953, 4294901760
        %3955 = vmatpush.msra.mxu0 %v3954
        %v3956 = vand.u32 %v3823, 4294901760
        %3957 = vmatmul.f32.gmra.mxu0 %v3956
        %v3958 = vpop.f32.mrf.mxu0
        %v3959 = vadd.f32 %v3932, %v3958
        %3960 = vdwg.mxu0
        %3961 = vmatpush.msra.mxu0 0.0
        %3962 = vmatpush.msra.mxu0 0.0
        %3963 = vmatpush.msra.mxu0 0.0
        %3964 = vmatpush.msra.mxu0 0.0
        %3965 = vmatpush.msra.mxu0 0.0
        %3966 = vmatpush.msra.mxu0 0.0
        %3967 = vmatpush.msra.mxu0 0.0
        %3968 = vmatpush.msra.mxu0 0.0
        %3969 = vmatpush.msra.mxu0 0.0
        %3970 = vmatpush.msra.mxu0 0.0
        %3971 = vmatpush.msra.mxu0 0.0
        %3972 = vmatpush.msra.mxu0 0.0
        %3973 = vmatpush.msra.mxu0 0.0
        %3974 = vmatpush.msra.mxu0 0.0
        %v3975 = vand.u32 %v313, 4294901760
        %3976 = vmatpush.msra.mxu0 %v3975
        %v3977 = vand.u32 %v312, 4294901760
        %3978 = vmatpush.msra.mxu0 %v3977
        %v3979 = vand.u32 %v3823, 4294901760
        %3980 = vmatmul.f32.gmra.mxu0 %v3979
        %v3981 = vpop.f32.mrf.mxu0
        %v3982 = vadd.f32 %v3959, %v3981
        %3983 = vdwg.mxu0
        %3984 = vmatpush.msra.mxu0 0.0
        %3985 = vmatpush.msra.mxu0 0.0
        %3986 = vmatpush.msra.mxu0 0.0
        %3987 = vmatpush.msra.mxu0 0.0
        %3988 = vmatpush.msra.mxu0 0.0
        %3989 = vmatpush.msra.mxu0 0.0
        %3990 = vmatpush.msra.mxu0 0.0
        %3991 = vmatpush.msra.mxu0 0.0
        %3992 = vmatpush.msra.mxu0 0.0
        %3993 = vmatpush.msra.mxu0 0.0
        %3994 = vmatpush.msra.mxu0 0.0
        %3995 = vmatpush.msra.mxu0 0.0
        %3996 = vmatpush.msra.mxu0 0.0
        %3997 = vmatpush.msra.mxu0 0.0
        %v3998 = vand.u32 %v316, 4294901760
        %3999 = vmatpush.msra.mxu0 %v3998
        %v4000 = vand.u32 %v315, 4294901760
        %4001 = vmatpush.msra.mxu0 %v4000
        %v4002 = vand.u32 %v3823, 4294901760
        %v4003 = vsub.f32 %v3823, %v4002
        %v4004 = vand.u32 %v4003, 4294901760
        %v4005 = vsub.f32 %v4003, %v4004
        %v4006 = vand.u32 %v4005, 4294901760
        %4007 = vmatmul.f32.gmra.mxu0 %v4006
        %v4008 = vpop.f32.mrf.mxu0
        %v4009 = vadd.f32 0.0, %v4008
        %4010 = vdwg.mxu0
        %4011 = vmatpush.msra.mxu0 0.0
        %4012 = vmatpush.msra.mxu0 0.0
        %4013 = vmatpush.msra.mxu0 0.0
        %4014 = vmatpush.msra.mxu0 0.0
        %4015 = vmatpush.msra.mxu0 0.0
        %4016 = vmatpush.msra.mxu0 0.0
        %4017 = vmatpush.msra.mxu0 0.0
        %4018 = vmatpush.msra.mxu0 0.0
        %4019 = vmatpush.msra.mxu0 0.0
        %4020 = vmatpush.msra.mxu0 0.0
        %4021 = vmatpush.msra.mxu0 0.0
        %4022 = vmatpush.msra.mxu0 0.0
        %4023 = vmatpush.msra.mxu0 0.0
        %4024 = vmatpush.msra.mxu0 0.0
        %v4025 = vand.u32 %v316, 4294901760
        %v4026 = vsub.f32 %v316, %v4025
        %v4027 = vand.u32 %v4026, 4294901760
        %v4028 = vsub.f32 %v4026, %v4027
        %v4029 = vand.u32 %v4028, 4294901760
        %4030 = vmatpush.msra.mxu0 %v4029
        %v4031 = vand.u32 %v315, 4294901760
        %v4032 = vsub.f32 %v315, %v4031
        %v4033 = vand.u32 %v4032, 4294901760
        %v4034 = vsub.f32 %v4032, %v4033
        %v4035 = vand.u32 %v4034, 4294901760
        %4036 = vmatpush.msra.mxu0 %v4035
        %v4037 = vand.u32 %v3823, 4294901760
        %4038 = vmatmul.f32.gmra.mxu0 %v4037
        %v4039 = vpop.f32.mrf.mxu0
        %v4040 = vadd.f32 %v4009, %v4039
        %4041 = vdwg.mxu0
        %4042 = vmatpush.msra.mxu0 0.0
        %4043 = vmatpush.msra.mxu0 0.0
        %4044 = vmatpush.msra.mxu0 0.0
        %4045 = vmatpush.msra.mxu0 0.0
        %4046 = vmatpush.msra.mxu0 0.0
        %4047 = vmatpush.msra.mxu0 0.0
        %4048 = vmatpush.msra.mxu0 0.0
        %4049 = vmatpush.msra.mxu0 0.0
        %4050 = vmatpush.msra.mxu0 0.0
        %4051 = vmatpush.msra.mxu0 0.0
        %4052 = vmatpush.msra.mxu0 0.0
        %4053 = vmatpush.msra.mxu0 0.0
        %4054 = vmatpush.msra.mxu0 0.0
        %4055 = vmatpush.msra.mxu0 0.0
        %v4056 = vand.u32 %v316, 4294901760
        %v4057 = vsub.f32 %v316, %v4056
        %4058 = vmatpush.msra.mxu0 %v4057
        %v4059 = vand.u32 %v315, 4294901760
        %v4060 = vsub.f32 %v315, %v4059
        %4061 = vmatpush.msra.mxu0 %v4060
        %v4062 = vand.u32 %v3823, 4294901760
        %v4063 = vsub.f32 %v3823, %v4062
        %4064 = vmatmul.f32.gmra.mxu0 %v4063
        %v4065 = vpop.f32.mrf.mxu0
        %v4066 = vadd.f32 %v4040, %v4065
        %4067 = vdwg.mxu0
        %4068 = vmatpush.msra.mxu0 0.0
        %4069 = vmatpush.msra.mxu0 0.0
        %4070 = vmatpush.msra.mxu0 0.0
        %4071 = vmatpush.msra.mxu0 0.0
        %4072 = vmatpush.msra.mxu0 0.0
        %4073 = vmatpush.msra.mxu0 0.0
        %4074 = vmatpush.msra.mxu0 0.0
        %4075 = vmatpush.msra.mxu0 0.0
        %4076 = vmatpush.msra.mxu0 0.0
        %4077 = vmatpush.msra.mxu0 0.0
        %4078 = vmatpush.msra.mxu0 0.0
        %4079 = vmatpush.msra.mxu0 0.0
        %4080 = vmatpush.msra.mxu0 0.0
        %4081 = vmatpush.msra.mxu0 0.0
        %v4082 = vand.u32 %v316, 4294901760
        %4083 = vmatpush.msra.mxu0 %v4082
        %v4084 = vand.u32 %v315, 4294901760
        %4085 = vmatpush.msra.mxu0 %v4084
        %v4086 = vand.u32 %v3823, 4294901760
        %v4087 = vsub.f32 %v3823, %v4086
        %v4088 = vand.u32 %v4087, 4294901760
        %4089 = vmatmul.f32.gmra.mxu0 %v4088
        %v4090 = vpop.f32.mrf.mxu0
        %v4091 = vadd.f32 %v4066, %v4090
        %4092 = vdwg.mxu0
        %4093 = vmatpush.msra.mxu0 0.0
        %4094 = vmatpush.msra.mxu0 0.0
        %4095 = vmatpush.msra.mxu0 0.0
        %4096 = vmatpush.msra.mxu0 0.0
        %4097 = vmatpush.msra.mxu0 0.0
        %4098 = vmatpush.msra.mxu0 0.0
        %4099 = vmatpush.msra.mxu0 0.0
        %4100 = vmatpush.msra.mxu0 0.0
        %4101 = vmatpush.msra.mxu0 0.0
        %4102 = vmatpush.msra.mxu0 0.0
        %4103 = vmatpush.msra.mxu0 0.0
        %4104 = vmatpush.msra.mxu0 0.0
        %4105 = vmatpush.msra.mxu0 0.0
        %4106 = vmatpush.msra.mxu0 0.0
        %v4107 = vand.u32 %v316, 4294901760
        %v4108 = vsub.f32 %v316, %v4107
        %v4109 = vand.u32 %v4108, 4294901760
        %4110 = vmatpush.msra.mxu0 %v4109
        %v4111 = vand.u32 %v315, 4294901760
        %v4112 = vsub.f32 %v315, %v4111
        %v4113 = vand.u32 %v4112, 4294901760
        %4114 = vmatpush.msra.mxu0 %v4113
        %v4115 = vand.u32 %v3823, 4294901760
        %4116 = vmatmul.f32.gmra.mxu0 %v4115
        %v4117 = vpop.f32.mrf.mxu0
        %v4118 = vadd.f32 %v4091, %v4117
        %4119 = vdwg.mxu0
        %4120 = vmatpush.msra.mxu0 0.0
        %4121 = vmatpush.msra.mxu0 0.0
        %4122 = vmatpush.msra.mxu0 0.0
        %4123 = vmatpush.msra.mxu0 0.0
        %4124 = vmatpush.msra.mxu0 0.0
        %4125 = vmatpush.msra.mxu0 0.0
        %4126 = vmatpush.msra.mxu0 0.0
        %4127 = vmatpush.msra.mxu0 0.0
        %4128 = vmatpush.msra.mxu0 0.0
        %4129 = vmatpush.msra.mxu0 0.0
        %4130 = vmatpush.msra.mxu0 0.0
        %4131 = vmatpush.msra.mxu0 0.0
        %4132 = vmatpush.msra.mxu0 0.0
        %4133 = vmatpush.msra.mxu0 0.0
        %v4134 = vand.u32 %v316, 4294901760
        %4135 = vmatpush.msra.mxu0 %v4134
        %v4136 = vand.u32 %v315, 4294901760
        %4137 = vmatpush.msra.mxu0 %v4136
        %v4138 = vand.u32 %v3823, 4294901760
        %4139 = vmatmul.f32.gmra.mxu0 %v4138
        %v4140 = vpop.f32.mrf.mxu0
        %v4141 = vadd.f32 %v4118, %v4140
        %4142 = vdwg.mxu0
        %v4144 = vsel %vm323, %v3820, 0
        %4146 = vmatpush.msra.mxu0 0.0
        %4147 = vmatpush.msra.mxu0 0.0
        %4148 = vmatpush.msra.mxu0 0.0
        %4149 = vmatpush.msra.mxu0 0.0
        %4150 = vmatpush.msra.mxu0 0.0
        %4151 = vmatpush.msra.mxu0 0.0
        %4152 = vmatpush.msra.mxu0 0.0
        %4153 = vmatpush.msra.mxu0 0.0
        %4154 = vmatpush.msra.mxu0 0.0
        %4155 = vmatpush.msra.mxu0 0.0
        %4156 = vmatpush.msra.mxu0 0.0
        %4157 = vmatpush.msra.mxu0 0.0
        %4158 = vmatpush.msra.mxu0 0.0
        %4159 = vmatpush.msra.mxu0 0.0
        %v4160 = vand.u32 %v313, 4294901760
        %4161 = vmatpush.msra.mxu0 %v4160
        %v4162 = vand.u32 %v312, 4294901760
        %4163 = vmatpush.msra.mxu0 %v4162
        %v4164 = vand.u32 %v4144, 4294901760
        %v4165 = vsub.f32 %v4144, %v4164
        %v4166 = vand.u32 %v4165, 4294901760
        %v4167 = vsub.f32 %v4165, %v4166
        %v4168 = vand.u32 %v4167, 4294901760
        %4169 = vmatmul.f32.gmra.mxu0 %v4168
        %v4170 = vpop.f32.mrf.mxu0
        %v4171 = vadd.f32 0.0, %v4170
        %4172 = vdwg.mxu0
        %4173 = vmatpush.msra.mxu0 0.0
        %4174 = vmatpush.msra.mxu0 0.0
        %4175 = vmatpush.msra.mxu0 0.0
        %4176 = vmatpush.msra.mxu0 0.0
        %4177 = vmatpush.msra.mxu0 0.0
        %4178 = vmatpush.msra.mxu0 0.0
        %4179 = vmatpush.msra.mxu0 0.0
        %4180 = vmatpush.msra.mxu0 0.0
        %4181 = vmatpush.msra.mxu0 0.0
        %4182 = vmatpush.msra.mxu0 0.0
        %4183 = vmatpush.msra.mxu0 0.0
        %4184 = vmatpush.msra.mxu0 0.0
        %4185 = vmatpush.msra.mxu0 0.0
        %4186 = vmatpush.msra.mxu0 0.0
        %v4187 = vand.u32 %v313, 4294901760
        %v4188 = vsub.f32 %v313, %v4187
        %v4189 = vand.u32 %v4188, 4294901760
        %v4190 = vsub.f32 %v4188, %v4189
        %v4191 = vand.u32 %v4190, 4294901760
        %4192 = vmatpush.msra.mxu0 %v4191
        %v4193 = vand.u32 %v312, 4294901760
        %v4194 = vsub.f32 %v312, %v4193
        %v4195 = vand.u32 %v4194, 4294901760
        %v4196 = vsub.f32 %v4194, %v4195
        %v4197 = vand.u32 %v4196, 4294901760
        %4198 = vmatpush.msra.mxu0 %v4197
        %v4199 = vand.u32 %v4144, 4294901760
        %4200 = vmatmul.f32.gmra.mxu0 %v4199
        %v4201 = vpop.f32.mrf.mxu0
        %v4202 = vadd.f32 %v4171, %v4201
        %4203 = vdwg.mxu0
        %4204 = vmatpush.msra.mxu0 0.0
        %4205 = vmatpush.msra.mxu0 0.0
        %4206 = vmatpush.msra.mxu0 0.0
        %4207 = vmatpush.msra.mxu0 0.0
        %4208 = vmatpush.msra.mxu0 0.0
        %4209 = vmatpush.msra.mxu0 0.0
        %4210 = vmatpush.msra.mxu0 0.0
        %4211 = vmatpush.msra.mxu0 0.0
        %4212 = vmatpush.msra.mxu0 0.0
        %4213 = vmatpush.msra.mxu0 0.0
        %4214 = vmatpush.msra.mxu0 0.0
        %4215 = vmatpush.msra.mxu0 0.0
        %4216 = vmatpush.msra.mxu0 0.0
        %4217 = vmatpush.msra.mxu0 0.0
        %v4218 = vand.u32 %v313, 4294901760
        %v4219 = vsub.f32 %v313, %v4218
        %4220 = vmatpush.msra.mxu0 %v4219
        %v4221 = vand.u32 %v312, 4294901760
        %v4222 = vsub.f32 %v312, %v4221
        %4223 = vmatpush.msra.mxu0 %v4222
        %v4224 = vand.u32 %v4144, 4294901760
        %v4225 = vsub.f32 %v4144, %v4224
        %4226 = vmatmul.f32.gmra.mxu0 %v4225
        %v4227 = vpop.f32.mrf.mxu0
        %v4228 = vadd.f32 %v4202, %v4227
        %4229 = vdwg.mxu0
        %4230 = vmatpush.msra.mxu0 0.0
        %4231 = vmatpush.msra.mxu0 0.0
        %4232 = vmatpush.msra.mxu0 0.0
        %4233 = vmatpush.msra.mxu0 0.0
        %4234 = vmatpush.msra.mxu0 0.0
        %4235 = vmatpush.msra.mxu0 0.0
        %4236 = vmatpush.msra.mxu0 0.0
        %4237 = vmatpush.msra.mxu0 0.0
        %4238 = vmatpush.msra.mxu0 0.0
        %4239 = vmatpush.msra.mxu0 0.0
        %4240 = vmatpush.msra.mxu0 0.0
        %4241 = vmatpush.msra.mxu0 0.0
        %4242 = vmatpush.msra.mxu0 0.0
        %4243 = vmatpush.msra.mxu0 0.0
        %v4244 = vand.u32 %v313, 4294901760
        %4245 = vmatpush.msra.mxu0 %v4244
        %v4246 = vand.u32 %v312, 4294901760
        %4247 = vmatpush.msra.mxu0 %v4246
        %v4248 = vand.u32 %v4144, 4294901760
        %v4249 = vsub.f32 %v4144, %v4248
        %v4250 = vand.u32 %v4249, 4294901760
        %4251 = vmatmul.f32.gmra.mxu0 %v4250
        %v4252 = vpop.f32.mrf.mxu0
        %v4253 = vadd.f32 %v4228, %v4252
        %4254 = vdwg.mxu0
        %4255 = vmatpush.msra.mxu0 0.0
        %4256 = vmatpush.msra.mxu0 0.0
        %4257 = vmatpush.msra.mxu0 0.0
        %4258 = vmatpush.msra.mxu0 0.0
        %4259 = vmatpush.msra.mxu0 0.0
        %4260 = vmatpush.msra.mxu0 0.0
        %4261 = vmatpush.msra.mxu0 0.0
        %4262 = vmatpush.msra.mxu0 0.0
        %4263 = vmatpush.msra.mxu0 0.0
        %4264 = vmatpush.msra.mxu0 0.0
        %4265 = vmatpush.msra.mxu0 0.0
        %4266 = vmatpush.msra.mxu0 0.0
        %4267 = vmatpush.msra.mxu0 0.0
        %4268 = vmatpush.msra.mxu0 0.0
        %v4269 = vand.u32 %v313, 4294901760
        %v4270 = vsub.f32 %v313, %v4269
        %v4271 = vand.u32 %v4270, 4294901760
        %4272 = vmatpush.msra.mxu0 %v4271
        %v4273 = vand.u32 %v312, 4294901760
        %v4274 = vsub.f32 %v312, %v4273
        %v4275 = vand.u32 %v4274, 4294901760
        %4276 = vmatpush.msra.mxu0 %v4275
        %v4277 = vand.u32 %v4144, 4294901760
        %4278 = vmatmul.f32.gmra.mxu0 %v4277
        %v4279 = vpop.f32.mrf.mxu0
        %v4280 = vadd.f32 %v4253, %v4279
        %4281 = vdwg.mxu0
        %4282 = vmatpush.msra.mxu0 0.0
        %4283 = vmatpush.msra.mxu0 0.0
        %4284 = vmatpush.msra.mxu0 0.0
        %4285 = vmatpush.msra.mxu0 0.0
        %4286 = vmatpush.msra.mxu0 0.0
        %4287 = vmatpush.msra.mxu0 0.0
        %4288 = vmatpush.msra.mxu0 0.0
        %4289 = vmatpush.msra.mxu0 0.0
        %4290 = vmatpush.msra.mxu0 0.0
        %4291 = vmatpush.msra.mxu0 0.0
        %4292 = vmatpush.msra.mxu0 0.0
        %4293 = vmatpush.msra.mxu0 0.0
        %4294 = vmatpush.msra.mxu0 0.0
        %4295 = vmatpush.msra.mxu0 0.0
        %v4296 = vand.u32 %v313, 4294901760
        %4297 = vmatpush.msra.mxu0 %v4296
        %v4298 = vand.u32 %v312, 4294901760
        %4299 = vmatpush.msra.mxu0 %v4298
        %v4300 = vand.u32 %v4144, 4294901760
        %4301 = vmatmul.f32.gmra.mxu0 %v4300
        %v4302 = vpop.f32.mrf.mxu0
        %v4303 = vadd.f32 %v4280, %v4302
        %4304 = vdwg.mxu0
        %4305 = vmatpush.msra.mxu0 0.0
        %4306 = vmatpush.msra.mxu0 0.0
        %4307 = vmatpush.msra.mxu0 0.0
        %4308 = vmatpush.msra.mxu0 0.0
        %4309 = vmatpush.msra.mxu0 0.0
        %4310 = vmatpush.msra.mxu0 0.0
        %4311 = vmatpush.msra.mxu0 0.0
        %4312 = vmatpush.msra.mxu0 0.0
        %4313 = vmatpush.msra.mxu0 0.0
        %4314 = vmatpush.msra.mxu0 0.0
        %4315 = vmatpush.msra.mxu0 0.0
        %4316 = vmatpush.msra.mxu0 0.0
        %4317 = vmatpush.msra.mxu0 0.0
        %4318 = vmatpush.msra.mxu0 0.0
        %v4319 = vand.u32 %v316, 4294901760
        %4320 = vmatpush.msra.mxu0 %v4319
        %v4321 = vand.u32 %v315, 4294901760
        %4322 = vmatpush.msra.mxu0 %v4321
        %v4323 = vand.u32 %v4144, 4294901760
        %v4324 = vsub.f32 %v4144, %v4323
        %v4325 = vand.u32 %v4324, 4294901760
        %v4326 = vsub.f32 %v4324, %v4325
        %v4327 = vand.u32 %v4326, 4294901760
        %4328 = vmatmul.f32.gmra.mxu0 %v4327
        %v4329 = vpop.f32.mrf.mxu0
        %v4330 = vadd.f32 0.0, %v4329
        %4331 = vdwg.mxu0
        %4332 = vmatpush.msra.mxu0 0.0
        %4333 = vmatpush.msra.mxu0 0.0
        %4334 = vmatpush.msra.mxu0 0.0
        %4335 = vmatpush.msra.mxu0 0.0
        %4336 = vmatpush.msra.mxu0 0.0
        %4337 = vmatpush.msra.mxu0 0.0
        %4338 = vmatpush.msra.mxu0 0.0
        %4339 = vmatpush.msra.mxu0 0.0
        %4340 = vmatpush.msra.mxu0 0.0
        %4341 = vmatpush.msra.mxu0 0.0
        %4342 = vmatpush.msra.mxu0 0.0
        %4343 = vmatpush.msra.mxu0 0.0
        %4344 = vmatpush.msra.mxu0 0.0
        %4345 = vmatpush.msra.mxu0 0.0
        %v4346 = vand.u32 %v316, 4294901760
        %v4347 = vsub.f32 %v316, %v4346
        %v4348 = vand.u32 %v4347, 4294901760
        %v4349 = vsub.f32 %v4347, %v4348
        %v4350 = vand.u32 %v4349, 4294901760
        %4351 = vmatpush.msra.mxu0 %v4350
        %v4352 = vand.u32 %v315, 4294901760
        %v4353 = vsub.f32 %v315, %v4352
        %v4354 = vand.u32 %v4353, 4294901760
        %v4355 = vsub.f32 %v4353, %v4354
        %v4356 = vand.u32 %v4355, 4294901760
        %4357 = vmatpush.msra.mxu0 %v4356
        %v4358 = vand.u32 %v4144, 4294901760
        %4359 = vmatmul.f32.gmra.mxu0 %v4358
        %v4360 = vpop.f32.mrf.mxu0
        %v4361 = vadd.f32 %v4330, %v4360
        %4362 = vdwg.mxu0
        %4363 = vmatpush.msra.mxu0 0.0
        %4364 = vmatpush.msra.mxu0 0.0
        %4365 = vmatpush.msra.mxu0 0.0
        %4366 = vmatpush.msra.mxu0 0.0
        %4367 = vmatpush.msra.mxu0 0.0
        %4368 = vmatpush.msra.mxu0 0.0
        %4369 = vmatpush.msra.mxu0 0.0
        %4370 = vmatpush.msra.mxu0 0.0
        %4371 = vmatpush.msra.mxu0 0.0
        %4372 = vmatpush.msra.mxu0 0.0
        %4373 = vmatpush.msra.mxu0 0.0
        %4374 = vmatpush.msra.mxu0 0.0
        %4375 = vmatpush.msra.mxu0 0.0
        %4376 = vmatpush.msra.mxu0 0.0
        %v4377 = vand.u32 %v316, 4294901760
        %v4378 = vsub.f32 %v316, %v4377
        %4379 = vmatpush.msra.mxu0 %v4378
        %v4380 = vand.u32 %v315, 4294901760
        %v4381 = vsub.f32 %v315, %v4380
        %4382 = vmatpush.msra.mxu0 %v4381
        %v4383 = vand.u32 %v4144, 4294901760
        %v4384 = vsub.f32 %v4144, %v4383
        %4385 = vmatmul.f32.gmra.mxu0 %v4384
        %v4386 = vpop.f32.mrf.mxu0
        %v4387 = vadd.f32 %v4361, %v4386
        %4388 = vdwg.mxu0
        %4389 = vmatpush.msra.mxu0 0.0
        %4390 = vmatpush.msra.mxu0 0.0
        %4391 = vmatpush.msra.mxu0 0.0
        %4392 = vmatpush.msra.mxu0 0.0
        %4393 = vmatpush.msra.mxu0 0.0
        %4394 = vmatpush.msra.mxu0 0.0
        %4395 = vmatpush.msra.mxu0 0.0
        %4396 = vmatpush.msra.mxu0 0.0
        %4397 = vmatpush.msra.mxu0 0.0
        %4398 = vmatpush.msra.mxu0 0.0
        %4399 = vmatpush.msra.mxu0 0.0
        %4400 = vmatpush.msra.mxu0 0.0
        %4401 = vmatpush.msra.mxu0 0.0
        %4402 = vmatpush.msra.mxu0 0.0
        %v4403 = vand.u32 %v316, 4294901760
        %4404 = vmatpush.msra.mxu0 %v4403
        %v4405 = vand.u32 %v315, 4294901760
        %4406 = vmatpush.msra.mxu0 %v4405
        %v4407 = vand.u32 %v4144, 4294901760
        %v4408 = vsub.f32 %v4144, %v4407
        %v4409 = vand.u32 %v4408, 4294901760
        %4410 = vmatmul.f32.gmra.mxu0 %v4409
        %v4411 = vpop.f32.mrf.mxu0
        %v4412 = vadd.f32 %v4387, %v4411
        %4413 = vdwg.mxu0
        %4414 = vmatpush.msra.mxu0 0.0
        %4415 = vmatpush.msra.mxu0 0.0
        %4416 = vmatpush.msra.mxu0 0.0
        %4417 = vmatpush.msra.mxu0 0.0
        %4418 = vmatpush.msra.mxu0 0.0
        %4419 = vmatpush.msra.mxu0 0.0
        %4420 = vmatpush.msra.mxu0 0.0
        %4421 = vmatpush.msra.mxu0 0.0
        %4422 = vmatpush.msra.mxu0 0.0
        %4423 = vmatpush.msra.mxu0 0.0
        %4424 = vmatpush.msra.mxu0 0.0
        %4425 = vmatpush.msra.mxu0 0.0
        %4426 = vmatpush.msra.mxu0 0.0
        %4427 = vmatpush.msra.mxu0 0.0
        %v4428 = vand.u32 %v316, 4294901760
        %v4429 = vsub.f32 %v316, %v4428
        %v4430 = vand.u32 %v4429, 4294901760
        %4431 = vmatpush.msra.mxu0 %v4430
        %v4432 = vand.u32 %v315, 4294901760
        %v4433 = vsub.f32 %v315, %v4432
        %v4434 = vand.u32 %v4433, 4294901760
        %4435 = vmatpush.msra.mxu0 %v4434
        %v4436 = vand.u32 %v4144, 4294901760
        %4437 = vmatmul.f32.gmra.mxu0 %v4436
        %v4438 = vpop.f32.mrf.mxu0
        %v4439 = vadd.f32 %v4412, %v4438
        %4440 = vdwg.mxu0
        %4441 = vmatpush.msra.mxu0 0.0
        %4442 = vmatpush.msra.mxu0 0.0
        %4443 = vmatpush.msra.mxu0 0.0
        %4444 = vmatpush.msra.mxu0 0.0
        %4445 = vmatpush.msra.mxu0 0.0
        %4446 = vmatpush.msra.mxu0 0.0
        %4447 = vmatpush.msra.mxu0 0.0
        %4448 = vmatpush.msra.mxu0 0.0
        %4449 = vmatpush.msra.mxu0 0.0
        %4450 = vmatpush.msra.mxu0 0.0
        %4451 = vmatpush.msra.mxu0 0.0
        %4452 = vmatpush.msra.mxu0 0.0
        %4453 = vmatpush.msra.mxu0 0.0
        %4454 = vmatpush.msra.mxu0 0.0
        %v4455 = vand.u32 %v316, 4294901760
        %4456 = vmatpush.msra.mxu0 %v4455
        %v4457 = vand.u32 %v315, 4294901760
        %4458 = vmatpush.msra.mxu0 %v4457
        %v4459 = vand.u32 %v4144, 4294901760
        %4460 = vmatmul.f32.gmra.mxu0 %v4459
        %v4461 = vpop.f32.mrf.mxu0
        %v4462 = vadd.f32 %v4439, %v4461
        %4463 = vdwg.mxu0
        %s4464 = vtos %v320
        %v4465 = vstv %s4464
        %v4466 = vmul.f32 %v4465, %v3982
        %4467 = vrot.lane.b32.xlu0 %v320, 127
        %v4468 = vpop.permute.xlu0 %4467
        %s4469 = vtos %v4468
        %v4470 = vstv %s4469
        %v4471 = vmul.f32 %v4470, %v4141
        %v4472 = vadd.f32 %v4466, %v4471
        %4473 = vrot.lane.b32.xlu0 %v320, 126
        %v4474 = vpop.permute.xlu0 %4473
        %s4475 = vtos %v4474
        %v4476 = vstv %s4475
        %v4477 = vmul.f32 %v4476, %v4303
        %v4478 = vadd.f32 %v4472, %v4477
        %4479 = vrot.lane.b32.xlu0 %v320, 125
        %v4480 = vpop.permute.xlu0 %4479
        %s4481 = vtos %v4480
        %v4482 = vstv %s4481
        %v4483 = vmul.f32 %v4482, %v4462
        %v4484 = vadd.f32 %v4478, %v4483
        %s4485 = scalar_lea.vmem %s307, 96
        %4486 = vst.msk [vmem:[%s4485] sm:$0xff] %vm1311, %v4484
        %v4487 = vrot.slane %v320, 1
        %s4488 = vtos %v4487
        %v4489 = vstv %s4488
        %v4490 = vmul.f32 %v4489, %v3982
        %4491 = vrot.lane.b32.xlu0 %v4487, 127
        %v4492 = vpop.permute.xlu0 %4491
        %s4493 = vtos %v4492
        %v4494 = vstv %s4493
        %v4495 = vmul.f32 %v4494, %v4141
        %v4496 = vadd.f32 %v4490, %v4495
        %4497 = vrot.lane.b32.xlu0 %v4487, 126
        %v4498 = vpop.permute.xlu0 %4497
        %s4499 = vtos %v4498
        %v4500 = vstv %s4499
        %v4501 = vmul.f32 %v4500, %v4303
        %v4502 = vadd.f32 %v4496, %v4501
        %4503 = vrot.lane.b32.xlu0 %v4487, 125
        %v4504 = vpop.permute.xlu0 %4503
        %s4505 = vtos %v4504
        %v4506 = vstv %s4505
        %v4507 = vmul.f32 %v4506, %v4462
        %v4508 = vadd.f32 %v4502, %v4507
        %s4509 = scalar_lea.vmem %s307, 104
        %4510 = vst.msk [vmem:[%s4509] sm:$0xff] %vm1311, %v4508
        %v4511 = vrot.slane %v320, 2
        %s4512 = vtos %v4511
        %v4513 = vstv %s4512
        %v4514 = vmul.f32 %v4513, %v3982
        %4515 = vrot.lane.b32.xlu0 %v4511, 127
        %v4516 = vpop.permute.xlu0 %4515
        %s4517 = vtos %v4516
        %v4518 = vstv %s4517
        %v4519 = vmul.f32 %v4518, %v4141
        %v4520 = vadd.f32 %v4514, %v4519
        %4521 = vrot.lane.b32.xlu0 %v4511, 126
        %v4522 = vpop.permute.xlu0 %4521
        %s4523 = vtos %v4522
        %v4524 = vstv %s4523
        %v4525 = vmul.f32 %v4524, %v4303
        %v4526 = vadd.f32 %v4520, %v4525
        %4527 = vrot.lane.b32.xlu0 %v4511, 125
        %v4528 = vpop.permute.xlu0 %4527
        %s4529 = vtos %v4528
        %v4530 = vstv %s4529
        %v4531 = vmul.f32 %v4530, %v4462
        %v4532 = vadd.f32 %v4526, %v4531
        %s4533 = scalar_lea.vmem %s307, 112
        %4534 = vst.msk [vmem:[%s4533] sm:$0xff] %vm1311, %v4532
        %v4535 = vrot.slane %v320, 3
        %s4536 = vtos %v4535
        %v4537 = vstv %s4536
        %v4538 = vmul.f32 %v4537, %v3982
        %4539 = vrot.lane.b32.xlu0 %v4535, 127
        %v4540 = vpop.permute.xlu0 %4539
        %s4541 = vtos %v4540
        %v4542 = vstv %s4541
        %v4543 = vmul.f32 %v4542, %v4141
        %v4544 = vadd.f32 %v4538, %v4543
        %4545 = vrot.lane.b32.xlu0 %v4535, 126
        %v4546 = vpop.permute.xlu0 %4545
        %s4547 = vtos %v4546
        %v4548 = vstv %s4547
        %v4549 = vmul.f32 %v4548, %v4303
        %v4550 = vadd.f32 %v4544, %v4549
        %4551 = vrot.lane.b32.xlu0 %v4535, 125
        %v4552 = vpop.permute.xlu0 %4551
        %s4553 = vtos %v4552
        %v4554 = vstv %s4553
        %v4555 = vmul.f32 %v4554, %v4462
        %v4556 = vadd.f32 %v4550, %v4555
        %s4557 = scalar_lea.vmem %s307, 120
        %4558 = vst.msk [vmem:[%s4557] sm:$0xff] %vm1311, %v4556
        %s4559 = smul.u32 16, %s25
        %p4560 = scmp.lt.s32.totalorder %s24, 1
        %s4561 = scalar_select %p4560, %s24, 1
        %p4562 = scmp.lt.s32.totalorder %s4559, 15
        %s4563 = scalar_select %p4562, %s4559, 15
        %p4564 = scmp.lt.s32.totalorder %s26, 0
        %s4565 = scalar_select %p4564, %s26, 0
        %p4566 = scmp.lt.s32.totalorder %s27, 0
        %s4567 = scalar_select %p4566, %s27, 0
        %s4568 = sadd.s32 %s4567, %s4565
        %s4569 = sadd.s32 %s4568, %s4563
        %s4570 = smul.addr %s4561, 16
        %s4571 = sadd.s32 %s4569, %s4570
        %s4572 = smul.addr %s4571, 8
        %s4573 = scalar_lea.vmem %s4, %s4572
        // Predicated region
        $region41: #{tpu_custom_call.1} parent=35 // pred_check
          %p4574 = pneg %p168
        $region42: #{tpu_custom_call.1} parent=35 // pred_check_branch
          %4576 = sbr.rel (%p4574) target = $region44
        $region43: #{tpu_custom_call.1} parent=35 // pred_region
          %s4577 = smul.u32 16, %s25
        $region44: #{tpu_custom_call.1} parent=35 // pred_fallthru
          _
      $region36: #{tpu_custom_call.1} parent=5 // pred_fallthru
        _
      %p4578 = scmp.le.s32.totalorder 2, %s13
      // Predicated region
      $region45: #{tpu_custom_call.1} parent=5 // pred_check
        %p4579 = pneg %p4578
      $region46: #{tpu_custom_call.1} parent=5 // pred_check_branch
        %4581 = sbr.rel (%p4579) target = $region48
      $region47: #{tpu_custom_call.1} parent=5 // pred_region
        %s4582 = ssub.s32 %s13, 2
        // Predicated region
        $region49: #{tpu_custom_call.1} parent=47 // pred_check
          %p4583 = pneg %p174
        $region50: #{tpu_custom_call.1} parent=47 // pred_check_branch
          %4585 = sbr.rel (%p4583) target = $region52
        $region51: #{tpu_custom_call.1} parent=47 // pred_region
          %s4586 = smul.u32 16, %s29
          %p4587 = scmp.lt.s32.totalorder %s28, 1
          %s4588 = scalar_select %p4587, %s28, 1
          %p4589 = scmp.lt.s32.totalorder %s4586, 15
          %s4590 = scalar_select %p4589, %s4586, 15
          %p4591 = scmp.lt.s32.totalorder %s30, 0
          %s4592 = scalar_select %p4591, %s30, 0
          %p4593 = scmp.lt.s32.totalorder %s31, 0
          %s4594 = scalar_select %p4593, %s31, 0
          %s4595 = sadd.s32 %s4594, %s4592
          %s4596 = sadd.s32 %s4595, %s4590
          %s4597 = smul.addr %s4588, 16
          %s4598 = sadd.s32 %s4596, %s4597
          %s4599 = smul.addr %s4598, 8
          %s4600 = scalar_lea.vmem %s4, %s4599
        $region52: #{tpu_custom_call.1} parent=47 // pred_fallthru
          _
      $region48: #{tpu_custom_call.1} parent=5 // pred_fallthru
        _
    $region6: #{tpu_custom_call.1} parent=1 // loop_footer
      %s17 = sadd.s32 1, %s13
    $region7: #{tpu_custom_call.1} parent=1 // loop_footer_branch
      %12 = sbr.rel target = $region3
    $region8: #{tpu_custom_call.1} parent=1 // loop_exit
      _
    %4601 = vsyncpa [#allocation3], 1
    %s4602 = scalar_lea.sflag [#allocation3], 1
    %4603 = vsyncpa %s4602, 1

</llo_original>
